<compile_context>
chip_gen: v6e
topology: v6e:2x2x1
jax: 0.10.0
libtpu: 0.0.40
codegen_flags: <defaults>
</compile_context>

<pallas_src>
import functools
import math

import jax
import jax.numpy as jnp
from jax.experimental import pallas as pl
from jax.experimental.pallas import tpu as pltpu
from jax.scipy.special import erf as _jax_erf

_LN_EPS = 1e-5
_BN_EPS = 1e-5
_SQRT1_2 = 1.0 / math.sqrt(2.0)


# ----------------------------------------------------------------------------
# In-kernel math helpers (all lower cleanly in Mosaic).
# ----------------------------------------------------------------------------
def _erf_approx(x):
    # Abramowitz & Stegun 7.1.26, |abs err| <= 1.5e-7 (exact erf has no Mosaic
    # lowering).  Uses only mul/add/exp/select.
    ax = jnp.abs(x)
    t = 1.0 / (1.0 + 0.3275911 * ax)
    poly = t * (0.254829592 + t * (-0.284496736 + t * (1.421413741 +
             t * (-1.453152027 + t * 1.061405429))))
    y = 1.0 - poly * jnp.exp(-ax * ax)
    return jnp.where(x < 0.0, -y, y)


def _gelu(x):
    # gelu(x) = x * 0.5 * (1 + erf(x / sqrt(2)))  (matches the PyTorch helper)
    return x * 0.5 * (1.0 + _erf_approx(x * _SQRT1_2))


def _layernorm(x, g, b):
    mu = jnp.mean(x, axis=-1, keepdims=True)
    xc = x - mu
    var = jnp.mean(xc * xc, axis=-1, keepdims=True)
    return xc * jax.lax.rsqrt(var + _LN_EPS) * g + b


def _batchnorm(x, g, b):
    # BatchNorm1d forward with batch statistics (training-mode math).
    mu = jnp.mean(x, axis=0, keepdims=True)
    xc = x - mu
    var = jnp.mean(xc * xc, axis=0, keepdims=True)
    return xc * jax.lax.rsqrt(var + _BN_EPS) * g + b


# ----------------------------------------------------------------------------
# Kernels
# ----------------------------------------------------------------------------
def _attn_core_kernel(x_ref, wq_ref, wk_ref, wv_ref, ctx_ref, *, n_heads, d_k):
    """QKV projections + per-head softmax attention -> head-concatenated ctx."""
    x = x_ref[...]                                            # (N, D)
    q = jnp.dot(x, wq_ref[...], preferred_element_type=jnp.float32)
    k = jnp.dot(x, wk_ref[...], preferred_element_type=jnp.float32)
    v = jnp.dot(x, wv_ref[...], preferred_element_type=jnp.float32)
    scale = 1.0 / math.sqrt(d_k)

    parts = []
    for h in range(n_heads):                                  # static unroll
        sl = slice(h * d_k, (h + 1) * d_k)
        qh, kh, vh = q[:, sl], k[:, sl], v[:, sl]
        s = jnp.dot(qh, kh.T, preferred_element_type=jnp.float32) * scale
        s = s - jnp.max(s, axis=-1, keepdims=True)
        p = jnp.exp(s)
        p = p / jnp.sum(p, axis=-1, keepdims=True)
        parts.append(jnp.dot(p, vh, preferred_element_type=jnp.float32))
    ctx_ref[...] = jnp.concatenate(parts, axis=-1)            # one lane-dense store


def _attn_post_kernel(ctx_ref, x_ref, wo_ref, g1_ref, b1_ref,
                      w1_ref, bias1_ref, g2_ref, b2_ref, out_ref):
    """fc projection + residual + LN1 + Linear + residual + LN2."""
    x = x_ref[...]
    attn_out = jnp.dot(ctx_ref[...], wo_ref[...],
                       preferred_element_type=jnp.float32)
    h = _layernorm(attn_out + x, g1_ref[...], b1_ref[...])
    ff = jnp.dot(h, w1_ref[...], preferred_element_type=jnp.float32) + bias1_ref[...]
    out_ref[...] = _layernorm(ff + h, g2_ref[...], b2_ref[...])


def _head_kernel(x_ref, ang_ref, anb_ref,
                 w1_ref, b1_ref, g1_ref, be1_ref,
                 w2_ref, b2_ref,
                 w3_ref, b3_ref, g3_ref, be3_ref,
                 w4_ref, b4_ref,
                 x1_ref, x2_ref, x3_ref, x5_ref):
    """Final LayerNorm + bottleneck MLP with gelu/BatchNorm, 4 outputs."""
    x = x_ref[...]
    x1 = _layernorm(x, ang_ref[...], anb_ref[...])
    x1_ref[...] = x1
    h1 = _gelu(jnp.dot(x1, w1_ref[...], preferred_element_type=jnp.float32)
               + b1_ref[...])
    x2 = _batchnorm(h1, g1_ref[...], be1_ref[...])       # dropout: identity
    x2_ref[...] = x2
    x3 = jnp.dot(x2, w2_ref[...], preferred_element_type=jnp.float32) + b2_ref[...]
    x3_ref[...] = x3
    h3 = _gelu(jnp.dot(_gelu(x3), w3_ref[...],
                       preferred_element_type=jnp.float32) + b3_ref[...])
    x4 = _batchnorm(h3, g3_ref[...], be3_ref[...])       # dropout: identity
    x5_ref[...] = jnp.dot(x4, w4_ref[...],
                          preferred_element_type=jnp.float32) + b4_ref[...]


# ----------------------------------------------------------------------------
# pallas_call wrappers
# ----------------------------------------------------------------------------
def _spec(shape):
    zeros = (0,) * len(shape)
    return pl.BlockSpec(shape, lambda i, _z=zeros: _z)


_PARAMS = pltpu.CompilerParams(dimension_semantics=("arbitrary",))


def _encoder_layer(x, p, *, n_heads):
    n, d = x.shape
    d_k = d // n_heads

    ctx = pl.pallas_call(
        functools.partial(_attn_core_kernel, n_heads=n_heads, d_k=d_k),
        out_shape=jax.ShapeDtypeStruct((n, d), jnp.float32),
        grid=(1,),
        in_specs=[_spec((n, d)), _spec((d, d)), _spec((d, d)), _spec((d, d))],
        out_specs=_spec((n, d)),
        compiler_params=_PARAMS,
    )(x, p["wq_t"], p["wk_t"], p["wv_t"])

    # Faithful to the PyTorch code: context.transpose(1, 2).reshape(-1, H*d_v)
    # on the (H, N, d_v) context == ctx.T.reshape(N, D) on the (N, D)
    # head-concatenated context computed in-kernel.
    ctx_scr = ctx.T.reshape(n, d)

    return pl.pallas_call(
        _attn_post_kernel,
        out_shape=jax.ShapeDtypeStruct((n, d), jnp.float32),
        grid=(1,),
        in_specs=[_spec((n, d)), _spec((n, d)), _spec((d, d)),
                  _spec((1, d)), _spec((1, d)),
                  _spec((d, d)), _spec((1, d)),
                  _spec((1, d)), _spec((1, d))],
        out_specs=_spec((n, d)),
        compiler_params=_PARAMS,
    )(ctx_scr, x, p["wo_t"], p["ln1_g"], p["ln1_b"],
      p["w1_t"], p["b1"], p["ln2_g"], p["ln2_b"])


def _head(x, p):
    n, d = x.shape
    d2, d4 = d // 2, d // 4
    return pl.pallas_call(
        _head_kernel,
        out_shape=(jax.ShapeDtypeStruct((n, d), jnp.float32),
                   jax.ShapeDtypeStruct((n, d2), jnp.float32),
                   jax.ShapeDtypeStruct((n, d4), jnp.float32),
                   jax.ShapeDtypeStruct((n, d), jnp.float32)),
        grid=(1,),
        in_specs=[_spec((n, d)),
                  _spec((1, d)), _spec((1, d)),
                  _spec((d, d2)), _spec((1, d2)), _spec((1, d2)), _spec((1, d2)),
                  _spec((d2, d4)), _spec((1, d4)),
                  _spec((d4, d2)), _spec((1, d2)), _spec((1, d2)), _spec((1, d2)),
                  _spec((d2, d)), _spec((1, d))],
        out_specs=(_spec((n, d)), _spec((n, d2)), _spec((n, d4)), _spec((n, d))),
        compiler_params=_PARAMS,
    )(x, p["an_g"], p["an_b"],
      p["l1_w_t"], p["l1_b"], p["bn1_g"], p["bn1_b"],
      p["l2_w_t"], p["l2_b"],
      p["l3_w_t"], p["l3_b"], p["bn3_g"], p["bn3_b"],
      p["l4_w_t"], p["l4_b"])


def feature_encoder_forward(x, params, *, n_heads):
    for lp in params["layers"]:
        x = _encoder_layer(x, lp, n_heads=n_heads)
    return _head(x, params["head"])


feature_encoder_fwd = jax.jit(feature_encoder_forward, static_argnames=("n_heads",))


# ----------------------------------------------------------------------------
# Parameter construction (PyTorch nn.Linear convention: weight is (out, in)).
# ----------------------------------------------------------------------------
def init_params(key, d, n_layers):
    d2, d4 = d // 2, d // 4
    kit = iter(jax.random.split(key, 12 * n_layers + 14))

    def lin_w(o, i):
        return jax.random.normal(next(kit), (o, i), jnp.float32) * (1.0 / math.sqrt(i))

    def vec(dim, base=0.0, scale=0.1):
        return base + scale * jax.random.normal(next(kit), (dim,), jnp.float32)

    layers = []
    for _ in range(n_layers):
        layers.append(dict(
            wq=lin_w(d, d), wk=lin_w(d, d), wv=lin_w(d, d), wo=lin_w(d, d),
            ln1_g=vec(d, 1.0), ln1_b=vec(d),
            w1=lin_w(d, d), b1=vec(d),
            ln2_g=vec(d, 1.0), ln2_b=vec(d)))
    head = dict(
        an_g=vec(d, 1.0), an_b=vec(d),
        l1_w=lin_w(d2, d), l1_b=vec(d2), bn1_g=vec(d2, 1.0), bn1_b=vec(d2),
        l2_w=lin_w(d4, d2), l2_b=vec(d4),
        l3_w=lin_w(d2, d4), l3_b=vec(d2), bn3_g=vec(d2, 1.0), bn3_b=vec(d2),
        l4_w=lin_w(d, d2), l4_b=vec(d))
    return dict(layers=layers, head=head)


def prepare_params(raw):
    """One-time host-side prep: transpose weights to (in, out), vectors -> (1, dim)."""
    def row(v):
        return v.reshape(1, -1)

    layers = []
    for lp in raw["layers"]:
        layers.append(dict(
            wq_t=lp["wq"].T, wk_t=lp["wk"].T, wv_t=lp["wv"].T, wo_t=lp["wo"].T,
            ln1_g=row(lp["ln1_g"]), ln1_b=row(lp["ln1_b"]),
            w1_t=lp["w1"].T, b1=row(lp["b1"]),
            ln2_g=row(lp["ln2_g"]), ln2_b=row(lp["ln2_b"])))
    hp = raw["head"]
    head = dict(
        an_g=row(hp["an_g"]), an_b=row(hp["an_b"]),
        l1_w_t=hp["l1_w"].T, l1_b=row(hp["l1_b"]),
        bn1_g=row(hp["bn1_g"]), bn1_b=row(hp["bn1_b"]),
        l2_w_t=hp["l2_w"].T, l2_b=row(hp["l2_b"]),
        l3_w_t=hp["l3_w"].T, l3_b=row(hp["l3_b"]),
        bn3_g=row(hp["bn3_g"]), bn3_b=row(hp["bn3_b"]),
        l4_w_t=hp["l4_w"].T, l4_b=row(hp["l4_b"]))
    return dict(layers=layers, head=head)


# ----------------------------------------------------------------------------
# Pure-JAX reference mirroring the PyTorch module literally (for checking).
# ----------------------------------------------------------------------------
def _ref_gelu(x):
    return x * 0.5 * (1.0 + _jax_erf(x / math.sqrt(2.0)))


def _ref_layernorm(x, g, b):
    mu = x.mean(-1, keepdims=True)
    var = ((x - mu) ** 2).mean(-1, keepdims=True)
    return (x - mu) / jnp.sqrt(var + _LN_EPS) * g + b


def _ref_batchnorm(x, g, b):
    mu = x.mean(0, keepdims=True)
    var = ((x - mu) ** 2).mean(0, keepdims=True)
    return (x - mu) / jnp.sqrt(var + _BN_EPS) * g + b


def _ref_softmax(x):
    e = jnp.exp(x - x.max(-1, keepdims=True))
    return e / e.sum(-1, keepdims=True)


def _ref_mha(x, wq, wk, wv, wo, n_heads):
    n, d = x.shape
    d_k = d // n_heads
    q = (x @ wq.T).reshape(n, n_heads, d_k).transpose(1, 0, 2)
    k = (x @ wk.T).reshape(n, n_heads, d_k).transpose(1, 0, 2)
    v = (x @ wv.T).reshape(n, n_heads, d_k).transpose(1, 0, 2)
    scores = jnp.einsum("hqd,hkd->hqk", q, k) / math.sqrt(d_k)
    attn = _ref_softmax(scores)
    context = jnp.einsum("hqk,hkd->hqd", attn, v)
    # Literal translation of: context.transpose(1, 2).reshape(-1, H * d_v)
    context = jnp.transpose(context, (0, 2, 1)).reshape(n, n_heads * d_k)
    return context @ wo.T


def reference_forward(x, raw, n_heads):
    for lp in raw["layers"]:
        out = _ref_mha(x, lp["wq"], lp["wk"], lp["wv"], lp["wo"], n_heads)
        x = _ref_layernorm(out + x, lp["ln1_g"], lp["ln1_b"])
        out = x @ lp["w1"].T + lp["b1"]
        x = _ref_layernorm(out + x, lp["ln2_g"], lp["ln2_b"])
    hp = raw["head"]
    x1 = _ref_layernorm(x, hp["an_g"], hp["an_b"])
    x2 = _ref_batchnorm(_ref_gelu(x1 @ hp["l1_w"].T + hp["l1_b"]),
                        hp["bn1_g"], hp["bn1_b"])
    x3 = x2 @ hp["l2_w"].T + hp["l2_b"]
    x4 = _ref_batchnorm(_ref_gelu(_ref_gelu(x3) @ hp["l3_w"].T + hp["l3_b"]),
                        hp["bn3_g"], hp["bn3_b"])
    x5 = x4 @ hp["l4_w"].T + hp["l4_b"]
    return x1, x2, x3, x5


# ----------------------------------------------------------------------------
if __name__ == "__main__":
    VECTOR_SIZE, N_HEADS, N_LAYERS, N_TOKENS = 128, 4, 2, 16

    key = jax.random.PRNGKey(0)
    kx, kp = jax.random.split(key)
    x = jax.random.normal(kx, (N_TOKENS, VECTOR_SIZE), jnp.float32)
    raw = init_params(kp, VECTOR_SIZE, N_LAYERS)
    prep = prepare_params(raw)

    outs = feature_encoder_fwd(x, prep, n_heads=N_HEADS)
    outs = jax.block_until_ready(outs)

    with jax.default_matmul_precision("highest"):
        refs = reference_forward(x, raw, N_HEADS)

    for name, o, r in zip(("X1", "X2", "X3", "X5"), outs, refs):
        assert o.shape == r.shape, (name, o.shape, r.shape)
        err = float(jnp.max(jnp.abs(o - r)))
        assert err < 1e-3, (name, err)

    print("KERNEL_OK")
</pallas_src>

<mosaic_0001>
module attributes {stable_mosaic.version = 11 : i64} {
  func.func @_attn_post_kernel(%arg0: i32, %arg1: memref<16x128xf32, #tpu.memory_space<vmem>>, %arg2: memref<16x128xf32, #tpu.memory_space<vmem>>, %arg3: memref<128x128xf32, #tpu.memory_space<vmem>>, %arg4: memref<1x128xf32, #tpu.memory_space<vmem>>, %arg5: memref<1x128xf32, #tpu.memory_space<vmem>>, %arg6: memref<128x128xf32, #tpu.memory_space<vmem>>, %arg7: memref<1x128xf32, #tpu.memory_space<vmem>>, %arg8: memref<1x128xf32, #tpu.memory_space<vmem>>, %arg9: memref<1x128xf32, #tpu.memory_space<vmem>>, %arg10: memref<16x128xf32, #tpu.memory_space<vmem>>) attributes {dimension_semantics = [#tpu.dimension_semantics<arbitrary>], iteration_bounds = array<i64: 1>, scalar_prefetch = 0 : i64, scratch_operands = 0 : i64, tpu.core_type = #tpu.core_type<tc>, window_params = [{pipeline_mode = #tpu.pipeline_mode<synchronous>, transform_indices = @transform_0, window_bounds = array<i64: 16, 128>}, {pipeline_mode = #tpu.pipeline_mode<synchronous>, transform_indices = @transform_1, window_bounds = array<i64: 16, 128>}, {pipeline_mode = #tpu.pipeline_mode<synchronous>, transform_indices = @transform_2, window_bounds = array<i64: 128, 128>}, {pipeline_mode = #tpu.pipeline_mode<synchronous>, transform_indices = @transform_3, window_bounds = array<i64: 1, 128>}, {pipeline_mode = #tpu.pipeline_mode<synchronous>, transform_indices = @transform_4, window_bounds = array<i64: 1, 128>}, {pipeline_mode = #tpu.pipeline_mode<synchronous>, transform_indices = @transform_5, window_bounds = array<i64: 128, 128>}, {pipeline_mode = #tpu.pipeline_mode<synchronous>, transform_indices = @transform_6, window_bounds = array<i64: 1, 128>}, {pipeline_mode = #tpu.pipeline_mode<synchronous>, transform_indices = @transform_7, window_bounds = array<i64: 1, 128>}, {pipeline_mode = #tpu.pipeline_mode<synchronous>, transform_indices = @transform_8, window_bounds = array<i64: 1, 128>}, {pipeline_mode = #tpu.pipeline_mode<synchronous>, transform_indices = @transform_9, window_bounds = array<i64: 16, 128>}]} {
    %c0 = arith.constant 0 : index
    %c0_0 = arith.constant 0 : index
    %0 = vector.load %arg2[%c0, %c0_0] : memref<16x128xf32, #tpu.memory_space<vmem>>, vector<16x128xf32>
    %c0_1 = arith.constant 0 : index
    %c0_2 = arith.constant 0 : index
    %1 = vector.load %arg1[%c0_1, %c0_2] : memref<16x128xf32, #tpu.memory_space<vmem>>, vector<16x128xf32>
    %c0_3 = arith.constant 0 : index
    %c0_4 = arith.constant 0 : index
    %2 = vector.load %arg3[%c0_3, %c0_4] : memref<128x128xf32, #tpu.memory_space<vmem>>, vector<128x128xf32>
    %cst = arith.constant dense<0.000000e+00> : vector<16x128xf32>
    %3 = tpu.matmul %1, %2, %cst {dimension_numbers = #tpu.dot_dimension_numbers<[1], [0], [0], [1], [0, 0, 1, 1], [], []>} : vector<16x128xf32>, vector<128x128xf32>, vector<16x128xf32> -> vector<16x128xf32>
    %4 = arith.addf %3, %0 : vector<16x128xf32>
    %c0_5 = arith.constant 0 : index
    %c0_6 = arith.constant 0 : index
    %5 = vector.load %arg4[%c0_5, %c0_6] : memref<1x128xf32, #tpu.memory_space<vmem>>, vector<1x128xf32>
    %c0_7 = arith.constant 0 : index
    %c0_8 = arith.constant 0 : index
    %6 = vector.load %arg5[%c0_7, %c0_8] : memref<1x128xf32, #tpu.memory_space<vmem>>, vector<1x128xf32>
    %cst_9 = arith.constant dense<0.000000e+00> : vector<16xf32>
    %7 = vector.multi_reduction <add>, %4, %cst_9 [1] : vector<16x128xf32> to vector<16xf32>
    %8 = vector.shape_cast %7 : vector<16xf32> to vector<16x1xf32>
    %cst_10 = arith.constant 1.280000e+02 : f32
    %9 = vector.broadcast %cst_10 : f32 to vector<16x1xf32>
    %10 = arith.divf %8, %9 : vector<16x1xf32>
    %11 = vector.broadcast %10 : vector<16x1xf32> to vector<16x128xf32>
    %12 = arith.subf %4, %11 : vector<16x128xf32>
    %13 = arith.mulf %12, %12 : vector<16x128xf32>
    %cst_11 = arith.constant dense<0.000000e+00> : vector<16xf32>
    %14 = vector.multi_reduction <add>, %13, %cst_11 [1] : vector<16x128xf32> to vector<16xf32>
    %15 = vector.shape_cast %14 : vector<16xf32> to vector<16x1xf32>
    %cst_12 = arith.constant 1.280000e+02 : f32
    %16 = vector.broadcast %cst_12 : f32 to vector<16x1xf32>
    %17 = arith.divf %15, %16 : vector<16x1xf32>
    %cst_13 = arith.constant 9.99999974E-6 : f32
    %18 = vector.broadcast %cst_13 : f32 to vector<16x1xf32>
    %19 = arith.addf %17, %18 : vector<16x1xf32>
    %20 = math.rsqrt %19 : vector<16x1xf32>
    %21 = vector.broadcast %20 : vector<16x1xf32> to vector<16x128xf32>
    %22 = arith.mulf %12, %21 : vector<16x128xf32>
    %23 = vector.broadcast %5 : vector<1x128xf32> to vector<16x128xf32>
    %24 = arith.mulf %22, %23 : vector<16x128xf32>
    %25 = vector.broadcast %6 : vector<1x128xf32> to vector<16x128xf32>
    %26 = arith.addf %24, %25 : vector<16x128xf32>
    %c0_14 = arith.constant 0 : index
    %c0_15 = arith.constant 0 : index
    %27 = vector.load %arg6[%c0_14, %c0_15] : memref<128x128xf32, #tpu.memory_space<vmem>>, vector<128x128xf32>
    %cst_16 = arith.constant dense<0.000000e+00> : vector<16x128xf32>
    %28 = tpu.matmul %26, %27, %cst_16 {dimension_numbers = #tpu.dot_dimension_numbers<[1], [0], [0], [1], [0, 0, 1, 1], [], []>} : vector<16x128xf32>, vector<128x128xf32>, vector<16x128xf32> -> vector<16x128xf32>
    %c0_17 = arith.constant 0 : index
    %c0_18 = arith.constant 0 : index
    %29 = vector.load %arg7[%c0_17, %c0_18] : memref<1x128xf32, #tpu.memory_space<vmem>>, vector<1x128xf32>
    %30 = vector.broadcast %29 : vector<1x128xf32> to vector<16x128xf32>
    %31 = arith.addf %28, %30 : vector<16x128xf32>
    %32 = arith.addf %31, %26 : vector<16x128xf32>
    %c0_19 = arith.constant 0 : index
    %c0_20 = arith.constant 0 : index
    %33 = vector.load %arg8[%c0_19, %c0_20] : memref<1x128xf32, #tpu.memory_space<vmem>>, vector<1x128xf32>
    %c0_21 = arith.constant 0 : index
    %c0_22 = arith.constant 0 : index
    %34 = vector.load %arg9[%c0_21, %c0_22] : memref<1x128xf32, #tpu.memory_space<vmem>>, vector<1x128xf32>
    %cst_23 = arith.constant dense<0.000000e+00> : vector<16xf32>
    %35 = vector.multi_reduction <add>, %32, %cst_23 [1] : vector<16x128xf32> to vector<16xf32>
    %36 = vector.shape_cast %35 : vector<16xf32> to vector<16x1xf32>
    %cst_24 = arith.constant 1.280000e+02 : f32
    %37 = vector.broadcast %cst_24 : f32 to vector<16x1xf32>
    %38 = arith.divf %36, %37 : vector<16x1xf32>
    %39 = vector.broadcast %38 : vector<16x1xf32> to vector<16x128xf32>
    %40 = arith.subf %32, %39 : vector<16x128xf32>
    %41 = arith.mulf %40, %40 : vector<16x128xf32>
    %cst_25 = arith.constant dense<0.000000e+00> : vector<16xf32>
    %42 = vector.multi_reduction <add>, %41, %cst_25 [1] : vector<16x128xf32> to vector<16xf32>
    %43 = vector.shape_cast %42 : vector<16xf32> to vector<16x1xf32>
    %cst_26 = arith.constant 1.280000e+02 : f32
    %44 = vector.broadcast %cst_26 : f32 to vector<16x1xf32>
    %45 = arith.divf %43, %44 : vector<16x1xf32>
    %cst_27 = arith.constant 9.99999974E-6 : f32
    %46 = vector.broadcast %cst_27 : f32 to vector<16x1xf32>
    %47 = arith.addf %45, %46 : vector<16x1xf32>
    %48 = math.rsqrt %47 : vector<16x1xf32>
    %49 = vector.broadcast %48 : vector<16x1xf32> to vector<16x128xf32>
    %50 = arith.mulf %40, %49 : vector<16x128xf32>
    %51 = vector.broadcast %33 : vector<1x128xf32> to vector<16x128xf32>
    %52 = arith.mulf %50, %51 : vector<16x128xf32>
    %53 = vector.broadcast %34 : vector<1x128xf32> to vector<16x128xf32>
    %54 = arith.addf %52, %53 : vector<16x128xf32>
    %c0_28 = arith.constant 0 : index
    %c0_29 = arith.constant 0 : index
    %55 = vector.load %arg10[%c0_28, %c0_29] : memref<16x128xf32, #tpu.memory_space<vmem>>, vector<16x128xf32>
    tpu.vector_store %arg10[%c0_28, %c0_29], %54 {strides = array<i32>} : memref<16x128xf32, #tpu.memory_space<vmem>>, vector<16x128xf32>,
    return
  }
  func.func @transform_0(%arg0: i32) -> (i32, i32) {
    %c0_i32 = arith.constant 0 : i32
    %c0_i32_0 = arith.constant 0 : i32
    %c0_i32_1 = arith.constant 0 : i32
    return %c0_i32, %c0_i32_0 : i32, i32
  }
  func.func @transform_1(%arg0: i32) -> (i32, i32) {
    %c0_i32 = arith.constant 0 : i32
    %c0_i32_0 = arith.constant 0 : i32
    %c0_i32_1 = arith.constant 0 : i32
    return %c0_i32, %c0_i32_0 : i32, i32
  }
  func.func @transform_2(%arg0: i32) -> (i32, i32) {
    %c0_i32 = arith.constant 0 : i32
    %c0_i32_0 = arith.constant 0 : i32
    %c0_i32_1 = arith.constant 0 : i32
    return %c0_i32, %c0_i32_0 : i32, i32
  }
  func.func @transform_3(%arg0: i32) -> (i32, i32) {
    %c0_i32 = arith.constant 0 : i32
    %c0_i32_0 = arith.constant 0 : i32
    %c0_i32_1 = arith.constant 0 : i32
    return %c0_i32, %c0_i32_0 : i32, i32
  }
  func.func @transform_4(%arg0: i32) -> (i32, i32) {
    %c0_i32 = arith.constant 0 : i32
    %c0_i32_0 = arith.constant 0 : i32
    %c0_i32_1 = arith.constant 0 : i32
    return %c0_i32, %c0_i32_0 : i32, i32
  }
  func.func @transform_5(%arg0: i32) -> (i32, i32) {
    %c0_i32 = arith.constant 0 : i32
    %c0_i32_0 = arith.constant 0 : i32
    %c0_i32_1 = arith.constant 0 : i32
    return %c0_i32, %c0_i32_0 : i32, i32
  }
  func.func @transform_6(%arg0: i32) -> (i32, i32) {
    %c0_i32 = arith.constant 0 : i32
    %c0_i32_0 = arith.constant 0 : i32
    %c0_i32_1 = arith.constant 0 : i32
    return %c0_i32, %c0_i32_0 : i32, i32
  }
  func.func @transform_7(%arg0: i32) -> (i32, i32) {
    %c0_i32 = arith.constant 0 : i32
    %c0_i32_0 = arith.constant 0 : i32
    %c0_i32_1 = arith.constant 0 : i32
    return %c0_i32, %c0_i32_0 : i32, i32
  }
  func.func @transform_8(%arg0: i32) -> (i32, i32) {
    %c0_i32 = arith.constant 0 : i32
    %c0_i32_0 = arith.constant 0 : i32
    %c0_i32_1 = arith.constant 0 : i32
    return %c0_i32, %c0_i32_0 : i32, i32
  }
  func.func @transform_9(%arg0: i32) -> (i32, i32) {
    %c0_i32 = arith.constant 0 : i32
    %c0_i32_0 = arith.constant 0 : i32
    %c0_i32_1 = arith.constant 0 : i32
    return %c0_i32, %c0_i32_0 : i32, i32
  }
}

module attributes {stable_mosaic.version = 11 : i64} {
  func.func @_attn_core_kernel(%arg0: i32, %arg1: memref<16x128xf32, #tpu.memory_space<vmem>>, %arg2: memref<128x128xf32, #tpu.memory_space<vmem>>, %arg3: memref<128x128xf32, #tpu.memory_space<vmem>>, %arg4: memref<128x128xf32, #tpu.memory_space<vmem>>, %arg5: memref<16x128xf32, #tpu.memory_space<vmem>>) attributes {dimension_semantics = [#tpu.dimension_semantics<arbitrary>], iteration_bounds = array<i64: 1>, scalar_prefetch = 0 : i64, scratch_operands = 0 : i64, tpu.core_type = #tpu.core_type<tc>, window_params = [{pipeline_mode = #tpu.pipeline_mode<synchronous>, transform_indices = @transform_0, window_bounds = array<i64: 16, 128>}, {pipeline_mode = #tpu.pipeline_mode<synchronous>, transform_indices = @transform_1, window_bounds = array<i64: 128, 128>}, {pipeline_mode = #tpu.pipeline_mode<synchronous>, transform_indices = @transform_2, window_bounds = array<i64: 128, 128>}, {pipeline_mode = #tpu.pipeline_mode<synchronous>, transform_indices = @transform_3, window_bounds = array<i64: 128, 128>}, {pipeline_mode = #tpu.pipeline_mode<synchronous>, transform_indices = @transform_4, window_bounds = array<i64: 16, 128>}]} {
    %c0 = arith.constant 0 : index
    %c0_0 = arith.constant 0 : index
    %0 = vector.load %arg1[%c0, %c0_0] : memref<16x128xf32, #tpu.memory_space<vmem>>, vector<16x128xf32>
    %c0_1 = arith.constant 0 : index
    %c0_2 = arith.constant 0 : index
    %1 = vector.load %arg2[%c0_1, %c0_2] : memref<128x128xf32, #tpu.memory_space<vmem>>, vector<128x128xf32>
    %cst = arith.constant dense<0.000000e+00> : vector<16x128xf32>
    %2 = tpu.matmul %0, %1, %cst {dimension_numbers = #tpu.dot_dimension_numbers<[1], [0], [0], [1], [0, 0, 1, 1], [], []>} : vector<16x128xf32>, vector<128x128xf32>, vector<16x128xf32> -> vector<16x128xf32>
    %c0_3 = arith.constant 0 : index
    %c0_4 = arith.constant 0 : index
    %3 = vector.load %arg3[%c0_3, %c0_4] : memref<128x128xf32, #tpu.memory_space<vmem>>, vector<128x128xf32>
    %cst_5 = arith.constant dense<0.000000e+00> : vector<16x128xf32>
    %4 = tpu.matmul %0, %3, %cst_5 {dimension_numbers = #tpu.dot_dimension_numbers<[1], [0], [0], [1], [0, 0, 1, 1], [], []>} : vector<16x128xf32>, vector<128x128xf32>, vector<16x128xf32> -> vector<16x128xf32>
    %c0_6 = arith.constant 0 : index
    %c0_7 = arith.constant 0 : index
    %5 = vector.load %arg4[%c0_6, %c0_7] : memref<128x128xf32, #tpu.memory_space<vmem>>, vector<128x128xf32>
    %cst_8 = arith.constant dense<0.000000e+00> : vector<16x128xf32>
    %6 = tpu.matmul %0, %5, %cst_8 {dimension_numbers = #tpu.dot_dimension_numbers<[1], [0], [0], [1], [0, 0, 1, 1], [], []>} : vector<16x128xf32>, vector<128x128xf32>, vector<16x128xf32> -> vector<16x128xf32>
    %7 = vector.extract_strided_slice %2 {offsets = [0, 0], sizes = [16, 32], strides = [1, 1]} : vector<16x128xf32> to vector<16x32xf32>
    %8 = vector.extract_strided_slice %4 {offsets = [0, 0], sizes = [16, 32], strides = [1, 1]} : vector<16x128xf32> to vector<16x32xf32>
    %9 = vector.extract_strided_slice %6 {offsets = [0, 0], sizes = [16, 32], strides = [1, 1]} : vector<16x128xf32> to vector<16x32xf32>
    %10 = tpu.transpose %8, [1, 0] : vector<16x32xf32> -> vector<32x16xf32>
    %cst_9 = arith.constant dense<0.000000e+00> : vector<16x16xf32>
    %11 = tpu.matmul %7, %10, %cst_9 {dimension_numbers = #tpu.dot_dimension_numbers<[1], [0], [0], [1], [0, 0, 1, 1], [], []>} : vector<16x32xf32>, vector<32x16xf32>, vector<16x16xf32> -> vector<16x16xf32>
    %cst_10 = arith.constant 0.176776692 : f32
    %12 = vector.broadcast %cst_10 : f32 to vector<16x16xf32>
    %13 = arith.mulf %11, %12 : vector<16x16xf32>
    %cst_11 = arith.constant dense<0xFF800000> : vector<16xf32>
    %14 = vector.multi_reduction <maximumf>, %13, %cst_11 [1] : vector<16x16xf32> to vector<16xf32>
    %15 = vector.shape_cast %14 : vector<16xf32> to vector<16x1xf32>
    %16 = vector.broadcast %15 : vector<16x1xf32> to vector<16x16xf32>
    %17 = arith.subf %13, %16 : vector<16x16xf32>
    %18 = math.exp %17 : vector<16x16xf32>
    %cst_12 = arith.constant dense<0.000000e+00> : vector<16xf32>
    %19 = vector.multi_reduction <add>, %18, %cst_12 [1] : vector<16x16xf32> to vector<16xf32>
    %20 = vector.shape_cast %19 : vector<16xf32> to vector<16x1xf32>
    %21 = vector.broadcast %20 : vector<16x1xf32> to vector<16x16xf32>
    %22 = arith.divf %18, %21 : vector<16x16xf32>
    %cst_13 = arith.constant dense<0.000000e+00> : vector<16x32xf32>
    %23 = tpu.matmul %22, %9, %cst_13 {dimension_numbers = #tpu.dot_dimension_numbers<[1], [0], [0], [1], [0, 0, 1, 1], [], []>} : vector<16x16xf32>, vector<16x32xf32>, vector<16x32xf32> -> vector<16x32xf32>
    %24 = vector.extract_strided_slice %2 {offsets = [0, 32], sizes = [16, 32], strides = [1, 1]} : vector<16x128xf32> to vector<16x32xf32>
    %25 = vector.extract_strided_slice %4 {offsets = [0, 32], sizes = [16, 32], strides = [1, 1]} : vector<16x128xf32> to vector<16x32xf32>
    %26 = vector.extract_strided_slice %6 {offsets = [0, 32], sizes = [16, 32], strides = [1, 1]} : vector<16x128xf32> to vector<16x32xf32>
    %27 = tpu.transpose %25, [1, 0] : vector<16x32xf32> -> vector<32x16xf32>
    %cst_14 = arith.constant dense<0.000000e+00> : vector<16x16xf32>
    %28 = tpu.matmul %24, %27, %cst_14 {dimension_numbers = #tpu.dot_dimension_numbers<[1], [0], [0], [1], [0, 0, 1, 1], [], []>} : vector<16x32xf32>, vector<32x16xf32>, vector<16x16xf32> -> vector<16x16xf32>
    %cst_15 = arith.constant 0.176776692 : f32
    %29 = vector.broadcast %cst_15 : f32 to vector<16x16xf32>
    %30 = arith.mulf %28, %29 : vector<16x16xf32>
    %cst_16 = arith.constant dense<0xFF800000> : vector<16xf32>
    %31 = vector.multi_reduction <maximumf>, %30, %cst_16 [1] : vector<16x16xf32> to vector<16xf32>
    %32 = vector.shape_cast %31 : vector<16xf32> to vector<16x1xf32>
    %33 = vector.broadcast %32 : vector<16x1xf32> to vector<16x16xf32>
    %34 = arith.subf %30, %33 : vector<16x16xf32>
    %35 = math.exp %34 : vector<16x16xf32>
    %cst_17 = arith.constant dense<0.000000e+00> : vector<16xf32>
    %36 = vector.multi_reduction <add>, %35, %cst_17 [1] : vector<16x16xf32> to vector<16xf32>
    %37 = vector.shape_cast %36 : vector<16xf32> to vector<16x1xf32>
    %38 = vector.broadcast %37 : vector<16x1xf32> to vector<16x16xf32>
    %39 = arith.divf %35, %38 : vector<16x16xf32>
    %cst_18 = arith.constant dense<0.000000e+00> : vector<16x32xf32>
    %40 = tpu.matmul %39, %26, %cst_18 {dimension_numbers = #tpu.dot_dimension_numbers<[1], [0], [0], [1], [0, 0, 1, 1], [], []>} : vector<16x16xf32>, vector<16x32xf32>, vector<16x32xf32> -> vector<16x32xf32>
    %41 = vector.extract_strided_slice %2 {offsets = [0, 64], sizes = [16, 32], strides = [1, 1]} : vector<16x128xf32> to vector<16x32xf32>
    %42 = vector.extract_strided_slice %4 {offsets = [0, 64], sizes = [16, 32], strides = [1, 1]} : vector<16x128xf32> to vector<16x32xf32>
    %43 = vector.extract_strided_slice %6 {offsets = [0, 64], sizes = [16, 32], strides = [1, 1]} : vector<16x128xf32> to vector<16x32xf32>
    %44 = tpu.transpose %42, [1, 0] : vector<16x32xf32> -> vector<32x16xf32>
    %cst_19 = arith.constant dense<0.000000e+00> : vector<16x16xf32>
    %45 = tpu.matmul %41, %44, %cst_19 {dimension_numbers = #tpu.dot_dimension_numbers<[1], [0], [0], [1], [0, 0, 1, 1], [], []>} : vector<16x32xf32>, vector<32x16xf32>, vector<16x16xf32> -> vector<16x16xf32>
    %cst_20 = arith.constant 0.176776692 : f32
    %46 = vector.broadcast %cst_20 : f32 to vector<16x16xf32>
    %47 = arith.mulf %45, %46 : vector<16x16xf32>
    %cst_21 = arith.constant dense<0xFF800000> : vector<16xf32>
    %48 = vector.multi_reduction <maximumf>, %47, %cst_21 [1] : vector<16x16xf32> to vector<16xf32>
    %49 = vector.shape_cast %48 : vector<16xf32> to vector<16x1xf32>
    %50 = vector.broadcast %49 : vector<16x1xf32> to vector<16x16xf32>
    %51 = arith.subf %47, %50 : vector<16x16xf32>
    %52 = math.exp %51 : vector<16x16xf32>
    %cst_22 = arith.constant dense<0.000000e+00> : vector<16xf32>
    %53 = vector.multi_reduction <add>, %52, %cst_22 [1] : vector<16x16xf32> to vector<16xf32>
    %54 = vector.shape_cast %53 : vector<16xf32> to vector<16x1xf32>
    %55 = vector.broadcast %54 : vector<16x1xf32> to vector<16x16xf32>
    %56 = arith.divf %52, %55 : vector<16x16xf32>
    %cst_23 = arith.constant dense<0.000000e+00> : vector<16x32xf32>
    %57 = tpu.matmul %56, %43, %cst_23 {dimension_numbers = #tpu.dot_dimension_numbers<[1], [0], [0], [1], [0, 0, 1, 1], [], []>} : vector<16x16xf32>, vector<16x32xf32>, vector<16x32xf32> -> vector<16x32xf32>
    %58 = vector.extract_strided_slice %2 {offsets = [0, 96], sizes = [16, 32], strides = [1, 1]} : vector<16x128xf32> to vector<16x32xf32>
    %59 = vector.extract_strided_slice %4 {offsets = [0, 96], sizes = [16, 32], strides = [1, 1]} : vector<16x128xf32> to vector<16x32xf32>
    %60 = vector.extract_strided_slice %6 {offsets = [0, 96], sizes = [16, 32], strides = [1, 1]} : vector<16x128xf32> to vector<16x32xf32>
    %61 = tpu.transpose %59, [1, 0] : vector<16x32xf32> -> vector<32x16xf32>
    %cst_24 = arith.constant dense<0.000000e+00> : vector<16x16xf32>
    %62 = tpu.matmul %58, %61, %cst_24 {dimension_numbers = #tpu.dot_dimension_numbers<[1], [0], [0], [1], [0, 0, 1, 1], [], []>} : vector<16x32xf32>, vector<32x16xf32>, vector<16x16xf32> -> vector<16x16xf32>
    %cst_25 = arith.constant 0.176776692 : f32
    %63 = vector.broadcast %cst_25 : f32 to vector<16x16xf32>
    %64 = arith.mulf %62, %63 : vector<16x16xf32>
    %cst_26 = arith.constant dense<0xFF800000> : vector<16xf32>
    %65 = vector.multi_reduction <maximumf>, %64, %cst_26 [1] : vector<16x16xf32> to vector<16xf32>
    %66 = vector.shape_cast %65 : vector<16xf32> to vector<16x1xf32>
    %67 = vector.broadcast %66 : vector<16x1xf32> to vector<16x16xf32>
    %68 = arith.subf %64, %67 : vector<16x16xf32>
    %69 = math.exp %68 : vector<16x16xf32>
    %cst_27 = arith.constant dense<0.000000e+00> : vector<16xf32>
    %70 = vector.multi_reduction <add>, %69, %cst_27 [1] : vector<16x16xf32> to vector<16xf32>
    %71 = vector.shape_cast %70 : vector<16xf32> to vector<16x1xf32>
    %72 = vector.broadcast %71 : vector<16x1xf32> to vector<16x16xf32>
    %73 = arith.divf %69, %72 : vector<16x16xf32>
    %cst_28 = arith.constant dense<0.000000e+00> : vector<16x32xf32>
    %74 = tpu.matmul %73, %60, %cst_28 {dimension_numbers = #tpu.dot_dimension_numbers<[1], [0], [0], [1], [0, 0, 1, 1], [], []>} : vector<16x16xf32>, vector<16x32xf32>, vector<16x32xf32> -> vector<16x32xf32>
    %75 = tpu.concatenate %23, %40, %57, %74 in 1 : vector<16x32xf32>, vector<16x32xf32>, vector<16x32xf32>, vector<16x32xf32> -> vector<16x128xf32>
    %c0_29 = arith.constant 0 : index
    %c0_30 = arith.constant 0 : index
    %76 = vector.load %arg5[%c0_29, %c0_30] : memref<16x128xf32, #tpu.memory_space<vmem>>, vector<16x128xf32>
    tpu.vector_store %arg5[%c0_29, %c0_30], %75 {strides = array<i32>} : memref<16x128xf32, #tpu.memory_space<vmem>>, vector<16x128xf32>,
    return
  }
  func.func @transform_0(%arg0: i32) -> (i32, i32) {
    %c0_i32 = arith.constant 0 : i32
    %c0_i32_0 = arith.constant 0 : i32
    %c0_i32_1 = arith.constant 0 : i32
    return %c0_i32, %c0_i32_0 : i32, i32
  }
  func.func @transform_1(%arg0: i32) -> (i32, i32) {
    %c0_i32 = arith.constant 0 : i32
    %c0_i32_0 = arith.constant 0 : i32
    %c0_i32_1 = arith.constant 0 : i32
    return %c0_i32, %c0_i32_0 : i32, i32
  }
  func.func @transform_2(%arg0: i32) -> (i32, i32) {
    %c0_i32 = arith.constant 0 : i32
    %c0_i32_0 = arith.constant 0 : i32
    %c0_i32_1 = arith.constant 0 : i32
    return %c0_i32, %c0_i32_0 : i32, i32
  }
  func.func @transform_3(%arg0: i32) -> (i32, i32) {
    %c0_i32 = arith.constant 0 : i32
    %c0_i32_0 = arith.constant 0 : i32
    %c0_i32_1 = arith.constant 0 : i32
    return %c0_i32, %c0_i32_0 : i32, i32
  }
  func.func @transform_4(%arg0: i32) -> (i32, i32) {
    %c0_i32 = arith.constant 0 : i32
    %c0_i32_0 = arith.constant 0 : i32
    %c0_i32_1 = arith.constant 0 : i32
    return %c0_i32, %c0_i32_0 : i32, i32
  }
}

module attributes {stable_mosaic.version = 11 : i64} {
  func.func @_attn_core_kernel(%arg0: i32, %arg1: memref<16x128xf32, #tpu.memory_space<vmem>>, %arg2: memref<128x128xf32, #tpu.memory_space<vmem>>, %arg3: memref<128x128xf32, #tpu.memory_space<vmem>>, %arg4: memref<128x128xf32, #tpu.memory_space<vmem>>, %arg5: memref<16x128xf32, #tpu.memory_space<vmem>>) attributes {dimension_semantics = [#tpu.dimension_semantics<arbitrary>], iteration_bounds = array<i64: 1>, scalar_prefetch = 0 : i64, scratch_operands = 0 : i64, tpu.core_type = #tpu.core_type<tc>, window_params = [{pipeline_mode = #tpu.pipeline_mode<synchronous>, transform_indices = @transform_0, window_bounds = array<i64: 16, 128>}, {pipeline_mode = #tpu.pipeline_mode<synchronous>, transform_indices = @transform_1, window_bounds = array<i64: 128, 128>}, {pipeline_mode = #tpu.pipeline_mode<synchronous>, transform_indices = @transform_2, window_bounds = array<i64: 128, 128>}, {pipeline_mode = #tpu.pipeline_mode<synchronous>, transform_indices = @transform_3, window_bounds = array<i64: 128, 128>}, {pipeline_mode = #tpu.pipeline_mode<synchronous>, transform_indices = @transform_4, window_bounds = array<i64: 16, 128>}]} {
    %c0 = arith.constant 0 : index
    %c0_0 = arith.constant 0 : index
    %0 = vector.load %arg1[%c0, %c0_0] : memref<16x128xf32, #tpu.memory_space<vmem>>, vector<16x128xf32>
    %c0_1 = arith.constant 0 : index
    %c0_2 = arith.constant 0 : index
    %1 = vector.load %arg2[%c0_1, %c0_2] : memref<128x128xf32, #tpu.memory_space<vmem>>, vector<128x128xf32>
    %cst = arith.constant dense<0.000000e+00> : vector<16x128xf32>
    %2 = tpu.matmul %0, %1, %cst {dimension_numbers = #tpu.dot_dimension_numbers<[1], [0], [0], [1], [0, 0, 1, 1], [], []>} : vector<16x128xf32>, vector<128x128xf32>, vector<16x128xf32> -> vector<16x128xf32>
    %c0_3 = arith.constant 0 : index
    %c0_4 = arith.constant 0 : index
    %3 = vector.load %arg3[%c0_3, %c0_4] : memref<128x128xf32, #tpu.memory_space<vmem>>, vector<128x128xf32>
    %cst_5 = arith.constant dense<0.000000e+00> : vector<16x128xf32>
    %4 = tpu.matmul %0, %3, %cst_5 {dimension_numbers = #tpu.dot_dimension_numbers<[1], [0], [0], [1], [0, 0, 1, 1], [], []>} : vector<16x128xf32>, vector<128x128xf32>, vector<16x128xf32> -> vector<16x128xf32>
    %c0_6 = arith.constant 0 : index
    %c0_7 = arith.constant 0 : index
    %5 = vector.load %arg4[%c0_6, %c0_7] : memref<128x128xf32, #tpu.memory_space<vmem>>, vector<128x128xf32>
    %cst_8 = arith.constant dense<0.000000e+00> : vector<16x128xf32>
    %6 = tpu.matmul %0, %5, %cst_8 {dimension_numbers = #tpu.dot_dimension_numbers<[1], [0], [0], [1], [0, 0, 1, 1], [], []>} : vector<16x128xf32>, vector<128x128xf32>, vector<16x128xf32> -> vector<16x128xf32>
    %7 = vector.extract_strided_slice %2 {offsets = [0, 0], sizes = [16, 32], strides = [1, 1]} : vector<16x128xf32> to vector<16x32xf32>
    %8 = vector.extract_strided_slice %4 {offsets = [0, 0], sizes = [16, 32], strides = [1, 1]} : vector<16x128xf32> to vector<16x32xf32>
    %9 = vector.extract_strided_slice %6 {offsets = [0, 0], sizes = [16, 32], strides = [1, 1]} : vector<16x128xf32> to vector<16x32xf32>
    %10 = tpu.transpose %8, [1, 0] : vector<16x32xf32> -> vector<32x16xf32>
    %cst_9 = arith.constant dense<0.000000e+00> : vector<16x16xf32>
    %11 = tpu.matmul %7, %10, %cst_9 {dimension_numbers = #tpu.dot_dimension_numbers<[1], [0], [0], [1], [0, 0, 1, 1], [], []>} : vector<16x32xf32>, vector<32x16xf32>, vector<16x16xf32> -> vector<16x16xf32>
    %cst_10 = arith.constant 0.176776692 : f32
    %12 = vector.broadcast %cst_10 : f32 to vector<16x16xf32>
    %13 = arith.mulf %11, %12 : vector<16x16xf32>
    %cst_11 = arith.constant dense<0xFF800000> : vector<16xf32>
    %14 = vector.multi_reduction <maximumf>, %13, %cst_11 [1] : vector<16x16xf32> to vector<16xf32>
    %15 = vector.shape_cast %14 : vector<16xf32> to vector<16x1xf32>
    %16 = vector.broadcast %15 : vector<16x1xf32> to vector<16x16xf32>
    %17 = arith.subf %13, %16 : vector<16x16xf32>
    %18 = math.exp %17 : vector<16x16xf32>
    %cst_12 = arith.constant dense<0.000000e+00> : vector<16xf32>
    %19 = vector.multi_reduction <add>, %18, %cst_12 [1] : vector<16x16xf32> to vector<16xf32>
    %20 = vector.shape_cast %19 : vector<16xf32> to vector<16x1xf32>
    %21 = vector.broadcast %20 : vector<16x1xf32> to vector<16x16xf32>
    %22 = arith.divf %18, %21 : vector<16x16xf32>
    %cst_13 = arith.constant dense<0.000000e+00> : vector<16x32xf32>
    %23 = tpu.matmul %22, %9, %cst_13 {dimension_numbers = #tpu.dot_dimension_numbers<[1], [0], [0], [1], [0, 0, 1, 1], [], []>} : vector<16x16xf32>, vector<16x32xf32>, vector<16x32xf32> -> vector<16x32xf32>
    %24 = vector.extract_strided_slice %2 {offsets = [0, 32], sizes = [16, 32], strides = [1, 1]} : vector<16x128xf32> to vector<16x32xf32>
    %25 = vector.extract_strided_slice %4 {offsets = [0, 32], sizes = [16, 32], strides = [1, 1]} : vector<16x128xf32> to vector<16x32xf32>
    %26 = vector.extract_strided_slice %6 {offsets = [0, 32], sizes = [16, 32], strides = [1, 1]} : vector<16x128xf32> to vector<16x32xf32>
    %27 = tpu.transpose %25, [1, 0] : vector<16x32xf32> -> vector<32x16xf32>
    %cst_14 = arith.constant dense<0.000000e+00> : vector<16x16xf32>
    %28 = tpu.matmul %24, %27, %cst_14 {dimension_numbers = #tpu.dot_dimension_numbers<[1], [0], [0], [1], [0, 0, 1, 1], [], []>} : vector<16x32xf32>, vector<32x16xf32>, vector<16x16xf32> -> vector<16x16xf32>
    %cst_15 = arith.constant 0.176776692 : f32
    %29 = vector.broadcast %cst_15 : f32 to vector<16x16xf32>
    %30 = arith.mulf %28, %29 : vector<16x16xf32>
    %cst_16 = arith.constant dense<0xFF800000> : vector<16xf32>
    %31 = vector.multi_reduction <maximumf>, %30, %cst_16 [1] : vector<16x16xf32> to vector<16xf32>
    %32 = vector.shape_cast %31 : vector<16xf32> to vector<16x1xf32>
    %33 = vector.broadcast %32 : vector<16x1xf32> to vector<16x16xf32>
    %34 = arith.subf %30, %33 : vector<16x16xf32>
    %35 = math.exp %34 : vector<16x16xf32>
    %cst_17 = arith.constant dense<0.000000e+00> : vector<16xf32>
    %36 = vector.multi_reduction <add>, %35, %cst_17 [1] : vector<16x16xf32> to vector<16xf32>
    %37 = vector.shape_cast %36 : vector<16xf32> to vector<16x1xf32>
    %38 = vector.broadcast %37 : vector<16x1xf32> to vector<16x16xf32>
    %39 = arith.divf %35, %38 : vector<16x16xf32>
    %cst_18 = arith.constant dense<0.000000e+00> : vector<16x32xf32>
    %40 = tpu.matmul %39, %26, %cst_18 {dimension_numbers = #tpu.dot_dimension_numbers<[1], [0], [0], [1], [0, 0, 1, 1], [], []>} : vector<16x16xf32>, vector<16x32xf32>, vector<16x32xf32> -> vector<16x32xf32>
    %41 = vector.extract_strided_slice %2 {offsets = [0, 64], sizes = [16, 32], strides = [1, 1]} : vector<16x128xf32> to vector<16x32xf32>
    %42 = vector.extract_strided_slice %4 {offsets = [0, 64], sizes = [16, 32], strides = [1, 1]} : vector<16x128xf32> to vector<16x32xf32>
    %43 = vector.extract_strided_slice %6 {offsets = [0, 64], sizes = [16, 32], strides = [1, 1]} : vector<16x128xf32> to vector<16x32xf32>
    %44 = tpu.transpose %42, [1, 0] : vector<16x32xf32> -> vector<32x16xf32>
    %cst_19 = arith.constant dense<0.000000e+00> : vector<16x16xf32>
    %45 = tpu.matmul %41, %44, %cst_19 {dimension_numbers = #tpu.dot_dimension_numbers<[1], [0], [0], [1], [0, 0, 1, 1], [], []>} : vector<16x32xf32>, vector<32x16xf32>, vector<16x16xf32> -> vector<16x16xf32>
    %cst_20 = arith.constant 0.176776692 : f32
    %46 = vector.broadcast %cst_20 : f32 to vector<16x16xf32>
    %47 = arith.mulf %45, %46 : vector<16x16xf32>
    %cst_21 = arith.constant dense<0xFF800000> : vector<16xf32>
    %48 = vector.multi_reduction <maximumf>, %47, %cst_21 [1] : vector<16x16xf32> to vector<16xf32>
    %49 = vector.shape_cast %48 : vector<16xf32> to vector<16x1xf32>
    %50 = vector.broadcast %49 : vector<16x1xf32> to vector<16x16xf32>
    %51 = arith.subf %47, %50 : vector<16x16xf32>
    %52 = math.exp %51 : vector<16x16xf32>
    %cst_22 = arith.constant dense<0.000000e+00> : vector<16xf32>
    %53 = vector.multi_reduction <add>, %52, %cst_22 [1] : vector<16x16xf32> to vector<16xf32>
    %54 = vector.shape_cast %53 : vector<16xf32> to vector<16x1xf32>
    %55 = vector.broadcast %54 : vector<16x1xf32> to vector<16x16xf32>
    %56 = arith.divf %52, %55 : vector<16x16xf32>
    %cst_23 = arith.constant dense<0.000000e+00> : vector<16x32xf32>
    %57 = tpu.matmul %56, %43, %cst_23 {dimension_numbers = #tpu.dot_dimension_numbers<[1], [0], [0], [1], [0, 0, 1, 1], [], []>} : vector<16x16xf32>, vector<16x32xf32>, vector<16x32xf32> -> vector<16x32xf32>
    %58 = vector.extract_strided_slice %2 {offsets = [0, 96], sizes = [16, 32], strides = [1, 1]} : vector<16x128xf32> to vector<16x32xf32>
    %59 = vector.extract_strided_slice %4 {offsets = [0, 96], sizes = [16, 32], strides = [1, 1]} : vector<16x128xf32> to vector<16x32xf32>
    %60 = vector.extract_strided_slice %6 {offsets = [0, 96], sizes = [16, 32], strides = [1, 1]} : vector<16x128xf32> to vector<16x32xf32>
    %61 = tpu.transpose %59, [1, 0] : vector<16x32xf32> -> vector<32x16xf32>
    %cst_24 = arith.constant dense<0.000000e+00> : vector<16x16xf32>
    %62 = tpu.matmul %58, %61, %cst_24 {dimension_numbers = #tpu.dot_dimension_numbers<[1], [0], [0], [1], [0, 0, 1, 1], [], []>} : vector<16x32xf32>, vector<32x16xf32>, vector<16x16xf32> -> vector<16x16xf32>
    %cst_25 = arith.constant 0.176776692 : f32
    %63 = vector.broadcast %cst_25 : f32 to vector<16x16xf32>
    %64 = arith.mulf %62, %63 : vector<16x16xf32>
    %cst_26 = arith.constant dense<0xFF800000> : vector<16xf32>
    %65 = vector.multi_reduction <maximumf>, %64, %cst_26 [1] : vector<16x16xf32> to vector<16xf32>
    %66 = vector.shape_cast %65 : vector<16xf32> to vector<16x1xf32>
    %67 = vector.broadcast %66 : vector<16x1xf32> to vector<16x16xf32>
    %68 = arith.subf %64, %67 : vector<16x16xf32>
    %69 = math.exp %68 : vector<16x16xf32>
    %cst_27 = arith.constant dense<0.000000e+00> : vector<16xf32>
    %70 = vector.multi_reduction <add>, %69, %cst_27 [1] : vector<16x16xf32> to vector<16xf32>
    %71 = vector.shape_cast %70 : vector<16xf32> to vector<16x1xf32>
    %72 = vector.broadcast %71 : vector<16x1xf32> to vector<16x16xf32>
    %73 = arith.divf %69, %72 : vector<16x16xf32>
    %cst_28 = arith.constant dense<0.000000e+00> : vector<16x32xf32>
    %74 = tpu.matmul %73, %60, %cst_28 {dimension_numbers = #tpu.dot_dimension_numbers<[1], [0], [0], [1], [0, 0, 1, 1], [], []>} : vector<16x16xf32>, vector<16x32xf32>, vector<16x32xf32> -> vector<16x32xf32>
    %75 = tpu.concatenate %23, %40, %57, %74 in 1 : vector<16x32xf32>, vector<16x32xf32>, vector<16x32xf32>, vector<16x32xf32> -> vector<16x128xf32>
    %c0_29 = arith.constant 0 : index
    %c0_30 = arith.constant 0 : index
    %76 = vector.load %arg5[%c0_29, %c0_30] : memref<16x128xf32, #tpu.memory_space<vmem>>, vector<16x128xf32>
    tpu.vector_store %arg5[%c0_29, %c0_30], %75 {strides = array<i32>} : memref<16x128xf32, #tpu.memory_space<vmem>>, vector<16x128xf32>,
    return
  }
  func.func @transform_0(%arg0: i32) -> (i32, i32) {
    %c0_i32 = arith.constant 0 : i32
    %c0_i32_0 = arith.constant 0 : i32
    %c0_i32_1 = arith.constant 0 : i32
    return %c0_i32, %c0_i32_0 : i32, i32
  }
  func.func @transform_1(%arg0: i32) -> (i32, i32) {
    %c0_i32 = arith.constant 0 : i32
    %c0_i32_0 = arith.constant 0 : i32
    %c0_i32_1 = arith.constant 0 : i32
    return %c0_i32, %c0_i32_0 : i32, i32
  }
  func.func @transform_2(%arg0: i32) -> (i32, i32) {
    %c0_i32 = arith.constant 0 : i32
    %c0_i32_0 = arith.constant 0 : i32
    %c0_i32_1 = arith.constant 0 : i32
    return %c0_i32, %c0_i32_0 : i32, i32
  }
  func.func @transform_3(%arg0: i32) -> (i32, i32) {
    %c0_i32 = arith.constant 0 : i32
    %c0_i32_0 = arith.constant 0 : i32
    %c0_i32_1 = arith.constant 0 : i32
    return %c0_i32, %c0_i32_0 : i32, i32
  }
  func.func @transform_4(%arg0: i32) -> (i32, i32) {
    %c0_i32 = arith.constant 0 : i32
    %c0_i32_0 = arith.constant 0 : i32
    %c0_i32_1 = arith.constant 0 : i32
    return %c0_i32, %c0_i32_0 : i32, i32
  }
}

module attributes {stable_mosaic.version = 11 : i64} {
  func.func @_head_kernel(%arg0: i32, %arg1: memref<16x128xf32, #tpu.memory_space<vmem>>, %arg2: memref<1x128xf32, #tpu.memory_space<vmem>>, %arg3: memref<1x128xf32, #tpu.memory_space<vmem>>, %arg4: memref<128x64xf32, #tpu.memory_space<vmem>>, %arg5: memref<1x64xf32, #tpu.memory_space<vmem>>, %arg6: memref<1x64xf32, #tpu.memory_space<vmem>>, %arg7: memref<1x64xf32, #tpu.memory_space<vmem>>, %arg8: memref<64x32xf32, #tpu.memory_space<vmem>>, %arg9: memref<1x32xf32, #tpu.memory_space<vmem>>, %arg10: memref<32x64xf32, #tpu.memory_space<vmem>>, %arg11: memref<1x64xf32, #tpu.memory_space<vmem>>, %arg12: memref<1x64xf32, #tpu.memory_space<vmem>>, %arg13: memref<1x64xf32, #tpu.memory_space<vmem>>, %arg14: memref<64x128xf32, #tpu.memory_space<vmem>>, %arg15: memref<1x128xf32, #tpu.memory_space<vmem>>, %arg16: memref<16x128xf32, #tpu.memory_space<vmem>>, %arg17: memref<16x64xf32, #tpu.memory_space<vmem>>, %arg18: memref<16x32xf32, #tpu.memory_space<vmem>>, %arg19: memref<16x128xf32, #tpu.memory_space<vmem>>) attributes {dimension_semantics = [#tpu.dimension_semantics<arbitrary>], iteration_bounds = array<i64: 1>, scalar_prefetch = 0 : i64, scratch_operands = 0 : i64, tpu.core_type = #tpu.core_type<tc>, window_params = [{pipeline_mode = #tpu.pipeline_mode<synchronous>, transform_indices = @transform_0, window_bounds = array<i64: 16, 128>}, {pipeline_mode = #tpu.pipeline_mode<synchronous>, transform_indices = @transform_1, window_bounds = array<i64: 1, 128>}, {pipeline_mode = #tpu.pipeline_mode<synchronous>, transform_indices = @transform_2, window_bounds = array<i64: 1, 128>}, {pipeline_mode = #tpu.pipeline_mode<synchronous>, transform_indices = @transform_3, window_bounds = array<i64: 128, 64>}, {pipeline_mode = #tpu.pipeline_mode<synchronous>, transform_indices = @transform_4, window_bounds = array<i64: 1, 64>}, {pipeline_mode = #tpu.pipeline_mode<synchronous>, transform_indices = @transform_5, window_bounds = array<i64: 1, 64>}, {pipeline_mode = #tpu.pipeline_mode<synchronous>, transform_indices = @transform_6, window_bounds = array<i64: 1, 64>}, {pipeline_mode = #tpu.pipeline_mode<synchronous>, transform_indices = @transform_7, window_bounds = array<i64: 64, 32>}, {pipeline_mode = #tpu.pipeline_mode<synchronous>, transform_indices = @transform_8, window_bounds = array<i64: 1, 32>}, {pipeline_mode = #tpu.pipeline_mode<synchronous>, transform_indices = @transform_9, window_bounds = array<i64: 32, 64>}, {pipeline_mode = #tpu.pipeline_mode<synchronous>, transform_indices = @transform_10, window_bounds = array<i64: 1, 64>}, {pipeline_mode = #tpu.pipeline_mode<synchronous>, transform_indices = @transform_11, window_bounds = array<i64: 1, 64>}, {pipeline_mode = #tpu.pipeline_mode<synchronous>, transform_indices = @transform_12, window_bounds = array<i64: 1, 64>}, {pipeline_mode = #tpu.pipeline_mode<synchronous>, transform_indices = @transform_13, window_bounds = array<i64: 64, 128>}, {pipeline_mode = #tpu.pipeline_mode<synchronous>, transform_indices = @transform_14, window_bounds = array<i64: 1, 128>}, {pipeline_mode = #tpu.pipeline_mode<synchronous>, transform_indices = @transform_15, window_bounds = array<i64: 16, 128>}, {pipeline_mode = #tpu.pipeline_mode<synchronous>, transform_indices = @transform_16, window_bounds = array<i64: 16, 64>}, {pipeline_mode = #tpu.pipeline_mode<synchronous>, transform_indices = @transform_17, window_bounds = array<i64: 16, 32>}, {pipeline_mode = #tpu.pipeline_mode<synchronous>, transform_indices = @transform_18, window_bounds = array<i64: 16, 128>}]} {
    %c0 = arith.constant 0 : index
    %c0_0 = arith.constant 0 : index
    %0 = vector.load %arg1[%c0, %c0_0] : memref<16x128xf32, #tpu.memory_space<vmem>>, vector<16x128xf32>
    %c0_1 = arith.constant 0 : index
    %c0_2 = arith.constant 0 : index
    %1 = vector.load %arg2[%c0_1, %c0_2] : memref<1x128xf32, #tpu.memory_space<vmem>>, vector<1x128xf32>
    %c0_3 = arith.constant 0 : index
    %c0_4 = arith.constant 0 : index
    %2 = vector.load %arg3[%c0_3, %c0_4] : memref<1x128xf32, #tpu.memory_space<vmem>>, vector<1x128xf32>
    %cst = arith.constant dense<0.000000e+00> : vector<16xf32>
    %3 = vector.multi_reduction <add>, %0, %cst [1] : vector<16x128xf32> to vector<16xf32>
    %4 = vector.shape_cast %3 : vector<16xf32> to vector<16x1xf32>
    %cst_5 = arith.constant 1.280000e+02 : f32
    %5 = vector.broadcast %cst_5 : f32 to vector<16x1xf32>
    %6 = arith.divf %4, %5 : vector<16x1xf32>
    %7 = vector.broadcast %6 : vector<16x1xf32> to vector<16x128xf32>
    %8 = arith.subf %0, %7 : vector<16x128xf32>
    %9 = arith.mulf %8, %8 : vector<16x128xf32>
    %cst_6 = arith.constant dense<0.000000e+00> : vector<16xf32>
    %10 = vector.multi_reduction <add>, %9, %cst_6 [1] : vector<16x128xf32> to vector<16xf32>
    %11 = vector.shape_cast %10 : vector<16xf32> to vector<16x1xf32>
    %cst_7 = arith.constant 1.280000e+02 : f32
    %12 = vector.broadcast %cst_7 : f32 to vector<16x1xf32>
    %13 = arith.divf %11, %12 : vector<16x1xf32>
    %cst_8 = arith.constant 9.99999974E-6 : f32
    %14 = vector.broadcast %cst_8 : f32 to vector<16x1xf32>
    %15 = arith.addf %13, %14 : vector<16x1xf32>
    %16 = math.rsqrt %15 : vector<16x1xf32>
    %17 = vector.broadcast %16 : vector<16x1xf32> to vector<16x128xf32>
    %18 = arith.mulf %8, %17 : vector<16x128xf32>
    %19 = vector.broadcast %1 : vector<1x128xf32> to vector<16x128xf32>
    %20 = arith.mulf %18, %19 : vector<16x128xf32>
    %21 = vector.broadcast %2 : vector<1x128xf32> to vector<16x128xf32>
    %22 = arith.addf %20, %21 : vector<16x128xf32>
    %c0_9 = arith.constant 0 : index
    %c0_10 = arith.constant 0 : index
    %23 = vector.load %arg16[%c0_9, %c0_10] : memref<16x128xf32, #tpu.memory_space<vmem>>, vector<16x128xf32>
    tpu.vector_store %arg16[%c0_9, %c0_10], %22 {strides = array<i32>} : memref<16x128xf32, #tpu.memory_space<vmem>>, vector<16x128xf32>,
    %c0_11 = arith.constant 0 : index
    %c0_12 = arith.constant 0 : index
    %24 = vector.load %arg4[%c0_11, %c0_12] : memref<128x64xf32, #tpu.memory_space<vmem>>, vector<128x64xf32>
    %cst_13 = arith.constant dense<0.000000e+00> : vector<16x64xf32>
    %25 = tpu.matmul %22, %24, %cst_13 {dimension_numbers = #tpu.dot_dimension_numbers<[1], [0], [0], [1], [0, 0, 1, 1], [], []>} : vector<16x128xf32>, vector<128x64xf32>, vector<16x64xf32> -> vector<16x64xf32>
    %c0_14 = arith.constant 0 : index
    %c0_15 = arith.constant 0 : index
    %26 = vector.load %arg5[%c0_14, %c0_15] : memref<1x64xf32, #tpu.memory_space<vmem>>, vector<1x64xf32>
    %27 = vector.broadcast %26 : vector<1x64xf32> to vector<16x64xf32>
    %28 = arith.addf %25, %27 : vector<16x64xf32>
    %cst_16 = arith.constant 5.000000e-01 : f32
    %29 = vector.broadcast %cst_16 : f32 to vector<16x64xf32>
    %30 = arith.mulf %28, %29 : vector<16x64xf32>
    %cst_17 = arith.constant 0.707106769 : f32
    %31 = vector.broadcast %cst_17 : f32 to vector<16x64xf32>
    %32 = arith.mulf %28, %31 : vector<16x64xf32>
    %33 = math.absf %32 : vector<16x64xf32>
    %cst_18 = arith.constant 0.327591091 : f32
    %34 = vector.broadcast %cst_18 : f32 to vector<16x64xf32>
    %35 = arith.mulf %34, %33 : vector<16x64xf32>
    %cst_19 = arith.constant 1.000000e+00 : f32
    %36 = vector.broadcast %cst_19 : f32 to vector<16x64xf32>
    %37 = arith.addf %36, %35 : vector<16x64xf32>
    %cst_20 = arith.constant 1.000000e+00 : f32
    %38 = vector.broadcast %cst_20 : f32 to vector<16x64xf32>
    %39 = arith.divf %38, %37 : vector<16x64xf32>
    %cst_21 = arith.constant 1.06140542 : f32
    %40 = vector.broadcast %cst_21 : f32 to vector<16x64xf32>
    %41 = arith.mulf %39, %40 : vector<16x64xf32>
    %cst_22 = arith.constant -1.45315206 : f32
    %42 = vector.broadcast %cst_22 : f32 to vector<16x64xf32>
    %43 = arith.addf %42, %41 : vector<16x64xf32>
    %44 = arith.mulf %39, %43 : vector<16x64xf32>
    %cst_23 = arith.constant 1.42141378 : f32
    %45 = vector.broadcast %cst_23 : f32 to vector<16x64xf32>
    %46 = arith.addf %45, %44 : vector<16x64xf32>
    %47 = arith.mulf %39, %46 : vector<16x64xf32>
    %cst_24 = arith.constant -0.284496725 : f32
    %48 = vector.broadcast %cst_24 : f32 to vector<16x64xf32>
    %49 = arith.addf %48, %47 : vector<16x64xf32>
    %50 = arith.mulf %39, %49 : vector<16x64xf32>
    %cst_25 = arith.constant 0.254829586 : f32
    %51 = vector.broadcast %cst_25 : f32 to vector<16x64xf32>
    %52 = arith.addf %51, %50 : vector<16x64xf32>
    %53 = arith.mulf %39, %52 : vector<16x64xf32>
    %cst_26 = arith.constant 0.000000e+00 : f32
    %54 = vector.broadcast %cst_26 : f32 to vector<16x64xf32>
    %55 = arith.subf %54, %33 : vector<16x64xf32>
    %56 = arith.mulf %55, %33 : vector<16x64xf32>
    %57 = math.exp %56 : vector<16x64xf32>
    %58 = arith.mulf %53, %57 : vector<16x64xf32>
    %cst_27 = arith.constant 1.000000e+00 : f32
    %59 = vector.broadcast %cst_27 : f32 to vector<16x64xf32>
    %60 = arith.subf %59, %58 : vector<16x64xf32>
    %cst_28 = arith.constant 0.000000e+00 : f32
    %61 = vector.broadcast %cst_28 : f32 to vector<16x64xf32>
    %62 = arith.cmpf olt, %32, %61 : vector<16x64xf32>
    %cst_29 = arith.constant 0.000000e+00 : f32
    %63 = vector.broadcast %cst_29 : f32 to vector<16x64xf32>
    %64 = arith.subf %63, %60 : vector<16x64xf32>
    %65 = arith.select %62, %64, %60 : vector<16x64xi1>, vector<16x64xf32>
    %cst_30 = arith.constant 1.000000e+00 : f32
    %66 = vector.broadcast %cst_30 : f32 to vector<16x64xf32>
    %67 = arith.addf %66, %65 : vector<16x64xf32>
    %68 = arith.mulf %30, %67 : vector<16x64xf32>
    %c0_31 = arith.constant 0 : index
    %c0_32 = arith.constant 0 : index
    %69 = vector.load %arg6[%c0_31, %c0_32] : memref<1x64xf32, #tpu.memory_space<vmem>>, vector<1x64xf32>
    %c0_33 = arith.constant 0 : index
    %c0_34 = arith.constant 0 : index
    %70 = vector.load %arg7[%c0_33, %c0_34] : memref<1x64xf32, #tpu.memory_space<vmem>>, vector<1x64xf32>
    %cst_35 = arith.constant dense<0.000000e+00> : vector<64xf32>
    %71 = vector.multi_reduction <add>, %68, %cst_35 [0] : vector<16x64xf32> to vector<64xf32>
    %72 = vector.shape_cast %71 : vector<64xf32> to vector<1x64xf32>
    %cst_36 = arith.constant 1.600000e+01 : f32
    %73 = vector.broadcast %cst_36 : f32 to vector<1x64xf32>
    %74 = arith.divf %72, %73 : vector<1x64xf32>
    %75 = vector.broadcast %74 : vector<1x64xf32> to vector<16x64xf32>
    %76 = arith.subf %68, %75 : vector<16x64xf32>
    %77 = arith.mulf %76, %76 : vector<16x64xf32>
    %cst_37 = arith.constant dense<0.000000e+00> : vector<64xf32>
    %78 = vector.multi_reduction <add>, %77, %cst_37 [0] : vector<16x64xf32> to vector<64xf32>
    %79 = vector.shape_cast %78 : vector<64xf32> to vector<1x64xf32>
    %cst_38 = arith.constant 1.600000e+01 : f32
    %80 = vector.broadcast %cst_38 : f32 to vector<1x64xf32>
    %81 = arith.divf %79, %80 : vector<1x64xf32>
    %cst_39 = arith.constant 9.99999974E-6 : f32
    %82 = vector.broadcast %cst_39 : f32 to vector<1x64xf32>
    %83 = arith.addf %81, %82 : vector<1x64xf32>
    %84 = math.rsqrt %83 : vector<1x64xf32>
    %85 = vector.broadcast %84 : vector<1x64xf32> to vector<16x64xf32>
    %86 = arith.mulf %76, %85 : vector<16x64xf32>
    %87 = vector.broadcast %69 : vector<1x64xf32> to vector<16x64xf32>
    %88 = arith.mulf %86, %87 : vector<16x64xf32>
    %89 = vector.broadcast %70 : vector<1x64xf32> to vector<16x64xf32>
    %90 = arith.addf %88, %89 : vector<16x64xf32>
    %c0_40 = arith.constant 0 : index
    %c0_41 = arith.constant 0 : index
    %91 = vector.load %arg17[%c0_40, %c0_41] : memref<16x64xf32, #tpu.memory_space<vmem>>, vector<16x64xf32>
    tpu.vector_store %arg17[%c0_40, %c0_41], %90 {strides = array<i32>} : memref<16x64xf32, #tpu.memory_space<vmem>>, vector<16x64xf32>,
    %c0_42 = arith.constant 0 : index
    %c0_43 = arith.constant 0 : index
    %92 = vector.load %arg8[%c0_42, %c0_43] : memref<64x32xf32, #tpu.memory_space<vmem>>, vector<64x32xf32>
    %cst_44 = arith.constant dense<0.000000e+00> : vector<16x32xf32>
    %93 = tpu.matmul %90, %92, %cst_44 {dimension_numbers = #tpu.dot_dimension_numbers<[1], [0], [0], [1], [0, 0, 1, 1], [], []>} : vector<16x64xf32>, vector<64x32xf32>, vector<16x32xf32> -> vector<16x32xf32>
    %c0_45 = arith.constant 0 : index
    %c0_46 = arith.constant 0 : index
    %94 = vector.load %arg9[%c0_45, %c0_46] : memref<1x32xf32, #tpu.memory_space<vmem>>, vector<1x32xf32>
    %95 = vector.broadcast %94 : vector<1x32xf32> to vector<16x32xf32>
    %96 = arith.addf %93, %95 : vector<16x32xf32>
    %c0_47 = arith.constant 0 : index
    %c0_48 = arith.constant 0 : index
    %97 = vector.load %arg18[%c0_47, %c0_48] : memref<16x32xf32, #tpu.memory_space<vmem>>, vector<16x32xf32>
    tpu.vector_store %arg18[%c0_47, %c0_48], %96 {strides = array<i32>} : memref<16x32xf32, #tpu.memory_space<vmem>>, vector<16x32xf32>,
    %cst_49 = arith.constant 5.000000e-01 : f32
    %98 = vector.broadcast %cst_49 : f32 to vector<16x32xf32>
    %99 = arith.mulf %96, %98 : vector<16x32xf32>
    %cst_50 = arith.constant 0.707106769 : f32
    %100 = vector.broadcast %cst_50 : f32 to vector<16x32xf32>
    %101 = arith.mulf %96, %100 : vector<16x32xf32>
    %102 = math.absf %101 : vector<16x32xf32>
    %cst_51 = arith.constant 0.327591091 : f32
    %103 = vector.broadcast %cst_51 : f32 to vector<16x32xf32>
    %104 = arith.mulf %103, %102 : vector<16x32xf32>
    %cst_52 = arith.constant 1.000000e+00 : f32
    %105 = vector.broadcast %cst_52 : f32 to vector<16x32xf32>
    %106 = arith.addf %105, %104 : vector<16x32xf32>
    %cst_53 = arith.constant 1.000000e+00 : f32
    %107 = vector.broadcast %cst_53 : f32 to vector<16x32xf32>
    %108 = arith.divf %107, %106 : vector<16x32xf32>
    %cst_54 = arith.constant 1.06140542 : f32
    %109 = vector.broadcast %cst_54 : f32 to vector<16x32xf32>
    %110 = arith.mulf %108, %109 : vector<16x32xf32>
    %cst_55 = arith.constant -1.45315206 : f32
    %111 = vector.broadcast %cst_55 : f32 to vector<16x32xf32>
    %112 = arith.addf %111, %110 : vector<16x32xf32>
    %113 = arith.mulf %108, %112 : vector<16x32xf32>
    %cst_56 = arith.constant 1.42141378 : f32
    %114 = vector.broadcast %cst_56 : f32 to vector<16x32xf32>
    %115 = arith.addf %114, %113 : vector<16x32xf32>
    %116 = arith.mulf %108, %115 : vector<16x32xf32>
    %cst_57 = arith.constant -0.284496725 : f32
    %117 = vector.broadcast %cst_57 : f32 to vector<16x32xf32>
    %118 = arith.addf %117, %116 : vector<16x32xf32>
    %119 = arith.mulf %108, %118 : vector<16x32xf32>
    %cst_58 = arith.constant 0.254829586 : f32
    %120 = vector.broadcast %cst_58 : f32 to vector<16x32xf32>
    %121 = arith.addf %120, %119 : vector<16x32xf32>
    %122 = arith.mulf %108, %121 : vector<16x32xf32>
    %cst_59 = arith.constant 0.000000e+00 : f32
    %123 = vector.broadcast %cst_59 : f32 to vector<16x32xf32>
    %124 = arith.subf %123, %102 : vector<16x32xf32>
    %125 = arith.mulf %124, %102 : vector<16x32xf32>
    %126 = math.exp %125 : vector<16x32xf32>
    %127 = arith.mulf %122, %126 : vector<16x32xf32>
    %cst_60 = arith.constant 1.000000e+00 : f32
    %128 = vector.broadcast %cst_60 : f32 to vector<16x32xf32>
    %129 = arith.subf %128, %127 : vector<16x32xf32>
    %cst_61 = arith.constant 0.000000e+00 : f32
    %130 = vector.broadcast %cst_61 : f32 to vector<16x32xf32>
    %131 = arith.cmpf olt, %101, %130 : vector<16x32xf32>
    %cst_62 = arith.constant 0.000000e+00 : f32
    %132 = vector.broadcast %cst_62 : f32 to vector<16x32xf32>
    %133 = arith.subf %132, %129 : vector<16x32xf32>
    %134 = arith.select %131, %133, %129 : vector<16x32xi1>, vector<16x32xf32>
    %cst_63 = arith.constant 1.000000e+00 : f32
    %135 = vector.broadcast %cst_63 : f32 to vector<16x32xf32>
    %136 = arith.addf %135, %134 : vector<16x32xf32>
    %137 = arith.mulf %99, %136 : vector<16x32xf32>
    %c0_64 = arith.constant 0 : index
    %c0_65 = arith.constant 0 : index
    %138 = vector.load %arg10[%c0_64, %c0_65] : memref<32x64xf32, #tpu.memory_space<vmem>>, vector<32x64xf32>
    %cst_66 = arith.constant dense<0.000000e+00> : vector<16x64xf32>
    %139 = tpu.matmul %137, %138, %cst_66 {dimension_numbers = #tpu.dot_dimension_numbers<[1], [0], [0], [1], [0, 0, 1, 1], [], []>} : vector<16x32xf32>, vector<32x64xf32>, vector<16x64xf32> -> vector<16x64xf32>
    %c0_67 = arith.constant 0 : index
    %c0_68 = arith.constant 0 : index
    %140 = vector.load %arg11[%c0_67, %c0_68] : memref<1x64xf32, #tpu.memory_space<vmem>>, vector<1x64xf32>
    %141 = vector.broadcast %140 : vector<1x64xf32> to vector<16x64xf32>
    %142 = arith.addf %139, %141 : vector<16x64xf32>
    %cst_69 = arith.constant 5.000000e-01 : f32
    %143 = vector.broadcast %cst_69 : f32 to vector<16x64xf32>
    %144 = arith.mulf %142, %143 : vector<16x64xf32>
    %cst_70 = arith.constant 0.707106769 : f32
    %145 = vector.broadcast %cst_70 : f32 to vector<16x64xf32>
    %146 = arith.mulf %142, %145 : vector<16x64xf32>
    %147 = math.absf %146 : vector<16x64xf32>
    %cst_71 = arith.constant 0.327591091 : f32
    %148 = vector.broadcast %cst_71 : f32 to vector<16x64xf32>
    %149 = arith.mulf %148, %147 : vector<16x64xf32>
    %cst_72 = arith.constant 1.000000e+00 : f32
    %150 = vector.broadcast %cst_72 : f32 to vector<16x64xf32>
    %151 = arith.addf %150, %149 : vector<16x64xf32>
    %cst_73 = arith.constant 1.000000e+00 : f32
    %152 = vector.broadcast %cst_73 : f32 to vector<16x64xf32>
    %153 = arith.divf %152, %151 : vector<16x64xf32>
    %cst_74 = arith.constant 1.06140542 : f32
    %154 = vector.broadcast %cst_74 : f32 to vector<16x64xf32>
    %155 = arith.mulf %153, %154 : vector<16x64xf32>
    %cst_75 = arith.constant -1.45315206 : f32
    %156 = vector.broadcast %cst_75 : f32 to vector<16x64xf32>
    %157 = arith.addf %156, %155 : vector<16x64xf32>
    %158 = arith.mulf %153, %157 : vector<16x64xf32>
    %cst_76 = arith.constant 1.42141378 : f32
    %159 = vector.broadcast %cst_76 : f32 to vector<16x64xf32>
    %160 = arith.addf %159, %158 : vector<16x64xf32>
    %161 = arith.mulf %153, %160 : vector<16x64xf32>
    %cst_77 = arith.constant -0.284496725 : f32
    %162 = vector.broadcast %cst_77 : f32 to vector<16x64xf32>
    %163 = arith.addf %162, %161 : vector<16x64xf32>
    %164 = arith.mulf %153, %163 : vector<16x64xf32>
    %cst_78 = arith.constant 0.254829586 : f32
    %165 = vector.broadcast %cst_78 : f32 to vector<16x64xf32>
    %166 = arith.addf %165, %164 : vector<16x64xf32>
    %167 = arith.mulf %153, %166 : vector<16x64xf32>
    %cst_79 = arith.constant 0.000000e+00 : f32
    %168 = vector.broadcast %cst_79 : f32 to vector<16x64xf32>
    %169 = arith.subf %168, %147 : vector<16x64xf32>
    %170 = arith.mulf %169, %147 : vector<16x64xf32>
    %171 = math.exp %170 : vector<16x64xf32>
    %172 = arith.mulf %167, %171 : vector<16x64xf32>
    %cst_80 = arith.constant 1.000000e+00 : f32
    %173 = vector.broadcast %cst_80 : f32 to vector<16x64xf32>
    %174 = arith.subf %173, %172 : vector<16x64xf32>
    %cst_81 = arith.constant 0.000000e+00 : f32
    %175 = vector.broadcast %cst_81 : f32 to vector<16x64xf32>
    %176 = arith.cmpf olt, %146, %175 : vector<16x64xf32>
    %cst_82 = arith.constant 0.000000e+00 : f32
    %177 = vector.broadcast %cst_82 : f32 to vector<16x64xf32>
    %178 = arith.subf %177, %174 : vector<16x64xf32>
    %179 = arith.select %176, %178, %174 : vector<16x64xi1>, vector<16x64xf32>
    %cst_83 = arith.constant 1.000000e+00 : f32
    %180 = vector.broadcast %cst_83 : f32 to vector<16x64xf32>
    %181 = arith.addf %180, %179 : vector<16x64xf32>
    %182 = arith.mulf %144, %181 : vector<16x64xf32>
    %c0_84 = arith.constant 0 : index
    %c0_85 = arith.constant 0 : index
    %183 = vector.load %arg12[%c0_84, %c0_85] : memref<1x64xf32, #tpu.memory_space<vmem>>, vector<1x64xf32>
    %c0_86 = arith.constant 0 : index
    %c0_87 = arith.constant 0 : index
    %184 = vector.load %arg13[%c0_86, %c0_87] : memref<1x64xf32, #tpu.memory_space<vmem>>, vector<1x64xf32>
    %cst_88 = arith.constant dense<0.000000e+00> : vector<64xf32>
    %185 = vector.multi_reduction <add>, %182, %cst_88 [0] : vector<16x64xf32> to vector<64xf32>
    %186 = vector.shape_cast %185 : vector<64xf32> to vector<1x64xf32>
    %cst_89 = arith.constant 1.600000e+01 : f32
    %187 = vector.broadcast %cst_89 : f32 to vector<1x64xf32>
    %188 = arith.divf %186, %187 : vector<1x64xf32>
    %189 = vector.broadcast %188 : vector<1x64xf32> to vector<16x64xf32>
    %190 = arith.subf %182, %189 : vector<16x64xf32>
    %191 = arith.mulf %190, %190 : vector<16x64xf32>
    %cst_90 = arith.constant dense<0.000000e+00> : vector<64xf32>
    %192 = vector.multi_reduction <add>, %191, %cst_90 [0] : vector<16x64xf32> to vector<64xf32>
    %193 = vector.shape_cast %192 : vector<64xf32> to vector<1x64xf32>
    %cst_91 = arith.constant 1.600000e+01 : f32
    %194 = vector.broadcast %cst_91 : f32 to vector<1x64xf32>
    %195 = arith.divf %193, %194 : vector<1x64xf32>
    %cst_92 = arith.constant 9.99999974E-6 : f32
    %196 = vector.broadcast %cst_92 : f32 to vector<1x64xf32>
    %197 = arith.addf %195, %196 : vector<1x64xf32>
    %198 = math.rsqrt %197 : vector<1x64xf32>
    %199 = vector.broadcast %198 : vector<1x64xf32> to vector<16x64xf32>
    %200 = arith.mulf %190, %199 : vector<16x64xf32>
    %201 = vector.broadcast %183 : vector<1x64xf32> to vector<16x64xf32>
    %202 = arith.mulf %200, %201 : vector<16x64xf32>
    %203 = vector.broadcast %184 : vector<1x64xf32> to vector<16x64xf32>
    %204 = arith.addf %202, %203 : vector<16x64xf32>
    %c0_93 = arith.constant 0 : index
    %c0_94 = arith.constant 0 : index
    %205 = vector.load %arg14[%c0_93, %c0_94] : memref<64x128xf32, #tpu.memory_space<vmem>>, vector<64x128xf32>
    %cst_95 = arith.constant dense<0.000000e+00> : vector<16x128xf32>
    %206 = tpu.matmul %204, %205, %cst_95 {dimension_numbers = #tpu.dot_dimension_numbers<[1], [0], [0], [1], [0, 0, 1, 1], [], []>} : vector<16x64xf32>, vector<64x128xf32>, vector<16x128xf32> -> vector<16x128xf32>
    %c0_96 = arith.constant 0 : index
    %c0_97 = arith.constant 0 : index
    %207 = vector.load %arg15[%c0_96, %c0_97] : memref<1x128xf32, #tpu.memory_space<vmem>>, vector<1x128xf32>
    %208 = vector.broadcast %207 : vector<1x128xf32> to vector<16x128xf32>
    %209 = arith.addf %206, %208 : vector<16x128xf32>
    %c0_98 = arith.constant 0 : index
    %c0_99 = arith.constant 0 : index
    %210 = vector.load %arg19[%c0_98, %c0_99] : memref<16x128xf32, #tpu.memory_space<vmem>>, vector<16x128xf32>
    tpu.vector_store %arg19[%c0_98, %c0_99], %209 {strides = array<i32>} : memref<16x128xf32, #tpu.memory_space<vmem>>, vector<16x128xf32>,
    return
  }
  func.func @transform_0(%arg0: i32) -> (i32, i32) {
    %c0_i32 = arith.constant 0 : i32
    %c0_i32_0 = arith.constant 0 : i32
    %c0_i32_1 = arith.constant 0 : i32
    return %c0_i32, %c0_i32_0 : i32, i32
  }
  func.func @transform_1(%arg0: i32) -> (i32, i32) {
    %c0_i32 = arith.constant 0 : i32
    %c0_i32_0 = arith.constant 0 : i32
    %c0_i32_1 = arith.constant 0 : i32
    return %c0_i32, %c0_i32_0 : i32, i32
  }
  func.func @transform_2(%arg0: i32) -> (i32, i32) {
    %c0_i32 = arith.constant 0 : i32
    %c0_i32_0 = arith.constant 0 : i32
    %c0_i32_1 = arith.constant 0 : i32
    return %c0_i32, %c0_i32_0 : i32, i32
  }
  func.func @transform_3(%arg0: i32) -> (i32, i32) {
    %c0_i32 = arith.constant 0 : i32
    %c0_i32_0 = arith.constant 0 : i32
    %c0_i32_1 = arith.constant 0 : i32
    return %c0_i32, %c0_i32_0 : i32, i32
  }
  func.func @transform_4(%arg0: i32) -> (i32, i32) {
    %c0_i32 = arith.constant 0 : i32
    %c0_i32_0 = arith.constant 0 : i32
    %c0_i32_1 = arith.constant 0 : i32
    return %c0_i32, %c0_i32_0 : i32, i32
  }
  func.func @transform_5(%arg0: i32) -> (i32, i32) {
    %c0_i32 = arith.constant 0 : i32
    %c0_i32_0 = arith.constant 0 : i32
    %c0_i32_1 = arith.constant 0 : i32
    return %c0_i32, %c0_i32_0 : i32, i32
  }
  func.func @transform_6(%arg0: i32) -> (i32, i32) {
    %c0_i32 = arith.constant 0 : i32
    %c0_i32_0 = arith.constant 0 : i32
    %c0_i32_1 = arith.constant 0 : i32
    return %c0_i32, %c0_i32_0 : i32, i32
  }
  func.func @transform_7(%arg0: i32) -> (i32, i32) {
    %c0_i32 = arith.constant 0 : i32
    %c0_i32_0 = arith.constant 0 : i32
    %c0_i32_1 = arith.constant 0 : i32
    return %c0_i32, %c0_i32_0 : i32, i32
  }
  func.func @transform_8(%arg0: i32) -> (i32, i32) {
    %c0_i32 = arith.constant 0 : i32
    %c0_i32_0 = arith.constant 0 : i32
    %c0_i32_1 = arith.constant 0 : i32
    return %c0_i32, %c0_i32_0 : i32, i32
  }
  func.func @transform_9(%arg0: i32) -> (i32, i32) {
    %c0_i32 = arith.constant 0 : i32
    %c0_i32_0 = arith.constant 0 : i32
    %c0_i32_1 = arith.constant 0 : i32
    return %c0_i32, %c0_i32_0 : i32, i32
  }
  func.func @transform_10(%arg0: i32) -> (i32, i32) {
    %c0_i32 = arith.constant 0 : i32
    %c0_i32_0 = arith.constant 0 : i32
    %c0_i32_1 = arith.constant 0 : i32
    return %c0_i32, %c0_i32_0 : i32, i32
  }
  func.func @transform_11(%arg0: i32) -> (i32, i32) {
    %c0_i32 = arith.constant 0 : i32
    %c0_i32_0 = arith.constant 0 : i32
    %c0_i32_1 = arith.constant 0 : i32
    return %c0_i32, %c0_i32_0 : i32, i32
  }
  func.func @transform_12(%arg0: i32) -> (i32, i32) {
    %c0_i32 = arith.constant 0 : i32
    %c0_i32_0 = arith.constant 0 : i32
    %c0_i32_1 = arith.constant 0 : i32
    return %c0_i32, %c0_i32_0 : i32, i32
  }
  func.func @transform_13(%arg0: i32) -> (i32, i32) {
    %c0_i32 = arith.constant 0 : i32
    %c0_i32_0 = arith.constant 0 : i32
    %c0_i32_1 = arith.constant 0 : i32
    return %c0_i32, %c0_i32_0 : i32, i32
  }
  func.func @transform_14(%arg0: i32) -> (i32, i32) {
    %c0_i32 = arith.constant 0 : i32
    %c0_i32_0 = arith.constant 0 : i32
    %c0_i32_1 = arith.constant 0 : i32
    return %c0_i32, %c0_i32_0 : i32, i32
  }
  func.func @transform_15(%arg0: i32) -> (i32, i32) {
    %c0_i32 = arith.constant 0 : i32
    %c0_i32_0 = arith.constant 0 : i32
    %c0_i32_1 = arith.constant 0 : i32
    return %c0_i32, %c0_i32_0 : i32, i32
  }
  func.func @transform_16(%arg0: i32) -> (i32, i32) {
    %c0_i32 = arith.constant 0 : i32
    %c0_i32_0 = arith.constant 0 : i32
    %c0_i32_1 = arith.constant 0 : i32
    return %c0_i32, %c0_i32_0 : i32, i32
  }
  func.func @transform_17(%arg0: i32) -> (i32, i32) {
    %c0_i32 = arith.constant 0 : i32
    %c0_i32_0 = arith.constant 0 : i32
    %c0_i32_1 = arith.constant 0 : i32
    return %c0_i32, %c0_i32_0 : i32, i32
  }
  func.func @transform_18(%arg0: i32) -> (i32, i32) {
    %c0_i32 = arith.constant 0 : i32
    %c0_i32_0 = arith.constant 0 : i32
    %c0_i32_1 = arith.constant 0 : i32
    return %c0_i32, %c0_i32_0 : i32, i32
  }
}

</mosaic_0001>

<llo_original>
// kernel: feature_encoder_forward.6
$region0: #{feature_encoder_forward.6}
  #allocation0 [shape = 'u32[]', space=smem, size = 0x4, offset = 0x4, fixed_abs, tag = 'smem constant byte address 0x4 - core index']
  #allocation1 [shape = 'u32[144,128]{1,0:T(1,128)}', space=vmem, size = 0x12000, scoped, tag = 'internal scratch']
  %s0 = inlined_call_operand.vmem [shape: f32[16,128], index: 0, kind: input, shape index: {}]
  %s1 = inlined_call_operand.vmem [shape: f32[16,128], index: 1, kind: input, shape index: {}]
  %s2 = inlined_call_operand.vmem [shape: f32[128,128], index: 2, kind: input, shape index: {}]
  %s3 = inlined_call_operand.vmem [shape: f32[1,128], index: 3, kind: input, shape index: {}]
  %s4 = inlined_call_operand.vmem [shape: f32[1,128], index: 4, kind: input, shape index: {}]
  %s5 = inlined_call_operand.vmem [shape: f32[128,128], index: 5, kind: input, shape index: {}]
  %s6 = inlined_call_operand.vmem [shape: f32[1,128], index: 6, kind: input, shape index: {}]
  %s7 = inlined_call_operand.vmem [shape: f32[1,128], index: 7, kind: input, shape index: {}]
  %s8 = inlined_call_operand.vmem [shape: f32[1,128], index: 8, kind: input, shape index: {}]
  %s9 = inlined_call_operand.vmem [shape: f32[16,128], index: 9, kind: output, shape index: {}]
  %s10 = sld [smem:[#allocation0]]
  $region46: #{feature_encoder_forward.6} parent=0
    _
  %s12 = ssub.s32 1, %s10
  %s13 = scalar_select 0, %s12, %s10
  // Predicated region
  $region2: #{feature_encoder_forward.6} parent=0 // pred_check
    _
  $region3: #{feature_encoder_forward.6} parent=0 // pred_check_branch
    %15 = sbr.rel (0) target = $region5
  $region4: #{feature_encoder_forward.6} parent=0 // pred_region
    _
  $region5: #{feature_encoder_forward.6} parent=0 // pred_fallthru
    _
  // Predicated region
  $region6: #{feature_encoder_forward.6} parent=0 // pred_check
    _
  $region7: #{feature_encoder_forward.6} parent=0 // pred_check_branch
    %17 = sbr.rel (0) target = $region9
  $region8: #{feature_encoder_forward.6} parent=0 // pred_region
    _
  $region9: #{feature_encoder_forward.6} parent=0 // pred_fallthru
    _
  // Predicated region
  $region10: #{feature_encoder_forward.6} parent=0 // pred_check
    _
  $region11: #{feature_encoder_forward.6} parent=0 // pred_check_branch
    %19 = sbr.rel (0) target = $region13
  $region12: #{feature_encoder_forward.6} parent=0 // pred_region
    _
  $region13: #{feature_encoder_forward.6} parent=0 // pred_fallthru
    _
  // Predicated region
  $region14: #{feature_encoder_forward.6} parent=0 // pred_check
    _
  $region15: #{feature_encoder_forward.6} parent=0 // pred_check_branch
    %21 = sbr.rel (0) target = $region17
  $region16: #{feature_encoder_forward.6} parent=0 // pred_region
    _
  $region17: #{feature_encoder_forward.6} parent=0 // pred_fallthru
    _
  // Predicated region
  $region18: #{feature_encoder_forward.6} parent=0 // pred_check
    _
  $region19: #{feature_encoder_forward.6} parent=0 // pred_check_branch
    %23 = sbr.rel (0) target = $region21
  $region20: #{feature_encoder_forward.6} parent=0 // pred_region
    _
  $region21: #{feature_encoder_forward.6} parent=0 // pred_fallthru
    _
  // Predicated region
  $region22: #{feature_encoder_forward.6} parent=0 // pred_check
    _
  $region23: #{feature_encoder_forward.6} parent=0 // pred_check_branch
    %25 = sbr.rel (0) target = $region25
  $region24: #{feature_encoder_forward.6} parent=0 // pred_region
    _
  $region25: #{feature_encoder_forward.6} parent=0 // pred_fallthru
    _
  // Predicated region
  $region26: #{feature_encoder_forward.6} parent=0 // pred_check
    _
  $region27: #{feature_encoder_forward.6} parent=0 // pred_check_branch
    %27 = sbr.rel (0) target = $region29
  $region28: #{feature_encoder_forward.6} parent=0 // pred_region
    _
  $region29: #{feature_encoder_forward.6} parent=0 // pred_fallthru
    _
  // Predicated region
  $region30: #{feature_encoder_forward.6} parent=0 // pred_check
    _
  $region31: #{feature_encoder_forward.6} parent=0 // pred_check_branch
    %29 = sbr.rel (0) target = $region33
  $region32: #{feature_encoder_forward.6} parent=0 // pred_region
    _
  $region33: #{feature_encoder_forward.6} parent=0 // pred_fallthru
    _
  // Predicated region
  $region34: #{feature_encoder_forward.6} parent=0 // pred_check
    _
  $region35: #{feature_encoder_forward.6} parent=0 // pred_check_branch
    %31 = sbr.rel (0) target = $region37
  $region36: #{feature_encoder_forward.6} parent=0 // pred_region
    _
  $region37: #{feature_encoder_forward.6} parent=0 // pred_fallthru
    _
  %v32 = vld [vmem:[%s1] sm:$0xff]
  %v33 = vld [vmem:[%s1 + $0x8] sm:$0xff]
  %v34 = vld [vmem:[%s0] sm:$0xff]
  %v35 = vld [vmem:[%s0 + $0x8] sm:$0xff]
  %v36 = vld [vmem:[%s2] sm:$0xff]
  %v37 = vld [vmem:[%s2 + $0x8] sm:$0xff]
  %v38 = vld [vmem:[%s2 + $0x10] sm:$0xff]
  %v39 = vld [vmem:[%s2 + $0x18] sm:$0xff]
  %v40 = vld [vmem:[%s2 + $0x20] sm:$0xff]
  %v41 = vld [vmem:[%s2 + $0x28] sm:$0xff]
  %v42 = vld [vmem:[%s2 + $0x30] sm:$0xff]
  %v43 = vld [vmem:[%s2 + $0x38] sm:$0xff]
  %v44 = vld [vmem:[%s2 + $0x40] sm:$0xff]
  %v45 = vld [vmem:[%s2 + $0x48] sm:$0xff]
  %v46 = vld [vmem:[%s2 + $0x50] sm:$0xff]
  %v47 = vld [vmem:[%s2 + $0x58] sm:$0xff]
  %v48 = vld [vmem:[%s2 + $0x60] sm:$0xff]
  %v49 = vld [vmem:[%s2 + $0x68] sm:$0xff]
  %v50 = vld [vmem:[%s2 + $0x70] sm:$0xff]
  %v51 = vld [vmem:[%s2 + $0x78] sm:$0xff]
  %52 = vmatprep.subr.mxu0 0.0
  %53 = vmatpush1.msra.mxu0 %v51
  %54 = vmatprep.subr.mxu0 0.0
  %55 = vmatpush1.msra.mxu0 %v50
  %56 = vmatprep.subr.mxu0 0.0
  %57 = vmatpush1.msra.mxu0 %v49
  %58 = vmatprep.subr.mxu0 0.0
  %59 = vmatpush1.msra.mxu0 %v48
  %60 = vmatprep.subr.mxu0 0.0
  %61 = vmatpush1.msra.mxu0 %v47
  %62 = vmatprep.subr.mxu0 0.0
  %63 = vmatpush1.msra.mxu0 %v46
  %64 = vmatprep.subr.mxu0 0.0
  %65 = vmatpush1.msra.mxu0 %v45
  %66 = vmatprep.subr.mxu0 0.0
  %67 = vmatpush1.msra.mxu0 %v44
  %68 = vmatprep.subr.mxu0 0.0
  %69 = vmatpush1.msra.mxu0 %v43
  %70 = vmatprep.subr.mxu0 0.0
  %71 = vmatpush1.msra.mxu0 %v42
  %72 = vmatprep.subr.mxu0 0.0
  %73 = vmatpush1.msra.mxu0 %v41
  %74 = vmatprep.subr.mxu0 0.0
  %75 = vmatpush1.msra.mxu0 %v40
  %76 = vmatprep.subr.mxu0 0.0
  %77 = vmatpush1.msra.mxu0 %v39
  %78 = vmatprep.subr.mxu0 0.0
  %79 = vmatpush1.msra.mxu0 %v38
  %80 = vmatprep.subr.mxu0 0.0
  %81 = vmatpush1.msra.mxu0 %v37
  %82 = vmatprep.subr.mxu0 0.0
  %83 = vmatpush1.msra.mxu0 %v36
  %84 = vmatprep.subr.mxu0 0.0
  %85 = vmatpush2.msra.mxu0 0.0
  %86 = vmatprep.subr.mxu0 0.0
  %87 = vmatpush2.msra.mxu0 0.0
  %88 = vmatprep.subr.mxu0 0.0
  %89 = vmatpush2.msra.mxu0 0.0
  %90 = vmatprep.subr.mxu0 0.0
  %91 = vmatpush2.msra.mxu0 0.0
  %92 = vmatprep.subr.mxu0 0.0
  %93 = vmatpush2.msra.mxu0 0.0
  %94 = vmatprep.subr.mxu0 0.0
  %95 = vmatpush2.msra.mxu0 0.0
  %96 = vmatprep.subr.mxu0 0.0
  %97 = vmatpush2.msra.mxu0 0.0
  %98 = vmatprep.subr.mxu0 0.0
  %99 = vmatpush2.msra.mxu0 0.0
  %100 = vmatprep.subr.mxu0 0.0
  %101 = vmatpush2.msra.mxu0 0.0
  %102 = vmatprep.subr.mxu0 0.0
  %103 = vmatpush2.msra.mxu0 0.0
  %104 = vmatprep.subr.mxu0 0.0
  %105 = vmatpush2.msra.mxu0 0.0
  %106 = vmatprep.subr.mxu0 0.0
  %107 = vmatpush2.msra.mxu0 0.0
  %108 = vmatprep.subr.mxu0 0.0
  %109 = vmatpush2.msra.mxu0 0.0
  %110 = vmatprep.subr.mxu0 0.0
  %111 = vmatpush2.msra.mxu0 0.0
  %112 = vmatprep.subr.mxu0 0.0
  %113 = vmatpush2.msra.mxu0 0.0
  %114 = vmatprep.subr.mxu0 0.0
  %115 = vmatpush2.msra.mxu0 0.0
  %116 = vmatprep.mubr.f32.mxu0 0.0
  %117 = vmatmul.mubr.f32.gmra.mxu0 %v34
  %v118 = vpop.f32.mrf.mxu0
  %v119 = vadd.f32 %v32, %v118
  %v120 = vpop.f32.mrf.mxu0
  %121 = vmatprep.mubr.f32.mxu0 0.0
  %122 = vmatmul.mubr.f32.gmra.mxu0 %v35
  %v123 = vpop.f32.mrf.mxu0
  %v124 = vadd.f32 %v33, %v123
  %v125 = vpop.f32.mrf.mxu0
  %126 = vdwg.mxu0
  %v127 = vld [vmem:[%s3] sm:$0x1]
  %v128 = vld [vmem:[%s4] sm:$0x1]
  %129 = vadd.xlane.f32.xlu0 %v119
  %v130 = vpop.xlane.xlu0 %129
  %131 = vadd.xlane.f32.xlu0 %v124
  %v132 = vpop.xlane.xlu0 %131
  %v133 = vrcp.pop 128.0
  %v134 = vmul.f32 %v130, %v133
  %v135 = vmul.f32 %v132, %v133
  %v136 = vsub.f32 %v119, %v134
  %v137 = vsub.f32 %v124, %v135
  %v138 = vmul.f32 %v136, %v136
  %v139 = vmul.f32 %v137, %v137
  %140 = vadd.xlane.f32.xlu0 %v138
  %v141 = vpop.xlane.xlu0 %140
  %142 = vadd.xlane.f32.xlu0 %v139
  %v143 = vpop.xlane.xlu0 %142
  %v144 = vmul.f32 %v141, %v133
  %v145 = vmul.f32 %v143, %v133
  %v146 = vadd.f32 %v144, 1e-05
  %v147 = vadd.f32 %v145, 1e-05
  %v148 = vrsqrt.pop %v146
  %v149 = vrsqrt.pop %v147
  %v150 = vmul.f32 %v136, %v148
  %v151 = vmul.f32 %v137, %v149
  %v153 = vlaneseq
  %v154 = vshrl.u32 %v153, 7
  %v155 = vsub.s32 0, %v154
  %v156 = vrot.slane %v127, %v155
  %v158 = vmul.f32 %v150, %v156
  %v159 = vmul.f32 %v151, %v156
  %v161 = vlaneseq
  %v162 = vshrl.u32 %v161, 7
  %v163 = vsub.s32 0, %v162
  %v164 = vrot.slane %v128, %v163
  %v166 = vadd.f32 %v158, %v164
  %v167 = vadd.f32 %v159, %v164
  %v168 = vld [vmem:[%s5] sm:$0xff]
  %v169 = vld [vmem:[%s5 + $0x8] sm:$0xff]
  %v170 = vld [vmem:[%s5 + $0x10] sm:$0xff]
  %v171 = vld [vmem:[%s5 + $0x18] sm:$0xff]
  %v172 = vld [vmem:[%s5 + $0x20] sm:$0xff]
  %v173 = vld [vmem:[%s5 + $0x28] sm:$0xff]
  %v174 = vld [vmem:[%s5 + $0x30] sm:$0xff]
  %v175 = vld [vmem:[%s5 + $0x38] sm:$0xff]
  %v176 = vld [vmem:[%s5 + $0x40] sm:$0xff]
  %v177 = vld [vmem:[%s5 + $0x48] sm:$0xff]
  %v178 = vld [vmem:[%s5 + $0x50] sm:$0xff]
  %v179 = vld [vmem:[%s5 + $0x58] sm:$0xff]
  %v180 = vld [vmem:[%s5 + $0x60] sm:$0xff]
  %v181 = vld [vmem:[%s5 + $0x68] sm:$0xff]
  %v182 = vld [vmem:[%s5 + $0x70] sm:$0xff]
  %v183 = vld [vmem:[%s5 + $0x78] sm:$0xff]
  %v184 = vld [vmem:[%s6] sm:$0x1]
  %v186 = vlaneseq
  %v187 = vshrl.u32 %v186, 7
  %v188 = vsub.s32 0, %v187
  %v189 = vrot.slane %v184, %v188
  %191 = vmatprep.subr.mxu0 0.0
  %192 = vmatpush1.msra.mxu0 %v183
  %193 = vmatprep.subr.mxu0 0.0
  %194 = vmatpush1.msra.mxu0 %v182
  %195 = vmatprep.subr.mxu0 0.0
  %196 = vmatpush1.msra.mxu0 %v181
  %197 = vmatprep.subr.mxu0 0.0
  %198 = vmatpush1.msra.mxu0 %v180
  %199 = vmatprep.subr.mxu0 0.0
  %200 = vmatpush1.msra.mxu0 %v179
  %201 = vmatprep.subr.mxu0 0.0
  %202 = vmatpush1.msra.mxu0 %v178
  %203 = vmatprep.subr.mxu0 0.0
  %204 = vmatpush1.msra.mxu0 %v177
  %205 = vmatprep.subr.mxu0 0.0
  %206 = vmatpush1.msra.mxu0 %v176
  %207 = vmatprep.subr.mxu0 0.0
  %208 = vmatpush1.msra.mxu0 %v175
  %209 = vmatprep.subr.mxu0 0.0
  %210 = vmatpush1.msra.mxu0 %v174
  %211 = vmatprep.subr.mxu0 0.0
  %212 = vmatpush1.msra.mxu0 %v173
  %213 = vmatprep.subr.mxu0 0.0
  %214 = vmatpush1.msra.mxu0 %v172
  %215 = vmatprep.subr.mxu0 0.0
  %216 = vmatpush1.msra.mxu0 %v171
  %217 = vmatprep.subr.mxu0 0.0
  %218 = vmatpush1.msra.mxu0 %v170
  %219 = vmatprep.subr.mxu0 0.0
  %220 = vmatpush1.msra.mxu0 %v169
  %221 = vmatprep.subr.mxu0 0.0
  %222 = vmatpush1.msra.mxu0 %v168
  %223 = vmatprep.subr.mxu0 0.0
  %224 = vmatpush2.msra.mxu0 0.0
  %225 = vmatprep.subr.mxu0 0.0
  %226 = vmatpush2.msra.mxu0 0.0
  %227 = vmatprep.subr.mxu0 0.0
  %228 = vmatpush2.msra.mxu0 0.0
  %229 = vmatprep.subr.mxu0 0.0
  %230 = vmatpush2.msra.mxu0 0.0
  %231 = vmatprep.subr.mxu0 0.0
  %232 = vmatpush2.msra.mxu0 0.0
  %233 = vmatprep.subr.mxu0 0.0
  %234 = vmatpush2.msra.mxu0 0.0
  %235 = vmatprep.subr.mxu0 0.0
  %236 = vmatpush2.msra.mxu0 0.0
  %237 = vmatprep.subr.mxu0 0.0
  %238 = vmatpush2.msra.mxu0 0.0
  %239 = vmatprep.subr.mxu0 0.0
  %240 = vmatpush2.msra.mxu0 0.0
  %241 = vmatprep.subr.mxu0 0.0
  %242 = vmatpush2.msra.mxu0 0.0
  %243 = vmatprep.subr.mxu0 0.0
  %244 = vmatpush2.msra.mxu0 0.0
  %245 = vmatprep.subr.mxu0 0.0
  %246 = vmatpush2.msra.mxu0 0.0
  %247 = vmatprep.subr.mxu0 0.0
  %248 = vmatpush2.msra.mxu0 0.0
  %249 = vmatprep.subr.mxu0 0.0
  %250 = vmatpush2.msra.mxu0 0.0
  %251 = vmatprep.subr.mxu0 0.0
  %252 = vmatpush2.msra.mxu0 0.0
  %253 = vmatprep.subr.mxu0 0.0
  %254 = vmatpush2.msra.mxu0 0.0
  %255 = vmatprep.mubr.f32.mxu0 0.0
  %256 = vmatmul.mubr.f32.gmra.mxu0 %v166
  %v257 = vpop.f32.mrf.mxu0
  %v258 = vadd.f32 %v189, %v257
  %v259 = vpop.f32.mrf.mxu0
  %260 = vmatprep.mubr.f32.mxu0 0.0
  %261 = vmatmul.mubr.f32.gmra.mxu0 %v167
  %v262 = vpop.f32.mrf.mxu0
  %v263 = vadd.f32 %v189, %v262
  %v264 = vpop.f32.mrf.mxu0
  %265 = vdwg.mxu0
  %v266 = vadd.f32 %v258, %v166
  %v267 = vadd.f32 %v263, %v167
  %v268 = vld [vmem:[%s7] sm:$0x1]
  %v269 = vld [vmem:[%s8] sm:$0x1]
  %270 = vadd.xlane.f32.xlu0 %v266
  %v271 = vpop.xlane.xlu0 %270
  %272 = vadd.xlane.f32.xlu0 %v267
  %v273 = vpop.xlane.xlu0 %272
  %v274 = vmul.f32 %v271, %v133
  %v275 = vmul.f32 %v273, %v133
  %v276 = vsub.f32 %v266, %v274
  %v277 = vsub.f32 %v267, %v275
  %v278 = vmul.f32 %v276, %v276
  %v279 = vmul.f32 %v277, %v277
  %280 = vadd.xlane.f32.xlu0 %v278
  %v281 = vpop.xlane.xlu0 %280
  %282 = vadd.xlane.f32.xlu0 %v279
  %v283 = vpop.xlane.xlu0 %282
  %v284 = vmul.f32 %v281, %v133
  %v285 = vmul.f32 %v283, %v133
  %v286 = vadd.f32 %v284, 1e-05
  %v287 = vadd.f32 %v285, 1e-05
  %v288 = vrsqrt.pop %v286
  %v289 = vrsqrt.pop %v287
  %v290 = vmul.f32 %v276, %v288
  %v291 = vmul.f32 %v277, %v289
  %v293 = vlaneseq
  %v294 = vshrl.u32 %v293, 7
  %v295 = vsub.s32 0, %v294
  %v296 = vrot.slane %v268, %v295
  %v298 = vmul.f32 %v290, %v296
  %v299 = vmul.f32 %v291, %v296
  %v301 = vlaneseq
  %v302 = vshrl.u32 %v301, 7
  %v303 = vsub.s32 0, %v302
  %v304 = vrot.slane %v269, %v303
  %v306 = vadd.f32 %v298, %v304
  %v307 = vadd.f32 %v299, %v304
  %308 = vst [vmem:[%s9] sm:$0xff] %v306
  %309 = vst [vmem:[%s9 + $0x8] sm:$0xff] %v307
  // Predicated region
  $region38: #{feature_encoder_forward.6} parent=0 // pred_check
    _
  $region39: #{feature_encoder_forward.6} parent=0 // pred_check_branch
    %311 = sbr.rel (0) target = $region41
  $region40: #{feature_encoder_forward.6} parent=0 // pred_region
    _
  $region41: #{feature_encoder_forward.6} parent=0 // pred_fallthru
    _
  // Predicated region
  $region42: #{feature_encoder_forward.6} parent=0 // pred_check
    _
  $region43: #{feature_encoder_forward.6} parent=0 // pred_check_branch
    %313 = sbr.rel (0) target = $region45
  $region44: #{feature_encoder_forward.6} parent=0 // pred_region
    _
  $region45: #{feature_encoder_forward.6} parent=0 // pred_fallthru
    _

// kernel: feature_encoder_forward.5
$region0: #{feature_encoder_forward.5}
  #allocation0 [shape = 'u32[]', space=smem, size = 0x4, offset = 0x4, fixed_abs, tag = 'smem constant byte address 0x4 - core index']
  #allocation1 [shape = 'u32[144,128]{1,0:T(1,128)}', space=vmem, size = 0x12000, scoped, tag = 'internal scratch']
  %s0 = inlined_call_operand.vmem [shape: f32[16,128], index: 0, kind: input, shape index: {}]
  %s1 = inlined_call_operand.hbm [shape: f32[128,128], index: 1, kind: input, shape index: {}]
  %s2 = inlined_call_operand.hbm [shape: f32[128,128], index: 2, kind: input, shape index: {}]
  %s3 = inlined_call_operand.hbm [shape: f32[128,128], index: 3, kind: input, shape index: {}]
  %s4 = inlined_call_operand.vmem [shape: f32[16,128], index: 4, kind: output, shape index: {}]
  %s5 = sld [smem:[#allocation0]]
  $region38: #{feature_encoder_forward.5} parent=0
    _
  %s7 = ssub.s32 1, %s5
  %s8 = scalar_select 0, %s7, %s5
  $region1: #{feature_encoder_forward.5} parent=0
    #allocation2 [shape = 'u8[65536]{0}', space=vmem, size = 0x10000, scoped, tag = 'input window, operand 1, single buffered']
    #allocation3 [shape = 's32[1]{0}', space=sflag, size = 0x4, scoped, tag = 'scoped memory for feature_encoder_forward.5']
    #allocation4 [shape = 'u8[65536]{0}', space=vmem, size = 0x10000, scoped, tag = 'input window, operand 2, single buffered']
    #allocation5 [shape = 's32[1]{0}', space=sflag, size = 0x4, scoped, tag = 'scoped memory for feature_encoder_forward.5']
    #allocation6 [shape = 'u8[65536]{0}', space=vmem, size = 0x10000, scoped, tag = 'input window, operand 3, single buffered']
    %9 = vsyncpa [#allocation3], 0
    %10 = vsyncpa [#allocation5], 0
    // Predicated region
    $region2: #{feature_encoder_forward.5} parent=1 // pred_check
      _
    $region3: #{feature_encoder_forward.5} parent=1 // pred_check_branch
      %12 = sbr.rel (0) target = $region5
    $region4: #{feature_encoder_forward.5} parent=1 // pred_region
      _
    $region5: #{feature_encoder_forward.5} parent=1 // pred_fallthru
      _
    // Predicated region
    $region6: #{feature_encoder_forward.5} parent=1 // pred_check
      _
    $region7: #{feature_encoder_forward.5} parent=1 // pred_check_branch
      %14 = sbr.rel (0) target = $region9
    $region8: #{feature_encoder_forward.5} parent=1 // pred_region
      %s16 = ssub.s32 2048, 2048
      %17 = vsyncadd [#allocation3], %s16
      %s18 = sshll.u32 [#allocation2], 4
      %s19 = int_to_ptr.vmem [resolvable:$true] %s18
      %24 = dma.hbm_to_vmem [thread:$0]  %s1, 2048, %s19, [#allocation3], 128, 128, 8
    $region9: #{feature_encoder_forward.5} parent=1 // pred_fallthru
      _
    // Predicated region
    $region10: #{feature_encoder_forward.5} parent=1 // pred_check
      _
    $region11: #{feature_encoder_forward.5} parent=1 // pred_check_branch
      %26 = sbr.rel (0) target = $region13
    $region12: #{feature_encoder_forward.5} parent=1 // pred_region
      %s28 = ssub.s32 2048, 2048
      %29 = vsyncadd [#allocation5], %s28
      %s30 = sshll.u32 [#allocation4], 4
      %s31 = int_to_ptr.vmem [resolvable:$true] %s30
      %36 = dma.hbm_to_vmem [thread:$0]  %s2, 2048, %s31, [#allocation5], 128, 128, 8
    $region13: #{feature_encoder_forward.5} parent=1 // pred_fallthru
      _
    // Predicated region
    $region14: #{feature_encoder_forward.5} parent=1 // pred_check
      _
    $region15: #{feature_encoder_forward.5} parent=1 // pred_check_branch
      %38 = sbr.rel (0) target = $region17
    $region16: #{feature_encoder_forward.5} parent=1 // pred_region
      %s40 = ssub.s32 2048, 2048
      %41 = vsyncadd [#allocation5], %s40
      %s42 = sshll.u32 [#allocation6], 4
      %s43 = int_to_ptr.vmem [resolvable:$true] %s42
      %48 = dma.hbm_to_vmem [thread:$0]  %s3, 2048, %s43, [#allocation5], 128, 128, 8
    $region17: #{feature_encoder_forward.5} parent=1 // pred_fallthru
      _
    // Predicated region
    $region18: #{feature_encoder_forward.5} parent=1 // pred_check
      _
    $region19: #{feature_encoder_forward.5} parent=1 // pred_check_branch
      %50 = sbr.rel (0) target = $region21
    $region20: #{feature_encoder_forward.5} parent=1 // pred_region
      %51 = dma.done [#allocation3], 2048
    $region21: #{feature_encoder_forward.5} parent=1 // pred_fallthru
      _
    // Predicated region
    $region22: #{feature_encoder_forward.5} parent=1 // pred_check
      _
    $region23: #{feature_encoder_forward.5} parent=1 // pred_check_branch
      %53 = sbr.rel (0) target = $region25
    $region24: #{feature_encoder_forward.5} parent=1 // pred_region
      %54 = dma.done [#allocation5], 2048
    $region25: #{feature_encoder_forward.5} parent=1 // pred_fallthru
      _
    // Predicated region
    $region26: #{feature_encoder_forward.5} parent=1 // pred_check
      _
    $region27: #{feature_encoder_forward.5} parent=1 // pred_check_branch
      %56 = sbr.rel (0) target = $region29
    $region28: #{feature_encoder_forward.5} parent=1 // pred_region
      %57 = dma.done [#allocation5], 2048
    $region29: #{feature_encoder_forward.5} parent=1 // pred_fallthru
      _
    %v58 = vld [vmem:[%s0] sm:$0xff]
    %v59 = vld [vmem:[%s0 + $0x8] sm:$0xff]
    %v60 = vld [vmem:[#allocation2] sm:$0xff]
    %v61 = vld [vmem:[#allocation2 + $0x8] sm:$0xff]
    %v62 = vld [vmem:[#allocation2 + $0x10] sm:$0xff]
    %v63 = vld [vmem:[#allocation2 + $0x18] sm:$0xff]
    %v64 = vld [vmem:[#allocation2 + $0x20] sm:$0xff]
    %v65 = vld [vmem:[#allocation2 + $0x28] sm:$0xff]
    %v66 = vld [vmem:[#allocation2 + $0x30] sm:$0xff]
    %v67 = vld [vmem:[#allocation2 + $0x38] sm:$0xff]
    %v68 = vld [vmem:[#allocation2 + $0x40] sm:$0xff]
    %v69 = vld [vmem:[#allocation2 + $0x48] sm:$0xff]
    %v70 = vld [vmem:[#allocation2 + $0x50] sm:$0xff]
    %v71 = vld [vmem:[#allocation2 + $0x58] sm:$0xff]
    %v72 = vld [vmem:[#allocation2 + $0x60] sm:$0xff]
    %v73 = vld [vmem:[#allocation2 + $0x68] sm:$0xff]
    %v74 = vld [vmem:[#allocation2 + $0x70] sm:$0xff]
    %v75 = vld [vmem:[#allocation2 + $0x78] sm:$0xff]
    %76 = vmatprep.subr.mxu0 0.0
    %77 = vmatpush1.msra.mxu0 %v75
    %78 = vmatprep.subr.mxu0 0.0
    %79 = vmatpush1.msra.mxu0 %v74
    %80 = vmatprep.subr.mxu0 0.0
    %81 = vmatpush1.msra.mxu0 %v73
    %82 = vmatprep.subr.mxu0 0.0
    %83 = vmatpush1.msra.mxu0 %v72
    %84 = vmatprep.subr.mxu0 0.0
    %85 = vmatpush1.msra.mxu0 %v71
    %86 = vmatprep.subr.mxu0 0.0
    %87 = vmatpush1.msra.mxu0 %v70
    %88 = vmatprep.subr.mxu0 0.0
    %89 = vmatpush1.msra.mxu0 %v69
    %90 = vmatprep.subr.mxu0 0.0
    %91 = vmatpush1.msra.mxu0 %v68
    %92 = vmatprep.subr.mxu0 0.0
    %93 = vmatpush1.msra.mxu0 %v67
    %94 = vmatprep.subr.mxu0 0.0
    %95 = vmatpush1.msra.mxu0 %v66
    %96 = vmatprep.subr.mxu0 0.0
    %97 = vmatpush1.msra.mxu0 %v65
    %98 = vmatprep.subr.mxu0 0.0
    %99 = vmatpush1.msra.mxu0 %v64
    %100 = vmatprep.subr.mxu0 0.0
    %101 = vmatpush1.msra.mxu0 %v63
    %102 = vmatprep.subr.mxu0 0.0
    %103 = vmatpush1.msra.mxu0 %v62
    %104 = vmatprep.subr.mxu0 0.0
    %105 = vmatpush1.msra.mxu0 %v61
    %106 = vmatprep.subr.mxu0 0.0
    %107 = vmatpush1.msra.mxu0 %v60
    %108 = vmatprep.subr.mxu0 0.0
    %109 = vmatpush2.msra.mxu0 0.0
    %110 = vmatprep.subr.mxu0 0.0
    %111 = vmatpush2.msra.mxu0 0.0
    %112 = vmatprep.subr.mxu0 0.0
    %113 = vmatpush2.msra.mxu0 0.0
    %114 = vmatprep.subr.mxu0 0.0
    %115 = vmatpush2.msra.mxu0 0.0
    %116 = vmatprep.subr.mxu0 0.0
    %117 = vmatpush2.msra.mxu0 0.0
    %118 = vmatprep.subr.mxu0 0.0
    %119 = vmatpush2.msra.mxu0 0.0
    %120 = vmatprep.subr.mxu0 0.0
    %121 = vmatpush2.msra.mxu0 0.0
    %122 = vmatprep.subr.mxu0 0.0
    %123 = vmatpush2.msra.mxu0 0.0
    %124 = vmatprep.subr.mxu0 0.0
    %125 = vmatpush2.msra.mxu0 0.0
    %126 = vmatprep.subr.mxu0 0.0
    %127 = vmatpush2.msra.mxu0 0.0
    %128 = vmatprep.subr.mxu0 0.0
    %129 = vmatpush2.msra.mxu0 0.0
    %130 = vmatprep.subr.mxu0 0.0
    %131 = vmatpush2.msra.mxu0 0.0
    %132 = vmatprep.subr.mxu0 0.0
    %133 = vmatpush2.msra.mxu0 0.0
    %134 = vmatprep.subr.mxu0 0.0
    %135 = vmatpush2.msra.mxu0 0.0
    %136 = vmatprep.subr.mxu0 0.0
    %137 = vmatpush2.msra.mxu0 0.0
    %138 = vmatprep.subr.mxu0 0.0
    %139 = vmatpush2.msra.mxu0 0.0
    %140 = vmatprep.mubr.f32.mxu0 0.0
    %141 = vmatmul.mubr.f32.gmra.mxu0 %v58
    %v142 = vpop.f32.mrf.mxu0
    %v143 = vadd.f32 0.0, %v142
    %v144 = vpop.f32.mrf.mxu0
    %145 = vmatprep.mubr.f32.mxu0 0.0
    %146 = vmatmul.mubr.f32.gmra.mxu0 %v59
    %v147 = vpop.f32.mrf.mxu0
    %v148 = vadd.f32 0.0, %v147
    %v149 = vpop.f32.mrf.mxu0
    %150 = vdwg.mxu0
    %v151 = vld [vmem:[#allocation4] sm:$0xff]
    %v152 = vld [vmem:[#allocation4 + $0x8] sm:$0xff]
    %v153 = vld [vmem:[#allocation4 + $0x10] sm:$0xff]
    %v154 = vld [vmem:[#allocation4 + $0x18] sm:$0xff]
    %v155 = vld [vmem:[#allocation4 + $0x20] sm:$0xff]
    %v156 = vld [vmem:[#allocation4 + $0x28] sm:$0xff]
    %v157 = vld [vmem:[#allocation4 + $0x30] sm:$0xff]
    %v158 = vld [vmem:[#allocation4 + $0x38] sm:$0xff]
    %v159 = vld [vmem:[#allocation4 + $0x40] sm:$0xff]
    %v160 = vld [vmem:[#allocation4 + $0x48] sm:$0xff]
    %v161 = vld [vmem:[#allocation4 + $0x50] sm:$0xff]
    %v162 = vld [vmem:[#allocation4 + $0x58] sm:$0xff]
    %v163 = vld [vmem:[#allocation4 + $0x60] sm:$0xff]
    %v164 = vld [vmem:[#allocation4 + $0x68] sm:$0xff]
    %v165 = vld [vmem:[#allocation4 + $0x70] sm:$0xff]
    %v166 = vld [vmem:[#allocation4 + $0x78] sm:$0xff]
    %167 = vmatprep.subr.mxu0 0.0
    %168 = vmatpush1.msra.mxu0 %v166
    %169 = vmatprep.subr.mxu0 0.0
    %170 = vmatpush1.msra.mxu0 %v165
    %171 = vmatprep.subr.mxu0 0.0
    %172 = vmatpush1.msra.mxu0 %v164
    %173 = vmatprep.subr.mxu0 0.0
    %174 = vmatpush1.msra.mxu0 %v163
    %175 = vmatprep.subr.mxu0 0.0
    %176 = vmatpush1.msra.mxu0 %v162
    %177 = vmatprep.subr.mxu0 0.0
    %178 = vmatpush1.msra.mxu0 %v161
    %179 = vmatprep.subr.mxu0 0.0
    %180 = vmatpush1.msra.mxu0 %v160
    %181 = vmatprep.subr.mxu0 0.0
    %182 = vmatpush1.msra.mxu0 %v159
    %183 = vmatprep.subr.mxu0 0.0
    %184 = vmatpush1.msra.mxu0 %v158
    %185 = vmatprep.subr.mxu0 0.0
    %186 = vmatpush1.msra.mxu0 %v157
    %187 = vmatprep.subr.mxu0 0.0
    %188 = vmatpush1.msra.mxu0 %v156
    %189 = vmatprep.subr.mxu0 0.0
    %190 = vmatpush1.msra.mxu0 %v155
    %191 = vmatprep.subr.mxu0 0.0
    %192 = vmatpush1.msra.mxu0 %v154
    %193 = vmatprep.subr.mxu0 0.0
    %194 = vmatpush1.msra.mxu0 %v153
    %195 = vmatprep.subr.mxu0 0.0
    %196 = vmatpush1.msra.mxu0 %v152
    %197 = vmatprep.subr.mxu0 0.0
    %198 = vmatpush1.msra.mxu0 %v151
    %199 = vmatprep.subr.mxu0 0.0
    %200 = vmatpush2.msra.mxu0 0.0
    %201 = vmatprep.subr.mxu0 0.0
    %202 = vmatpush2.msra.mxu0 0.0
    %203 = vmatprep.subr.mxu0 0.0
    %204 = vmatpush2.msra.mxu0 0.0
    %205 = vmatprep.subr.mxu0 0.0
    %206 = vmatpush2.msra.mxu0 0.0
    %207 = vmatprep.subr.mxu0 0.0
    %208 = vmatpush2.msra.mxu0 0.0
    %209 = vmatprep.subr.mxu0 0.0
    %210 = vmatpush2.msra.mxu0 0.0
    %211 = vmatprep.subr.mxu0 0.0
    %212 = vmatpush2.msra.mxu0 0.0
    %213 = vmatprep.subr.mxu0 0.0
    %214 = vmatpush2.msra.mxu0 0.0
    %215 = vmatprep.subr.mxu0 0.0
    %216 = vmatpush2.msra.mxu0 0.0
    %217 = vmatprep.subr.mxu0 0.0
    %218 = vmatpush2.msra.mxu0 0.0
    %219 = vmatprep.subr.mxu0 0.0
    %220 = vmatpush2.msra.mxu0 0.0
    %221 = vmatprep.subr.mxu0 0.0
    %222 = vmatpush2.msra.mxu0 0.0
    %223 = vmatprep.subr.mxu0 0.0
    %224 = vmatpush2.msra.mxu0 0.0
    %225 = vmatprep.subr.mxu0 0.0
    %226 = vmatpush2.msra.mxu0 0.0
    %227 = vmatprep.subr.mxu0 0.0
    %228 = vmatpush2.msra.mxu0 0.0
    %229 = vmatprep.subr.mxu0 0.0
    %230 = vmatpush2.msra.mxu0 0.0
    %231 = vmatprep.mubr.f32.mxu0 0.0
    %232 = vmatmul.mubr.f32.gmra.mxu0 %v58
    %v233 = vpop.f32.mrf.mxu0
    %v234 = vadd.f32 0.0, %v233
    %v235 = vpop.f32.mrf.mxu0
    %236 = vmatprep.mubr.f32.mxu0 0.0
    %237 = vmatmul.mubr.f32.gmra.mxu0 %v59
    %v238 = vpop.f32.mrf.mxu0
    %v239 = vadd.f32 0.0, %v238
    %v240 = vpop.f32.mrf.mxu0
    %241 = vdwg.mxu0
    %v242 = vld [vmem:[#allocation6] sm:$0xff]
    %v243 = vld [vmem:[#allocation6 + $0x8] sm:$0xff]
    %v244 = vld [vmem:[#allocation6 + $0x10] sm:$0xff]
    %v245 = vld [vmem:[#allocation6 + $0x18] sm:$0xff]
    %v246 = vld [vmem:[#allocation6 + $0x20] sm:$0xff]
    %v247 = vld [vmem:[#allocation6 + $0x28] sm:$0xff]
    %v248 = vld [vmem:[#allocation6 + $0x30] sm:$0xff]
    %v249 = vld [vmem:[#allocation6 + $0x38] sm:$0xff]
    %v250 = vld [vmem:[#allocation6 + $0x40] sm:$0xff]
    %v251 = vld [vmem:[#allocation6 + $0x48] sm:$0xff]
    %v252 = vld [vmem:[#allocation6 + $0x50] sm:$0xff]
    %v253 = vld [vmem:[#allocation6 + $0x58] sm:$0xff]
    %v254 = vld [vmem:[#allocation6 + $0x60] sm:$0xff]
    %v255 = vld [vmem:[#allocation6 + $0x68] sm:$0xff]
    %v256 = vld [vmem:[#allocation6 + $0x70] sm:$0xff]
    %v257 = vld [vmem:[#allocation6 + $0x78] sm:$0xff]
    %258 = vmatprep.subr.mxu0 0.0
    %259 = vmatpush1.msra.mxu0 %v257
    %260 = vmatprep.subr.mxu0 0.0
    %261 = vmatpush1.msra.mxu0 %v256
    %262 = vmatprep.subr.mxu0 0.0
    %263 = vmatpush1.msra.mxu0 %v255
    %264 = vmatprep.subr.mxu0 0.0
    %265 = vmatpush1.msra.mxu0 %v254
    %266 = vmatprep.subr.mxu0 0.0
    %267 = vmatpush1.msra.mxu0 %v253
    %268 = vmatprep.subr.mxu0 0.0
    %269 = vmatpush1.msra.mxu0 %v252
    %270 = vmatprep.subr.mxu0 0.0
    %271 = vmatpush1.msra.mxu0 %v251
    %272 = vmatprep.subr.mxu0 0.0
    %273 = vmatpush1.msra.mxu0 %v250
    %274 = vmatprep.subr.mxu0 0.0
    %275 = vmatpush1.msra.mxu0 %v249
    %276 = vmatprep.subr.mxu0 0.0
    %277 = vmatpush1.msra.mxu0 %v248
    %278 = vmatprep.subr.mxu0 0.0
    %279 = vmatpush1.msra.mxu0 %v247
    %280 = vmatprep.subr.mxu0 0.0
    %281 = vmatpush1.msra.mxu0 %v246
    %282 = vmatprep.subr.mxu0 0.0
    %283 = vmatpush1.msra.mxu0 %v245
    %284 = vmatprep.subr.mxu0 0.0
    %285 = vmatpush1.msra.mxu0 %v244
    %286 = vmatprep.subr.mxu0 0.0
    %287 = vmatpush1.msra.mxu0 %v243
    %288 = vmatprep.subr.mxu0 0.0
    %289 = vmatpush1.msra.mxu0 %v242
    %290 = vmatprep.subr.mxu0 0.0
    %291 = vmatpush2.msra.mxu0 0.0
    %292 = vmatprep.subr.mxu0 0.0
    %293 = vmatpush2.msra.mxu0 0.0
    %294 = vmatprep.subr.mxu0 0.0
    %295 = vmatpush2.msra.mxu0 0.0
    %296 = vmatprep.subr.mxu0 0.0
    %297 = vmatpush2.msra.mxu0 0.0
    %298 = vmatprep.subr.mxu0 0.0
    %299 = vmatpush2.msra.mxu0 0.0
    %300 = vmatprep.subr.mxu0 0.0
    %301 = vmatpush2.msra.mxu0 0.0
    %302 = vmatprep.subr.mxu0 0.0
    %303 = vmatpush2.msra.mxu0 0.0
    %304 = vmatprep.subr.mxu0 0.0
    %305 = vmatpush2.msra.mxu0 0.0
    %306 = vmatprep.subr.mxu0 0.0
    %307 = vmatpush2.msra.mxu0 0.0
    %308 = vmatprep.subr.mxu0 0.0
    %309 = vmatpush2.msra.mxu0 0.0
    %310 = vmatprep.subr.mxu0 0.0
    %311 = vmatpush2.msra.mxu0 0.0
    %312 = vmatprep.subr.mxu0 0.0
    %313 = vmatpush2.msra.mxu0 0.0
    %314 = vmatprep.subr.mxu0 0.0
    %315 = vmatpush2.msra.mxu0 0.0
    %316 = vmatprep.subr.mxu0 0.0
    %317 = vmatpush2.msra.mxu0 0.0
    %318 = vmatprep.subr.mxu0 0.0
    %319 = vmatpush2.msra.mxu0 0.0
    %320 = vmatprep.subr.mxu0 0.0
    %321 = vmatpush2.msra.mxu0 0.0
    %322 = vmatprep.mubr.f32.mxu0 0.0
    %323 = vmatmul.mubr.f32.gmra.mxu0 %v58
    %v324 = vpop.f32.mrf.mxu0
    %v325 = vadd.f32 0.0, %v324
    %v326 = vpop.f32.mrf.mxu0
    %327 = vmatprep.mubr.f32.mxu0 0.0
    %328 = vmatmul.mubr.f32.gmra.mxu0 %v59
    %v329 = vpop.f32.mrf.mxu0
    %v330 = vadd.f32 0.0, %v329
    %v331 = vpop.f32.mrf.mxu0
    %332 = vdwg.mxu0
    %vm333 = vcmask 261120
    %v335 = vsel %vm333, %v143, 0
    %v338 = vsel %vm333, %v148, 0
    %v341 = vsel %vm333, %v234, 0
    %v344 = vsel %vm333, %v239, 0
    %346 = vmatprep.subr.mxu0 0.0
    %347 = vmatpush1.xpose.msra.mxu0 0.0
    %348 = vmatprep.subr.mxu0 0.0
    %349 = vmatpush1.xpose.msra.mxu0 0.0
    %350 = vmatprep.subr.mxu0 0.0
    %351 = vmatpush1.xpose.msra.mxu0 0.0
    %352 = vmatprep.subr.mxu0 0.0
    %353 = vmatpush1.xpose.msra.mxu0 0.0
    %354 = vmatprep.subr.mxu0 0.0
    %355 = vmatpush1.xpose.msra.mxu0 0.0
    %356 = vmatprep.subr.mxu0 0.0
    %357 = vmatpush1.xpose.msra.mxu0 0.0
    %358 = vmatprep.subr.mxu0 0.0
    %359 = vmatpush1.xpose.msra.mxu0 0.0
    %360 = vmatprep.subr.mxu0 0.0
    %361 = vmatpush1.xpose.msra.mxu0 0.0
    %362 = vmatprep.subr.mxu0 0.0
    %363 = vmatpush1.xpose.msra.mxu0 0.0
    %364 = vmatprep.subr.mxu0 0.0
    %365 = vmatpush1.xpose.msra.mxu0 0.0
    %366 = vmatprep.subr.mxu0 0.0
    %367 = vmatpush1.xpose.msra.mxu0 0.0
    %368 = vmatprep.subr.mxu0 0.0
    %369 = vmatpush1.xpose.msra.mxu0 0.0
    %370 = vmatprep.subr.mxu0 0.0
    %371 = vmatpush1.xpose.msra.mxu0 0.0
    %372 = vmatprep.subr.mxu0 0.0
    %373 = vmatpush1.xpose.msra.mxu0 0.0
    %374 = vmatprep.subr.mxu0 0.0
    %375 = vmatpush1.xpose.msra.mxu0 %v344
    %376 = vmatprep.subr.mxu0 0.0
    %377 = vmatpush1.xpose.msra.mxu0 %v341
    %378 = vmatprep.subr.mxu0 0.0
    %379 = vmatpush2.xpose.msra.mxu0 0.0
    %380 = vmatprep.subr.mxu0 0.0
    %381 = vmatpush2.xpose.msra.mxu0 0.0
    %382 = vmatprep.subr.mxu0 0.0
    %383 = vmatpush2.xpose.msra.mxu0 0.0
    %384 = vmatprep.subr.mxu0 0.0
    %385 = vmatpush2.xpose.msra.mxu0 0.0
    %386 = vmatprep.subr.mxu0 0.0
    %387 = vmatpush2.xpose.msra.mxu0 0.0
    %388 = vmatprep.subr.mxu0 0.0
    %389 = vmatpush2.xpose.msra.mxu0 0.0
    %390 = vmatprep.subr.mxu0 0.0
    %391 = vmatpush2.xpose.msra.mxu0 0.0
    %392 = vmatprep.subr.mxu0 0.0
    %393 = vmatpush2.xpose.msra.mxu0 0.0
    %394 = vmatprep.subr.mxu0 0.0
    %395 = vmatpush2.xpose.msra.mxu0 0.0
    %396 = vmatprep.subr.mxu0 0.0
    %397 = vmatpush2.xpose.msra.mxu0 0.0
    %398 = vmatprep.subr.mxu0 0.0
    %399 = vmatpush2.xpose.msra.mxu0 0.0
    %400 = vmatprep.subr.mxu0 0.0
    %401 = vmatpush2.xpose.msra.mxu0 0.0
    %402 = vmatprep.subr.mxu0 0.0
    %403 = vmatpush2.xpose.msra.mxu0 0.0
    %404 = vmatprep.subr.mxu0 0.0
    %405 = vmatpush2.xpose.msra.mxu0 0.0
    %406 = vmatprep.subr.mxu0 0.0
    %407 = vmatpush2.xpose.msra.mxu0 0.0
    %408 = vmatprep.subr.mxu0 0.0
    %409 = vmatpush2.xpose.msra.mxu0 0.0
    %410 = vmatprep.mubr.f32.mxu0 0.0
    %411 = vmatmul.mubr.f32.gmra.mxu0 %v335
    %v412 = vpop.f32.mrf.mxu0
    %v413 = vadd.f32 0.0, %v412
    %v414 = vpop.f32.mrf.mxu0
    %415 = vmatprep.mubr.f32.mxu0 0.0
    %416 = vmatmul.mubr.f32.gmra.mxu0 %v338
    %v417 = vpop.f32.mrf.mxu0
    %v418 = vadd.f32 0.0, %v417
    %v419 = vpop.f32.mrf.mxu0
    %420 = vdwg.mxu0
    %v421 = vmul.f32 %v413, 0.17677669
    %v422 = vmul.f32 %v418, 0.17677669
    %vm423 = vcmask 130048
    %v424 = vsel %vm423, %v421, -inf
    %425 = vmax.xlane.f32.xlu0 %v424
    %v426 = vpop.xlane.xlu0 %425
    %v427 = vsel %vm423, %v422, -inf
    %428 = vmax.xlane.f32.xlu0 %v427
    %v429 = vpop.xlane.xlu0 %428
    %v430 = vsub.f32 %v421, %v426
    %v431 = vsub.f32 %v422, %v429
    %v432 = vmul.f32 %v430, 1.442695
    %v433 = vpow.pop %v432
    %v434 = vmul.f32 %v431, 1.442695
    %v435 = vpow.pop %v434
    %v436 = vsel %vm423, %v433, 0.0
    %437 = vadd.xlane.f32.xlu0 %v436
    %v438 = vpop.xlane.xlu0 %437
    %v439 = vsel %vm423, %v435, 0.0
    %440 = vadd.xlane.f32.xlu0 %v439
    %v441 = vpop.xlane.xlu0 %440
    %v442 = vrcp.pop %v438
    %v443 = vmul.f32 %v433, %v442
    %v444 = vrcp.pop %v441
    %v445 = vmul.f32 %v435, %v444
    %v447 = vsel %vm423, %v443, 0
    %v450 = vsel %vm423, %v445, 0
    %452 = vmatprep.subr.mxu0 0.0
    %453 = vmatpush1.msra.mxu0 0.0
    %454 = vmatprep.subr.mxu0 0.0
    %455 = vmatpush1.msra.mxu0 0.0
    %456 = vmatprep.subr.mxu0 0.0
    %457 = vmatpush1.msra.mxu0 0.0
    %458 = vmatprep.subr.mxu0 0.0
    %459 = vmatpush1.msra.mxu0 0.0
    %460 = vmatprep.subr.mxu0 0.0
    %461 = vmatpush1.msra.mxu0 0.0
    %462 = vmatprep.subr.mxu0 0.0
    %463 = vmatpush1.msra.mxu0 0.0
    %464 = vmatprep.subr.mxu0 0.0
    %465 = vmatpush1.msra.mxu0 0.0
    %466 = vmatprep.subr.mxu0 0.0
    %467 = vmatpush1.msra.mxu0 0.0
    %468 = vmatprep.subr.mxu0 0.0
    %469 = vmatpush1.msra.mxu0 0.0
    %470 = vmatprep.subr.mxu0 0.0
    %471 = vmatpush1.msra.mxu0 0.0
    %472 = vmatprep.subr.mxu0 0.0
    %473 = vmatpush1.msra.mxu0 0.0
    %474 = vmatprep.subr.mxu0 0.0
    %475 = vmatpush1.msra.mxu0 0.0
    %476 = vmatprep.subr.mxu0 0.0
    %477 = vmatpush1.msra.mxu0 0.0
    %478 = vmatprep.subr.mxu0 0.0
    %479 = vmatpush1.msra.mxu0 0.0
    %480 = vmatprep.subr.mxu0 0.0
    %481 = vmatpush1.msra.mxu0 %v330
    %482 = vmatprep.subr.mxu0 0.0
    %483 = vmatpush1.msra.mxu0 %v325
    %484 = vmatprep.subr.mxu0 0.0
    %485 = vmatpush2.msra.mxu0 0.0
    %486 = vmatprep.subr.mxu0 0.0
    %487 = vmatpush2.msra.mxu0 0.0
    %488 = vmatprep.subr.mxu0 0.0
    %489 = vmatpush2.msra.mxu0 0.0
    %490 = vmatprep.subr.mxu0 0.0
    %491 = vmatpush2.msra.mxu0 0.0
    %492 = vmatprep.subr.mxu0 0.0
    %493 = vmatpush2.msra.mxu0 0.0
    %494 = vmatprep.subr.mxu0 0.0
    %495 = vmatpush2.msra.mxu0 0.0
    %496 = vmatprep.subr.mxu0 0.0
    %497 = vmatpush2.msra.mxu0 0.0
    %498 = vmatprep.subr.mxu0 0.0
    %499 = vmatpush2.msra.mxu0 0.0
    %500 = vmatprep.subr.mxu0 0.0
    %501 = vmatpush2.msra.mxu0 0.0
    %502 = vmatprep.subr.mxu0 0.0
    %503 = vmatpush2.msra.mxu0 0.0
    %504 = vmatprep.subr.mxu0 0.0
    %505 = vmatpush2.msra.mxu0 0.0
    %506 = vmatprep.subr.mxu0 0.0
    %507 = vmatpush2.msra.mxu0 0.0
    %508 = vmatprep.subr.mxu0 0.0
    %509 = vmatpush2.msra.mxu0 0.0
    %510 = vmatprep.subr.mxu0 0.0
    %511 = vmatpush2.msra.mxu0 0.0
    %512 = vmatprep.subr.mxu0 0.0
    %513 = vmatpush2.msra.mxu0 0.0
    %514 = vmatprep.subr.mxu0 0.0
    %515 = vmatpush2.msra.mxu0 0.0
    %516 = vmatprep.mubr.f32.mxu0 0.0
    %517 = vmatmul.mubr.f32.gmra.mxu0 %v447
    %v518 = vpop.f32.mrf.mxu0
    %v519 = vadd.f32 0.0, %v518
    %v520 = vpop.f32.mrf.mxu0
    %521 = vmatprep.mubr.f32.mxu0 0.0
    %522 = vmatmul.mubr.f32.gmra.mxu0 %v450
    %v523 = vpop.f32.mrf.mxu0
    %v524 = vadd.f32 0.0, %v523
    %v525 = vpop.f32.mrf.mxu0
    %526 = vdwg.mxu0
    %527 = vrot.lane.b32.xlu0 %v143, 96
    %v528 = vpop.permute.xlu0 %527
    %529 = vrot.lane.b32.xlu0 %v148, 96
    %v530 = vpop.permute.xlu0 %529
    %531 = vrot.lane.b32.xlu0 %v234, 96
    %v532 = vpop.permute.xlu0 %531
    %533 = vrot.lane.b32.xlu0 %v239, 96
    %v534 = vpop.permute.xlu0 %533
    %v535 = vsel %vm333, %v528, 0
    %v537 = vsel %vm333, %v530, 0
    %v539 = vsel %vm333, %v532, 0
    %v541 = vsel %vm333, %v534, 0
    %543 = vmatprep.subr.mxu0 0.0
    %544 = vmatpush1.xpose.msra.mxu0 0.0
    %545 = vmatprep.subr.mxu0 0.0
    %546 = vmatpush1.xpose.msra.mxu0 0.0
    %547 = vmatprep.subr.mxu0 0.0
    %548 = vmatpush1.xpose.msra.mxu0 0.0
    %549 = vmatprep.subr.mxu0 0.0
    %550 = vmatpush1.xpose.msra.mxu0 0.0
    %551 = vmatprep.subr.mxu0 0.0
    %552 = vmatpush1.xpose.msra.mxu0 0.0
    %553 = vmatprep.subr.mxu0 0.0
    %554 = vmatpush1.xpose.msra.mxu0 0.0
    %555 = vmatprep.subr.mxu0 0.0
    %556 = vmatpush1.xpose.msra.mxu0 0.0
    %557 = vmatprep.subr.mxu0 0.0
    %558 = vmatpush1.xpose.msra.mxu0 0.0
    %559 = vmatprep.subr.mxu0 0.0
    %560 = vmatpush1.xpose.msra.mxu0 0.0
    %561 = vmatprep.subr.mxu0 0.0
    %562 = vmatpush1.xpose.msra.mxu0 0.0
    %563 = vmatprep.subr.mxu0 0.0
    %564 = vmatpush1.xpose.msra.mxu0 0.0
    %565 = vmatprep.subr.mxu0 0.0
    %566 = vmatpush1.xpose.msra.mxu0 0.0
    %567 = vmatprep.subr.mxu0 0.0
    %568 = vmatpush1.xpose.msra.mxu0 0.0
    %569 = vmatprep.subr.mxu0 0.0
    %570 = vmatpush1.xpose.msra.mxu0 0.0
    %571 = vmatprep.subr.mxu0 0.0
    %572 = vmatpush1.xpose.msra.mxu0 %v541
    %573 = vmatprep.subr.mxu0 0.0
    %574 = vmatpush1.xpose.msra.mxu0 %v539
    %575 = vmatprep.subr.mxu0 0.0
    %576 = vmatpush2.xpose.msra.mxu0 0.0
    %577 = vmatprep.subr.mxu0 0.0
    %578 = vmatpush2.xpose.msra.mxu0 0.0
    %579 = vmatprep.subr.mxu0 0.0
    %580 = vmatpush2.xpose.msra.mxu0 0.0
    %581 = vmatprep.subr.mxu0 0.0
    %582 = vmatpush2.xpose.msra.mxu0 0.0
    %583 = vmatprep.subr.mxu0 0.0
    %584 = vmatpush2.xpose.msra.mxu0 0.0
    %585 = vmatprep.subr.mxu0 0.0
    %586 = vmatpush2.xpose.msra.mxu0 0.0
    %587 = vmatprep.subr.mxu0 0.0
    %588 = vmatpush2.xpose.msra.mxu0 0.0
    %589 = vmatprep.subr.mxu0 0.0
    %590 = vmatpush2.xpose.msra.mxu0 0.0
    %591 = vmatprep.subr.mxu0 0.0
    %592 = vmatpush2.xpose.msra.mxu0 0.0
    %593 = vmatprep.subr.mxu0 0.0
    %594 = vmatpush2.xpose.msra.mxu0 0.0
    %595 = vmatprep.subr.mxu0 0.0
    %596 = vmatpush2.xpose.msra.mxu0 0.0
    %597 = vmatprep.subr.mxu0 0.0
    %598 = vmatpush2.xpose.msra.mxu0 0.0
    %599 = vmatprep.subr.mxu0 0.0
    %600 = vmatpush2.xpose.msra.mxu0 0.0
    %601 = vmatprep.subr.mxu0 0.0
    %602 = vmatpush2.xpose.msra.mxu0 0.0
    %603 = vmatprep.subr.mxu0 0.0
    %604 = vmatpush2.xpose.msra.mxu0 0.0
    %605 = vmatprep.subr.mxu0 0.0
    %606 = vmatpush2.xpose.msra.mxu0 0.0
    %607 = vmatprep.mubr.f32.mxu0 0.0
    %608 = vmatmul.mubr.f32.gmra.mxu0 %v535
    %v609 = vpop.f32.mrf.mxu0
    %v610 = vadd.f32 0.0, %v609
    %v611 = vpop.f32.mrf.mxu0
    %612 = vmatprep.mubr.f32.mxu0 0.0
    %613 = vmatmul.mubr.f32.gmra.mxu0 %v537
    %v614 = vpop.f32.mrf.mxu0
    %v615 = vadd.f32 0.0, %v614
    %v616 = vpop.f32.mrf.mxu0
    %617 = vdwg.mxu0
    %v618 = vmul.f32 %v610, 0.17677669
    %v619 = vmul.f32 %v615, 0.17677669
    %v620 = vsel %vm423, %v618, -inf
    %621 = vmax.xlane.f32.xlu0 %v620
    %v622 = vpop.xlane.xlu0 %621
    %v623 = vsel %vm423, %v619, -inf
    %624 = vmax.xlane.f32.xlu0 %v623
    %v625 = vpop.xlane.xlu0 %624
    %v626 = vsub.f32 %v618, %v622
    %v627 = vsub.f32 %v619, %v625
    %v628 = vmul.f32 %v626, 1.442695
    %v629 = vpow.pop %v628
    %v630 = vmul.f32 %v627, 1.442695
    %v631 = vpow.pop %v630
    %v632 = vsel %vm423, %v629, 0.0
    %633 = vadd.xlane.f32.xlu0 %v632
    %v634 = vpop.xlane.xlu0 %633
    %v635 = vsel %vm423, %v631, 0.0
    %636 = vadd.xlane.f32.xlu0 %v635
    %v637 = vpop.xlane.xlu0 %636
    %v638 = vrcp.pop %v634
    %v639 = vmul.f32 %v629, %v638
    %v640 = vrcp.pop %v637
    %v641 = vmul.f32 %v631, %v640
    %644 = vrot.lane.b32.xlu0 %v325, 96
    %v645 = vpop.permute.xlu0 %644
    %646 = vrot.lane.b32.xlu0 %v330, 96
    %v647 = vpop.permute.xlu0 %646
    %v651 = vsel %vm423, %v639, 0
    %v654 = vsel %vm423, %v641, 0
    %656 = vmatprep.subr.mxu0 0.0
    %657 = vmatpush1.msra.mxu0 0.0
    %658 = vmatprep.subr.mxu0 0.0
    %659 = vmatpush1.msra.mxu0 0.0
    %660 = vmatprep.subr.mxu0 0.0
    %661 = vmatpush1.msra.mxu0 0.0
    %662 = vmatprep.subr.mxu0 0.0
    %663 = vmatpush1.msra.mxu0 0.0
    %664 = vmatprep.subr.mxu0 0.0
    %665 = vmatpush1.msra.mxu0 0.0
    %666 = vmatprep.subr.mxu0 0.0
    %667 = vmatpush1.msra.mxu0 0.0
    %668 = vmatprep.subr.mxu0 0.0
    %669 = vmatpush1.msra.mxu0 0.0
    %670 = vmatprep.subr.mxu0 0.0
    %671 = vmatpush1.msra.mxu0 0.0
    %672 = vmatprep.subr.mxu0 0.0
    %673 = vmatpush1.msra.mxu0 0.0
    %674 = vmatprep.subr.mxu0 0.0
    %675 = vmatpush1.msra.mxu0 0.0
    %676 = vmatprep.subr.mxu0 0.0
    %677 = vmatpush1.msra.mxu0 0.0
    %678 = vmatprep.subr.mxu0 0.0
    %679 = vmatpush1.msra.mxu0 0.0
    %680 = vmatprep.subr.mxu0 0.0
    %681 = vmatpush1.msra.mxu0 0.0
    %682 = vmatprep.subr.mxu0 0.0
    %683 = vmatpush1.msra.mxu0 0.0
    %684 = vmatprep.subr.mxu0 0.0
    %685 = vmatpush1.msra.mxu0 %v647
    %686 = vmatprep.subr.mxu0 0.0
    %687 = vmatpush1.msra.mxu0 %v645
    %688 = vmatprep.subr.mxu0 0.0
    %689 = vmatpush2.msra.mxu0 0.0
    %690 = vmatprep.subr.mxu0 0.0
    %691 = vmatpush2.msra.mxu0 0.0
    %692 = vmatprep.subr.mxu0 0.0
    %693 = vmatpush2.msra.mxu0 0.0
    %694 = vmatprep.subr.mxu0 0.0
    %695 = vmatpush2.msra.mxu0 0.0
    %696 = vmatprep.subr.mxu0 0.0
    %697 = vmatpush2.msra.mxu0 0.0
    %698 = vmatprep.subr.mxu0 0.0
    %699 = vmatpush2.msra.mxu0 0.0
    %700 = vmatprep.subr.mxu0 0.0
    %701 = vmatpush2.msra.mxu0 0.0
    %702 = vmatprep.subr.mxu0 0.0
    %703 = vmatpush2.msra.mxu0 0.0
    %704 = vmatprep.subr.mxu0 0.0
    %705 = vmatpush2.msra.mxu0 0.0
    %706 = vmatprep.subr.mxu0 0.0
    %707 = vmatpush2.msra.mxu0 0.0
    %708 = vmatprep.subr.mxu0 0.0
    %709 = vmatpush2.msra.mxu0 0.0
    %710 = vmatprep.subr.mxu0 0.0
    %711 = vmatpush2.msra.mxu0 0.0
    %712 = vmatprep.subr.mxu0 0.0
    %713 = vmatpush2.msra.mxu0 0.0
    %714 = vmatprep.subr.mxu0 0.0
    %715 = vmatpush2.msra.mxu0 0.0
    %716 = vmatprep.subr.mxu0 0.0
    %717 = vmatpush2.msra.mxu0 0.0
    %718 = vmatprep.subr.mxu0 0.0
    %719 = vmatpush2.msra.mxu0 0.0
    %720 = vmatprep.mubr.f32.mxu0 0.0
    %721 = vmatmul.mubr.f32.gmra.mxu0 %v651
    %v722 = vpop.f32.mrf.mxu0
    %v723 = vadd.f32 0.0, %v722
    %v724 = vpop.f32.mrf.mxu0
    %725 = vmatprep.mubr.f32.mxu0 0.0
    %726 = vmatmul.mubr.f32.gmra.mxu0 %v654
    %v727 = vpop.f32.mrf.mxu0
    %v728 = vadd.f32 0.0, %v727
    %v729 = vpop.f32.mrf.mxu0
    %730 = vdwg.mxu0
    %731 = vrot.lane.b32.xlu0 %v143, 64
    %v732 = vpop.permute.xlu0 %731
    %733 = vrot.lane.b32.xlu0 %v148, 64
    %v734 = vpop.permute.xlu0 %733
    %735 = vrot.lane.b32.xlu0 %v234, 64
    %v736 = vpop.permute.xlu0 %735
    %737 = vrot.lane.b32.xlu0 %v239, 64
    %v738 = vpop.permute.xlu0 %737
    %v739 = vsel %vm333, %v732, 0
    %v741 = vsel %vm333, %v734, 0
    %v743 = vsel %vm333, %v736, 0
    %v745 = vsel %vm333, %v738, 0
    %747 = vmatprep.subr.mxu0 0.0
    %748 = vmatpush1.xpose.msra.mxu0 0.0
    %749 = vmatprep.subr.mxu0 0.0
    %750 = vmatpush1.xpose.msra.mxu0 0.0
    %751 = vmatprep.subr.mxu0 0.0
    %752 = vmatpush1.xpose.msra.mxu0 0.0
    %753 = vmatprep.subr.mxu0 0.0
    %754 = vmatpush1.xpose.msra.mxu0 0.0
    %755 = vmatprep.subr.mxu0 0.0
    %756 = vmatpush1.xpose.msra.mxu0 0.0
    %757 = vmatprep.subr.mxu0 0.0
    %758 = vmatpush1.xpose.msra.mxu0 0.0
    %759 = vmatprep.subr.mxu0 0.0
    %760 = vmatpush1.xpose.msra.mxu0 0.0
    %761 = vmatprep.subr.mxu0 0.0
    %762 = vmatpush1.xpose.msra.mxu0 0.0
    %763 = vmatprep.subr.mxu0 0.0
    %764 = vmatpush1.xpose.msra.mxu0 0.0
    %765 = vmatprep.subr.mxu0 0.0
    %766 = vmatpush1.xpose.msra.mxu0 0.0
    %767 = vmatprep.subr.mxu0 0.0
    %768 = vmatpush1.xpose.msra.mxu0 0.0
    %769 = vmatprep.subr.mxu0 0.0
    %770 = vmatpush1.xpose.msra.mxu0 0.0
    %771 = vmatprep.subr.mxu0 0.0
    %772 = vmatpush1.xpose.msra.mxu0 0.0
    %773 = vmatprep.subr.mxu0 0.0
    %774 = vmatpush1.xpose.msra.mxu0 0.0
    %775 = vmatprep.subr.mxu0 0.0
    %776 = vmatpush1.xpose.msra.mxu0 %v745
    %777 = vmatprep.subr.mxu0 0.0
    %778 = vmatpush1.xpose.msra.mxu0 %v743
    %779 = vmatprep.subr.mxu0 0.0
    %780 = vmatpush2.xpose.msra.mxu0 0.0
    %781 = vmatprep.subr.mxu0 0.0
    %782 = vmatpush2.xpose.msra.mxu0 0.0
    %783 = vmatprep.subr.mxu0 0.0
    %784 = vmatpush2.xpose.msra.mxu0 0.0
    %785 = vmatprep.subr.mxu0 0.0
    %786 = vmatpush2.xpose.msra.mxu0 0.0
    %787 = vmatprep.subr.mxu0 0.0
    %788 = vmatpush2.xpose.msra.mxu0 0.0
    %789 = vmatprep.subr.mxu0 0.0
    %790 = vmatpush2.xpose.msra.mxu0 0.0
    %791 = vmatprep.subr.mxu0 0.0
    %792 = vmatpush2.xpose.msra.mxu0 0.0
    %793 = vmatprep.subr.mxu0 0.0
    %794 = vmatpush2.xpose.msra.mxu0 0.0
    %795 = vmatprep.subr.mxu0 0.0
    %796 = vmatpush2.xpose.msra.mxu0 0.0
    %797 = vmatprep.subr.mxu0 0.0
    %798 = vmatpush2.xpose.msra.mxu0 0.0
    %799 = vmatprep.subr.mxu0 0.0
    %800 = vmatpush2.xpose.msra.mxu0 0.0
    %801 = vmatprep.subr.mxu0 0.0
    %802 = vmatpush2.xpose.msra.mxu0 0.0
    %803 = vmatprep.subr.mxu0 0.0
    %804 = vmatpush2.xpose.msra.mxu0 0.0
    %805 = vmatprep.subr.mxu0 0.0
    %806 = vmatpush2.xpose.msra.mxu0 0.0
    %807 = vmatprep.subr.mxu0 0.0
    %808 = vmatpush2.xpose.msra.mxu0 0.0
    %809 = vmatprep.subr.mxu0 0.0
    %810 = vmatpush2.xpose.msra.mxu0 0.0
    %811 = vmatprep.mubr.f32.mxu0 0.0
    %812 = vmatmul.mubr.f32.gmra.mxu0 %v739
    %v813 = vpop.f32.mrf.mxu0
    %v814 = vadd.f32 0.0, %v813
    %v815 = vpop.f32.mrf.mxu0
    %816 = vmatprep.mubr.f32.mxu0 0.0
    %817 = vmatmul.mubr.f32.gmra.mxu0 %v741
    %v818 = vpop.f32.mrf.mxu0
    %v819 = vadd.f32 0.0, %v818
    %v820 = vpop.f32.mrf.mxu0
    %821 = vdwg.mxu0
    %v822 = vmul.f32 %v814, 0.17677669
    %v823 = vmul.f32 %v819, 0.17677669
    %v824 = vsel %vm423, %v822, -inf
    %825 = vmax.xlane.f32.xlu0 %v824
    %v826 = vpop.xlane.xlu0 %825
    %v827 = vsel %vm423, %v823, -inf
    %828 = vmax.xlane.f32.xlu0 %v827
    %v829 = vpop.xlane.xlu0 %828
    %v830 = vsub.f32 %v822, %v826
    %v831 = vsub.f32 %v823, %v829
    %v832 = vmul.f32 %v830, 1.442695
    %v833 = vpow.pop %v832
    %v834 = vmul.f32 %v831, 1.442695
    %v835 = vpow.pop %v834
    %v836 = vsel %vm423, %v833, 0.0
    %837 = vadd.xlane.f32.xlu0 %v836
    %v838 = vpop.xlane.xlu0 %837
    %v839 = vsel %vm423, %v835, 0.0
    %840 = vadd.xlane.f32.xlu0 %v839
    %v841 = vpop.xlane.xlu0 %840
    %v842 = vrcp.pop %v838
    %v843 = vmul.f32 %v833, %v842
    %v844 = vrcp.pop %v841
    %v845 = vmul.f32 %v835, %v844
    %846 = vrot.lane.b32.xlu0 %v325, 64
    %v847 = vpop.permute.xlu0 %846
    %848 = vrot.lane.b32.xlu0 %v330, 64
    %v849 = vpop.permute.xlu0 %848
    %v853 = vsel %vm423, %v843, 0
    %v856 = vsel %vm423, %v845, 0
    %858 = vmatprep.subr.mxu0 0.0
    %859 = vmatpush1.msra.mxu0 0.0
    %860 = vmatprep.subr.mxu0 0.0
    %861 = vmatpush1.msra.mxu0 0.0
    %862 = vmatprep.subr.mxu0 0.0
    %863 = vmatpush1.msra.mxu0 0.0
    %864 = vmatprep.subr.mxu0 0.0
    %865 = vmatpush1.msra.mxu0 0.0
    %866 = vmatprep.subr.mxu0 0.0
    %867 = vmatpush1.msra.mxu0 0.0
    %868 = vmatprep.subr.mxu0 0.0
    %869 = vmatpush1.msra.mxu0 0.0
    %870 = vmatprep.subr.mxu0 0.0
    %871 = vmatpush1.msra.mxu0 0.0
    %872 = vmatprep.subr.mxu0 0.0
    %873 = vmatpush1.msra.mxu0 0.0
    %874 = vmatprep.subr.mxu0 0.0
    %875 = vmatpush1.msra.mxu0 0.0
    %876 = vmatprep.subr.mxu0 0.0
    %877 = vmatpush1.msra.mxu0 0.0
    %878 = vmatprep.subr.mxu0 0.0
    %879 = vmatpush1.msra.mxu0 0.0
    %880 = vmatprep.subr.mxu0 0.0
    %881 = vmatpush1.msra.mxu0 0.0
    %882 = vmatprep.subr.mxu0 0.0
    %883 = vmatpush1.msra.mxu0 0.0
    %884 = vmatprep.subr.mxu0 0.0
    %885 = vmatpush1.msra.mxu0 0.0
    %886 = vmatprep.subr.mxu0 0.0
    %887 = vmatpush1.msra.mxu0 %v849
    %888 = vmatprep.subr.mxu0 0.0
    %889 = vmatpush1.msra.mxu0 %v847
    %890 = vmatprep.subr.mxu0 0.0
    %891 = vmatpush2.msra.mxu0 0.0
    %892 = vmatprep.subr.mxu0 0.0
    %893 = vmatpush2.msra.mxu0 0.0
    %894 = vmatprep.subr.mxu0 0.0
    %895 = vmatpush2.msra.mxu0 0.0
    %896 = vmatprep.subr.mxu0 0.0
    %897 = vmatpush2.msra.mxu0 0.0
    %898 = vmatprep.subr.mxu0 0.0
    %899 = vmatpush2.msra.mxu0 0.0
    %900 = vmatprep.subr.mxu0 0.0
    %901 = vmatpush2.msra.mxu0 0.0
    %902 = vmatprep.subr.mxu0 0.0
    %903 = vmatpush2.msra.mxu0 0.0
    %904 = vmatprep.subr.mxu0 0.0
    %905 = vmatpush2.msra.mxu0 0.0
    %906 = vmatprep.subr.mxu0 0.0
    %907 = vmatpush2.msra.mxu0 0.0
    %908 = vmatprep.subr.mxu0 0.0
    %909 = vmatpush2.msra.mxu0 0.0
    %910 = vmatprep.subr.mxu0 0.0
    %911 = vmatpush2.msra.mxu0 0.0
    %912 = vmatprep.subr.mxu0 0.0
    %913 = vmatpush2.msra.mxu0 0.0
    %914 = vmatprep.subr.mxu0 0.0
    %915 = vmatpush2.msra.mxu0 0.0
    %916 = vmatprep.subr.mxu0 0.0
    %917 = vmatpush2.msra.mxu0 0.0
    %918 = vmatprep.subr.mxu0 0.0
    %919 = vmatpush2.msra.mxu0 0.0
    %920 = vmatprep.subr.mxu0 0.0
    %921 = vmatpush2.msra.mxu0 0.0
    %922 = vmatprep.mubr.f32.mxu0 0.0
    %923 = vmatmul.mubr.f32.gmra.mxu0 %v853
    %v924 = vpop.f32.mrf.mxu0
    %v925 = vadd.f32 0.0, %v924
    %v926 = vpop.f32.mrf.mxu0
    %927 = vmatprep.mubr.f32.mxu0 0.0
    %928 = vmatmul.mubr.f32.gmra.mxu0 %v856
    %v929 = vpop.f32.mrf.mxu0
    %v930 = vadd.f32 0.0, %v929
    %v931 = vpop.f32.mrf.mxu0
    %932 = vdwg.mxu0
    %933 = vrot.lane.b32.xlu0 %v143, 32
    %v934 = vpop.permute.xlu0 %933
    %935 = vrot.lane.b32.xlu0 %v148, 32
    %v936 = vpop.permute.xlu0 %935
    %937 = vrot.lane.b32.xlu0 %v234, 32
    %v938 = vpop.permute.xlu0 %937
    %939 = vrot.lane.b32.xlu0 %v239, 32
    %v940 = vpop.permute.xlu0 %939
    %v941 = vsel %vm333, %v934, 0
    %v943 = vsel %vm333, %v936, 0
    %v945 = vsel %vm333, %v938, 0
    %v947 = vsel %vm333, %v940, 0
    %949 = vmatprep.subr.mxu0 0.0
    %950 = vmatpush1.xpose.msra.mxu0 0.0
    %951 = vmatprep.subr.mxu0 0.0
    %952 = vmatpush1.xpose.msra.mxu0 0.0
    %953 = vmatprep.subr.mxu0 0.0
    %954 = vmatpush1.xpose.msra.mxu0 0.0
    %955 = vmatprep.subr.mxu0 0.0
    %956 = vmatpush1.xpose.msra.mxu0 0.0
    %957 = vmatprep.subr.mxu0 0.0
    %958 = vmatpush1.xpose.msra.mxu0 0.0
    %959 = vmatprep.subr.mxu0 0.0
    %960 = vmatpush1.xpose.msra.mxu0 0.0
    %961 = vmatprep.subr.mxu0 0.0
    %962 = vmatpush1.xpose.msra.mxu0 0.0
    %963 = vmatprep.subr.mxu0 0.0
    %964 = vmatpush1.xpose.msra.mxu0 0.0
    %965 = vmatprep.subr.mxu0 0.0
    %966 = vmatpush1.xpose.msra.mxu0 0.0
    %967 = vmatprep.subr.mxu0 0.0
    %968 = vmatpush1.xpose.msra.mxu0 0.0
    %969 = vmatprep.subr.mxu0 0.0
    %970 = vmatpush1.xpose.msra.mxu0 0.0
    %971 = vmatprep.subr.mxu0 0.0
    %972 = vmatpush1.xpose.msra.mxu0 0.0
    %973 = vmatprep.subr.mxu0 0.0
    %974 = vmatpush1.xpose.msra.mxu0 0.0
    %975 = vmatprep.subr.mxu0 0.0
    %976 = vmatpush1.xpose.msra.mxu0 0.0
    %977 = vmatprep.subr.mxu0 0.0
    %978 = vmatpush1.xpose.msra.mxu0 %v947
    %979 = vmatprep.subr.mxu0 0.0
    %980 = vmatpush1.xpose.msra.mxu0 %v945
    %981 = vmatprep.subr.mxu0 0.0
    %982 = vmatpush2.xpose.msra.mxu0 0.0
    %983 = vmatprep.subr.mxu0 0.0
    %984 = vmatpush2.xpose.msra.mxu0 0.0
    %985 = vmatprep.subr.mxu0 0.0
    %986 = vmatpush2.xpose.msra.mxu0 0.0
    %987 = vmatprep.subr.mxu0 0.0
    %988 = vmatpush2.xpose.msra.mxu0 0.0
    %989 = vmatprep.subr.mxu0 0.0
    %990 = vmatpush2.xpose.msra.mxu0 0.0
    %991 = vmatprep.subr.mxu0 0.0
    %992 = vmatpush2.xpose.msra.mxu0 0.0
    %993 = vmatprep.subr.mxu0 0.0
    %994 = vmatpush2.xpose.msra.mxu0 0.0
    %995 = vmatprep.subr.mxu0 0.0
    %996 = vmatpush2.xpose.msra.mxu0 0.0
    %997 = vmatprep.subr.mxu0 0.0
    %998 = vmatpush2.xpose.msra.mxu0 0.0
    %999 = vmatprep.subr.mxu0 0.0
    %1000 = vmatpush2.xpose.msra.mxu0 0.0
    %1001 = vmatprep.subr.mxu0 0.0
    %1002 = vmatpush2.xpose.msra.mxu0 0.0
    %1003 = vmatprep.subr.mxu0 0.0
    %1004 = vmatpush2.xpose.msra.mxu0 0.0
    %1005 = vmatprep.subr.mxu0 0.0
    %1006 = vmatpush2.xpose.msra.mxu0 0.0
    %1007 = vmatprep.subr.mxu0 0.0
    %1008 = vmatpush2.xpose.msra.mxu0 0.0
    %1009 = vmatprep.subr.mxu0 0.0
    %1010 = vmatpush2.xpose.msra.mxu0 0.0
    %1011 = vmatprep.subr.mxu0 0.0
    %1012 = vmatpush2.xpose.msra.mxu0 0.0
    %1013 = vmatprep.mubr.f32.mxu0 0.0
    %1014 = vmatmul.mubr.f32.gmra.mxu0 %v941
    %v1015 = vpop.f32.mrf.mxu0
    %v1016 = vadd.f32 0.0, %v1015
    %v1017 = vpop.f32.mrf.mxu0
    %1018 = vmatprep.mubr.f32.mxu0 0.0
    %1019 = vmatmul.mubr.f32.gmra.mxu0 %v943
    %v1020 = vpop.f32.mrf.mxu0
    %v1021 = vadd.f32 0.0, %v1020
    %v1022 = vpop.f32.mrf.mxu0
    %1023 = vdwg.mxu0
    %v1024 = vmul.f32 %v1016, 0.17677669
    %v1025 = vmul.f32 %v1021, 0.17677669
    %v1026 = vsel %vm423, %v1024, -inf
    %1027 = vmax.xlane.f32.xlu0 %v1026
    %v1028 = vpop.xlane.xlu0 %1027
    %v1029 = vsel %vm423, %v1025, -inf
    %1030 = vmax.xlane.f32.xlu0 %v1029
    %v1031 = vpop.xlane.xlu0 %1030
    %v1032 = vsub.f32 %v1024, %v1028
    %v1033 = vsub.f32 %v1025, %v1031
    %v1034 = vmul.f32 %v1032, 1.442695
    %v1035 = vpow.pop %v1034
    %v1036 = vmul.f32 %v1033, 1.442695
    %v1037 = vpow.pop %v1036
    %v1038 = vsel %vm423, %v1035, 0.0
    %1039 = vadd.xlane.f32.xlu0 %v1038
    %v1040 = vpop.xlane.xlu0 %1039
    %v1041 = vsel %vm423, %v1037, 0.0
    %1042 = vadd.xlane.f32.xlu0 %v1041
    %v1043 = vpop.xlane.xlu0 %1042
    %v1044 = vrcp.pop %v1040
    %v1045 = vmul.f32 %v1035, %v1044
    %v1046 = vrcp.pop %v1043
    %v1047 = vmul.f32 %v1037, %v1046
    %1048 = vrot.lane.b32.xlu0 %v325, 32
    %v1049 = vpop.permute.xlu0 %1048
    %1050 = vrot.lane.b32.xlu0 %v330, 32
    %v1051 = vpop.permute.xlu0 %1050
    %v1055 = vsel %vm423, %v1045, 0
    %v1058 = vsel %vm423, %v1047, 0
    %1060 = vmatprep.subr.mxu0 0.0
    %1061 = vmatpush1.msra.mxu0 0.0
    %1062 = vmatprep.subr.mxu0 0.0
    %1063 = vmatpush1.msra.mxu0 0.0
    %1064 = vmatprep.subr.mxu0 0.0
    %1065 = vmatpush1.msra.mxu0 0.0
    %1066 = vmatprep.subr.mxu0 0.0
    %1067 = vmatpush1.msra.mxu0 0.0
    %1068 = vmatprep.subr.mxu0 0.0
    %1069 = vmatpush1.msra.mxu0 0.0
    %1070 = vmatprep.subr.mxu0 0.0
    %1071 = vmatpush1.msra.mxu0 0.0
    %1072 = vmatprep.subr.mxu0 0.0
    %1073 = vmatpush1.msra.mxu0 0.0
    %1074 = vmatprep.subr.mxu0 0.0
    %1075 = vmatpush1.msra.mxu0 0.0
    %1076 = vmatprep.subr.mxu0 0.0
    %1077 = vmatpush1.msra.mxu0 0.0
    %1078 = vmatprep.subr.mxu0 0.0
    %1079 = vmatpush1.msra.mxu0 0.0
    %1080 = vmatprep.subr.mxu0 0.0
    %1081 = vmatpush1.msra.mxu0 0.0
    %1082 = vmatprep.subr.mxu0 0.0
    %1083 = vmatpush1.msra.mxu0 0.0
    %1084 = vmatprep.subr.mxu0 0.0
    %1085 = vmatpush1.msra.mxu0 0.0
    %1086 = vmatprep.subr.mxu0 0.0
    %1087 = vmatpush1.msra.mxu0 0.0
    %1088 = vmatprep.subr.mxu0 0.0
    %1089 = vmatpush1.msra.mxu0 %v1051
    %1090 = vmatprep.subr.mxu0 0.0
    %1091 = vmatpush1.msra.mxu0 %v1049
    %1092 = vmatprep.subr.mxu0 0.0
    %1093 = vmatpush2.msra.mxu0 0.0
    %1094 = vmatprep.subr.mxu0 0.0
    %1095 = vmatpush2.msra.mxu0 0.0
    %1096 = vmatprep.subr.mxu0 0.0
    %1097 = vmatpush2.msra.mxu0 0.0
    %1098 = vmatprep.subr.mxu0 0.0
    %1099 = vmatpush2.msra.mxu0 0.0
    %1100 = vmatprep.subr.mxu0 0.0
    %1101 = vmatpush2.msra.mxu0 0.0
    %1102 = vmatprep.subr.mxu0 0.0
    %1103 = vmatpush2.msra.mxu0 0.0
    %1104 = vmatprep.subr.mxu0 0.0
    %1105 = vmatpush2.msra.mxu0 0.0
    %1106 = vmatprep.subr.mxu0 0.0
    %1107 = vmatpush2.msra.mxu0 0.0
    %1108 = vmatprep.subr.mxu0 0.0
    %1109 = vmatpush2.msra.mxu0 0.0
    %1110 = vmatprep.subr.mxu0 0.0
    %1111 = vmatpush2.msra.mxu0 0.0
    %1112 = vmatprep.subr.mxu0 0.0
    %1113 = vmatpush2.msra.mxu0 0.0
    %1114 = vmatprep.subr.mxu0 0.0
    %1115 = vmatpush2.msra.mxu0 0.0
    %1116 = vmatprep.subr.mxu0 0.0
    %1117 = vmatpush2.msra.mxu0 0.0
    %1118 = vmatprep.subr.mxu0 0.0
    %1119 = vmatpush2.msra.mxu0 0.0
    %1120 = vmatprep.subr.mxu0 0.0
    %1121 = vmatpush2.msra.mxu0 0.0
    %1122 = vmatprep.subr.mxu0 0.0
    %1123 = vmatpush2.msra.mxu0 0.0
    %1124 = vmatprep.mubr.f32.mxu0 0.0
    %1125 = vmatmul.mubr.f32.gmra.mxu0 %v1055
    %v1126 = vpop.f32.mrf.mxu0
    %v1127 = vadd.f32 0.0, %v1126
    %v1128 = vpop.f32.mrf.mxu0
    %1129 = vmatprep.mubr.f32.mxu0 0.0
    %1130 = vmatmul.mubr.f32.gmra.mxu0 %v1058
    %v1131 = vpop.f32.mrf.mxu0
    %v1132 = vadd.f32 0.0, %v1131
    %v1133 = vpop.f32.mrf.mxu0
    %1134 = vdwg.mxu0
    %1137 = vrot.lane.b32.xlu0 %v723, 32
    %v1138 = vpop.permute.xlu0 %1137
    %1139 = vrot.lane.b32.xlu0 %v728, 32
    %v1140 = vpop.permute.xlu0 %1139
    %1145 = vrot.lane.b32.xlu0 %v925, 64
    %v1146 = vpop.permute.xlu0 %1145
    %1147 = vrot.lane.b32.xlu0 %v930, 64
    %v1148 = vpop.permute.xlu0 %1147
    %1153 = vrot.lane.b32.xlu0 %v1127, 96
    %v1154 = vpop.permute.xlu0 %1153
    %1155 = vrot.lane.b32.xlu0 %v1132, 96
    %v1156 = vpop.permute.xlu0 %1155
    %v1159 = vsel %vm333, %v519, %v1138
    %v1160 = vsel %vm333, %v524, %v1140
    %vm1161 = vcmask 523264
    %v1162 = vsel %vm1161, %v1159, %v1146
    %v1163 = vsel %vm1161, %v1160, %v1148
    %vm1164 = vcmask 785408
    %v1165 = vsel %vm1164, %v1162, %v1154
    %v1166 = vsel %vm1164, %v1163, %v1156
    %1167 = vst [vmem:[%s4] sm:$0xff] %v1165
    %1168 = vst [vmem:[%s4 + $0x8] sm:$0xff] %v1166
    // Predicated region
    $region30: #{feature_encoder_forward.5} parent=1 // pred_check
      _
    $region31: #{feature_encoder_forward.5} parent=1 // pred_check_branch
      %1170 = sbr.rel (0) target = $region33
    $region32: #{feature_encoder_forward.5} parent=1 // pred_region
      _
    $region33: #{feature_encoder_forward.5} parent=1 // pred_fallthru
      _
    // Predicated region
    $region34: #{feature_encoder_forward.5} parent=1 // pred_check
      _
    $region35: #{feature_encoder_forward.5} parent=1 // pred_check_branch
      %1172 = sbr.rel (0) target = $region37
    $region36: #{feature_encoder_forward.5} parent=1 // pred_region
      _
    $region37: #{feature_encoder_forward.5} parent=1 // pred_fallthru
      _
    %1173 = vsyncpa [#allocation3], 1
    %1174 = vsyncpa [#allocation5], 1

// kernel: feature_encoder_forward.9
$region0: #{feature_encoder_forward.9}
  #allocation0 [shape = 'u32[]', space=smem, size = 0x4, offset = 0x4, fixed_abs, tag = 'smem constant byte address 0x4 - core index']
  #allocation1 [shape = 'u32[144,128]{1,0:T(1,128)}', space=vmem, size = 0x12000, scoped, tag = 'internal scratch']
  %s0 = inlined_call_operand.vmem [shape: f32[16,128], index: 0, kind: input, shape index: {}]
  %s1 = inlined_call_operand.vmem [shape: f32[1,128], index: 1, kind: input, shape index: {}]
  %s2 = inlined_call_operand.vmem [shape: f32[1,128], index: 2, kind: input, shape index: {}]
  %s3 = inlined_call_operand.vmem [shape: f32[128,64], index: 3, kind: input, shape index: {}]
  %s4 = inlined_call_operand.vmem [shape: f32[1,64], index: 4, kind: input, shape index: {}]
  %s5 = inlined_call_operand.vmem [shape: f32[1,64], index: 5, kind: input, shape index: {}]
  %s6 = inlined_call_operand.vmem [shape: f32[1,64], index: 6, kind: input, shape index: {}]
  %s7 = inlined_call_operand.vmem [shape: f32[64,32], index: 7, kind: input, shape index: {}]
  %s8 = inlined_call_operand.vmem [shape: f32[1,32], index: 8, kind: input, shape index: {}]
  %s9 = inlined_call_operand.vmem [shape: f32[32,64], index: 9, kind: input, shape index: {}]
  %s10 = inlined_call_operand.vmem [shape: f32[1,64], index: 10, kind: input, shape index: {}]
  %s11 = inlined_call_operand.vmem [shape: f32[1,64], index: 11, kind: input, shape index: {}]
  %s12 = inlined_call_operand.vmem [shape: f32[1,64], index: 12, kind: input, shape index: {}]
  %s13 = inlined_call_operand.vmem [shape: f32[64,128], index: 13, kind: input, shape index: {}]
  %s14 = inlined_call_operand.vmem [shape: f32[1,128], index: 14, kind: input, shape index: {}]
  %s15 = inlined_call_operand.hbm [shape: f32[16,128], index: 15, kind: output, shape index: {0}]
  %s16 = inlined_call_operand.hbm [shape: f32[16,64], index: 16, kind: output, shape index: {1}]
  %s17 = inlined_call_operand.hbm [shape: f32[16,32], index: 17, kind: output, shape index: {2}]
  %s18 = inlined_call_operand.hbm [shape: f32[16,128], index: 18, kind: output, shape index: {3}]
  %19 = xla_tuple %s15, %s16, %s17, %s18
  %s20 = sld [smem:[#allocation0]]
  $region94: #{feature_encoder_forward.9} parent=0
    _
  %s22 = ssub.s32 1, %s20
  %s23 = scalar_select 0, %s22, %s20
  $region1: #{feature_encoder_forward.9} parent=0
    #allocation2 [shape = 'u8[8192]{0}', space=vmem, size = 0x2000, scoped, tag = 'output window, operand 0, single buffered']
    #allocation3 [shape = 's32[1]{0}', space=sflag, size = 0x4, scoped, tag = 'scoped memory for feature_encoder_forward.9']
    #allocation4 [shape = 'u8[8192]{0}', space=vmem, size = 0x2000, scoped, tag = 'output window, operand 1, single buffered']
    #allocation5 [shape = 's32[1]{0}', space=sflag, size = 0x4, scoped, tag = 'scoped memory for feature_encoder_forward.9']
    #allocation6 [shape = 'u8[8192]{0}', space=vmem, size = 0x2000, scoped, tag = 'output window, operand 2, single buffered']
    #allocation7 [shape = 'u8[8192]{0}', space=vmem, size = 0x2000, scoped, tag = 'output window, operand 3, single buffered']
    #allocation8 [shape = 's32[1]{0}', space=sflag, size = 0x4, scoped, tag = 'scoped memory for feature_encoder_forward.9']
    %24 = vsyncpa [#allocation3], 0
    %25 = vsyncpa [#allocation5], 0
    %26 = vsyncpa [#allocation8], 0
    // Predicated region
    $region2: #{feature_encoder_forward.9} parent=1 // pred_check
      _
    $region3: #{feature_encoder_forward.9} parent=1 // pred_check_branch
      %28 = sbr.rel (0) target = $region5
    $region4: #{feature_encoder_forward.9} parent=1 // pred_region
      _
    $region5: #{feature_encoder_forward.9} parent=1 // pred_fallthru
      _
    // Predicated region
    $region6: #{feature_encoder_forward.9} parent=1 // pred_check
      _
    $region7: #{feature_encoder_forward.9} parent=1 // pred_check_branch
      %30 = sbr.rel (0) target = $region9
    $region8: #{feature_encoder_forward.9} parent=1 // pred_region
      _
    $region9: #{feature_encoder_forward.9} parent=1 // pred_fallthru
      _
    // Predicated region
    $region10: #{feature_encoder_forward.9} parent=1 // pred_check
      _
    $region11: #{feature_encoder_forward.9} parent=1 // pred_check_branch
      %32 = sbr.rel (0) target = $region13
    $region12: #{feature_encoder_forward.9} parent=1 // pred_region
      _
    $region13: #{feature_encoder_forward.9} parent=1 // pred_fallthru
      _
    // Predicated region
    $region14: #{feature_encoder_forward.9} parent=1 // pred_check
      _
    $region15: #{feature_encoder_forward.9} parent=1 // pred_check_branch
      %34 = sbr.rel (0) target = $region17
    $region16: #{feature_encoder_forward.9} parent=1 // pred_region
      _
    $region17: #{feature_encoder_forward.9} parent=1 // pred_fallthru
      _
    // Predicated region
    $region18: #{feature_encoder_forward.9} parent=1 // pred_check
      _
    $region19: #{feature_encoder_forward.9} parent=1 // pred_check_branch
      %36 = sbr.rel (0) target = $region21
    $region20: #{feature_encoder_forward.9} parent=1 // pred_region
      _
    $region21: #{feature_encoder_forward.9} parent=1 // pred_fallthru
      _
    // Predicated region
    $region22: #{feature_encoder_forward.9} parent=1 // pred_check
      _
    $region23: #{feature_encoder_forward.9} parent=1 // pred_check_branch
      %38 = sbr.rel (0) target = $region25
    $region24: #{feature_encoder_forward.9} parent=1 // pred_region
      _
    $region25: #{feature_encoder_forward.9} parent=1 // pred_fallthru
      _
    // Predicated region
    $region26: #{feature_encoder_forward.9} parent=1 // pred_check
      _
    $region27: #{feature_encoder_forward.9} parent=1 // pred_check_branch
      %40 = sbr.rel (0) target = $region29
    $region28: #{feature_encoder_forward.9} parent=1 // pred_region
      _
    $region29: #{feature_encoder_forward.9} parent=1 // pred_fallthru
      _
    // Predicated region
    $region30: #{feature_encoder_forward.9} parent=1 // pred_check
      _
    $region31: #{feature_encoder_forward.9} parent=1 // pred_check_branch
      %42 = sbr.rel (0) target = $region33
    $region32: #{feature_encoder_forward.9} parent=1 // pred_region
      _
    $region33: #{feature_encoder_forward.9} parent=1 // pred_fallthru
      _
    // Predicated region
    $region34: #{feature_encoder_forward.9} parent=1 // pred_check
      _
    $region35: #{feature_encoder_forward.9} parent=1 // pred_check_branch
      %44 = sbr.rel (0) target = $region37
    $region36: #{feature_encoder_forward.9} parent=1 // pred_region
      _
    $region37: #{feature_encoder_forward.9} parent=1 // pred_fallthru
      _
    // Predicated region
    $region38: #{feature_encoder_forward.9} parent=1 // pred_check
      _
    $region39: #{feature_encoder_forward.9} parent=1 // pred_check_branch
      %46 = sbr.rel (0) target = $region41
    $region40: #{feature_encoder_forward.9} parent=1 // pred_region
      _
    $region41: #{feature_encoder_forward.9} parent=1 // pred_fallthru
      _
    // Predicated region
    $region42: #{feature_encoder_forward.9} parent=1 // pred_check
      _
    $region43: #{feature_encoder_forward.9} parent=1 // pred_check_branch
      %48 = sbr.rel (0) target = $region45
    $region44: #{feature_encoder_forward.9} parent=1 // pred_region
      _
    $region45: #{feature_encoder_forward.9} parent=1 // pred_fallthru
      _
    // Predicated region
    $region46: #{feature_encoder_forward.9} parent=1 // pred_check
      _
    $region47: #{feature_encoder_forward.9} parent=1 // pred_check_branch
      %50 = sbr.rel (0) target = $region49
    $region48: #{feature_encoder_forward.9} parent=1 // pred_region
      _
    $region49: #{feature_encoder_forward.9} parent=1 // pred_fallthru
      _
    // Predicated region
    $region50: #{feature_encoder_forward.9} parent=1 // pred_check
      _
    $region51: #{feature_encoder_forward.9} parent=1 // pred_check_branch
      %52 = sbr.rel (0) target = $region53
    $region52: #{feature_encoder_forward.9} parent=1 // pred_region
      _
    $region53: #{feature_encoder_forward.9} parent=1 // pred_fallthru
      _
    // Predicated region
    $region54: #{feature_encoder_forward.9} parent=1 // pred_check
      _
    $region55: #{feature_encoder_forward.9} parent=1 // pred_check_branch
      %54 = sbr.rel (0) target = $region57
    $region56: #{feature_encoder_forward.9} parent=1 // pred_region
      _
    $region57: #{feature_encoder_forward.9} parent=1 // pred_fallthru
      _
    // Predicated region
    $region58: #{feature_encoder_forward.9} parent=1 // pred_check
      _
    $region59: #{feature_encoder_forward.9} parent=1 // pred_check_branch
      %56 = sbr.rel (0) target = $region61
    $region60: #{feature_encoder_forward.9} parent=1 // pred_region
      _
    $region61: #{feature_encoder_forward.9} parent=1 // pred_fallthru
      _
    %v57 = vld [vmem:[%s0] sm:$0xff]
    %v58 = vld [vmem:[%s0 + $0x8] sm:$0xff]
    %v59 = vld [vmem:[%s1] sm:$0x1]
    %v60 = vld [vmem:[%s2] sm:$0x1]
    %61 = vadd.xlane.f32.xlu0 %v57
    %v62 = vpop.xlane.xlu0 %61
    %63 = vadd.xlane.f32.xlu0 %v58
    %v64 = vpop.xlane.xlu0 %63
    %v65 = vrcp.pop 128.0
    %v66 = vmul.f32 %v62, %v65
    %v67 = vmul.f32 %v64, %v65
    %v68 = vsub.f32 %v57, %v66
    %v69 = vsub.f32 %v58, %v67
    %v70 = vmul.f32 %v68, %v68
    %v71 = vmul.f32 %v69, %v69
    %72 = vadd.xlane.f32.xlu0 %v70
    %v73 = vpop.xlane.xlu0 %72
    %74 = vadd.xlane.f32.xlu0 %v71
    %v75 = vpop.xlane.xlu0 %74
    %v76 = vmul.f32 %v73, %v65
    %v77 = vmul.f32 %v75, %v65
    %v78 = vadd.f32 %v76, 1e-05
    %v79 = vadd.f32 %v77, 1e-05
    %v80 = vrsqrt.pop %v78
    %v81 = vrsqrt.pop %v79
    %v82 = vmul.f32 %v68, %v80
    %v83 = vmul.f32 %v69, %v81
    %v85 = vlaneseq
    %v86 = vshrl.u32 %v85, 7
    %v87 = vsub.s32 0, %v86
    %v88 = vrot.slane %v59, %v87
    %v90 = vmul.f32 %v82, %v88
    %v91 = vmul.f32 %v83, %v88
    %v93 = vlaneseq
    %v94 = vshrl.u32 %v93, 7
    %v95 = vsub.s32 0, %v94
    %v96 = vrot.slane %v60, %v95
    %v98 = vadd.f32 %v90, %v96
    %v99 = vadd.f32 %v91, %v96
    %100 = vst [vmem:[#allocation2] sm:$0xff] %v98
    %101 = vst [vmem:[#allocation2 + $0x8] sm:$0xff] %v99
    %v102 = vld [vmem:[%s3] sm:$0xff]
    %v103 = vld [vmem:[%s3 + $0x8] sm:$0xff]
    %v104 = vld [vmem:[%s3 + $0x10] sm:$0xff]
    %v105 = vld [vmem:[%s3 + $0x18] sm:$0xff]
    %v106 = vld [vmem:[%s3 + $0x20] sm:$0xff]
    %v107 = vld [vmem:[%s3 + $0x28] sm:$0xff]
    %v108 = vld [vmem:[%s3 + $0x30] sm:$0xff]
    %v109 = vld [vmem:[%s3 + $0x38] sm:$0xff]
    %v110 = vld [vmem:[%s3 + $0x40] sm:$0xff]
    %v111 = vld [vmem:[%s3 + $0x48] sm:$0xff]
    %v112 = vld [vmem:[%s3 + $0x50] sm:$0xff]
    %v113 = vld [vmem:[%s3 + $0x58] sm:$0xff]
    %v114 = vld [vmem:[%s3 + $0x60] sm:$0xff]
    %v115 = vld [vmem:[%s3 + $0x68] sm:$0xff]
    %v116 = vld [vmem:[%s3 + $0x70] sm:$0xff]
    %v117 = vld [vmem:[%s3 + $0x78] sm:$0xff]
    %v118 = vld [vmem:[%s4] sm:$0x1]
    %v120 = vlaneseq
    %v121 = vshrl.u32 %v120, 7
    %v122 = vsub.s32 0, %v121
    %v123 = vrot.slane %v118, %v122
    %125 = vmatprep.subr.mxu0 0.0
    %126 = vmatpush1.msra.mxu0 %v117
    %127 = vmatprep.subr.mxu0 0.0
    %128 = vmatpush1.msra.mxu0 %v116
    %129 = vmatprep.subr.mxu0 0.0
    %130 = vmatpush1.msra.mxu0 %v115
    %131 = vmatprep.subr.mxu0 0.0
    %132 = vmatpush1.msra.mxu0 %v114
    %133 = vmatprep.subr.mxu0 0.0
    %134 = vmatpush1.msra.mxu0 %v113
    %135 = vmatprep.subr.mxu0 0.0
    %136 = vmatpush1.msra.mxu0 %v112
    %137 = vmatprep.subr.mxu0 0.0
    %138 = vmatpush1.msra.mxu0 %v111
    %139 = vmatprep.subr.mxu0 0.0
    %140 = vmatpush1.msra.mxu0 %v110
    %141 = vmatprep.subr.mxu0 0.0
    %142 = vmatpush1.msra.mxu0 %v109
    %143 = vmatprep.subr.mxu0 0.0
    %144 = vmatpush1.msra.mxu0 %v108
    %145 = vmatprep.subr.mxu0 0.0
    %146 = vmatpush1.msra.mxu0 %v107
    %147 = vmatprep.subr.mxu0 0.0
    %148 = vmatpush1.msra.mxu0 %v106
    %149 = vmatprep.subr.mxu0 0.0
    %150 = vmatpush1.msra.mxu0 %v105
    %151 = vmatprep.subr.mxu0 0.0
    %152 = vmatpush1.msra.mxu0 %v104
    %153 = vmatprep.subr.mxu0 0.0
    %154 = vmatpush1.msra.mxu0 %v103
    %155 = vmatprep.subr.mxu0 0.0
    %156 = vmatpush1.msra.mxu0 %v102
    %157 = vmatprep.subr.mxu0 0.0
    %158 = vmatpush2.msra.mxu0 0.0
    %159 = vmatprep.subr.mxu0 0.0
    %160 = vmatpush2.msra.mxu0 0.0
    %161 = vmatprep.subr.mxu0 0.0
    %162 = vmatpush2.msra.mxu0 0.0
    %163 = vmatprep.subr.mxu0 0.0
    %164 = vmatpush2.msra.mxu0 0.0
    %165 = vmatprep.subr.mxu0 0.0
    %166 = vmatpush2.msra.mxu0 0.0
    %167 = vmatprep.subr.mxu0 0.0
    %168 = vmatpush2.msra.mxu0 0.0
    %169 = vmatprep.subr.mxu0 0.0
    %170 = vmatpush2.msra.mxu0 0.0
    %171 = vmatprep.subr.mxu0 0.0
    %172 = vmatpush2.msra.mxu0 0.0
    %173 = vmatprep.subr.mxu0 0.0
    %174 = vmatpush2.msra.mxu0 0.0
    %175 = vmatprep.subr.mxu0 0.0
    %176 = vmatpush2.msra.mxu0 0.0
    %177 = vmatprep.subr.mxu0 0.0
    %178 = vmatpush2.msra.mxu0 0.0
    %179 = vmatprep.subr.mxu0 0.0
    %180 = vmatpush2.msra.mxu0 0.0
    %181 = vmatprep.subr.mxu0 0.0
    %182 = vmatpush2.msra.mxu0 0.0
    %183 = vmatprep.subr.mxu0 0.0
    %184 = vmatpush2.msra.mxu0 0.0
    %185 = vmatprep.subr.mxu0 0.0
    %186 = vmatpush2.msra.mxu0 0.0
    %187 = vmatprep.subr.mxu0 0.0
    %188 = vmatpush2.msra.mxu0 0.0
    %189 = vmatprep.mubr.f32.mxu0 0.0
    %190 = vmatmul.mubr.f32.gmra.mxu0 %v98
    %v191 = vpop.f32.mrf.mxu0
    %v192 = vadd.f32 %v123, %v191
    %v193 = vpop.f32.mrf.mxu0
    %194 = vmatprep.mubr.f32.mxu0 0.0
    %195 = vmatmul.mubr.f32.gmra.mxu0 %v99
    %v196 = vpop.f32.mrf.mxu0
    %v197 = vadd.f32 %v123, %v196
    %v198 = vpop.f32.mrf.mxu0
    %199 = vdwg.mxu0
    %v200 = vmul.f32 %v192, 0.5
    %v201 = vmul.f32 %v197, 0.5
    %v202 = vmul.f32 %v192, 0.70710677
    %v203 = vmul.f32 %v197, 0.70710677
    %v204 = vand.u32 2147483647, %v202
    %v205 = vand.u32 2147483647, %v203
    %v206 = vmul.f32 %v204, 0.3275911
    %v207 = vmul.f32 %v205, 0.3275911
    %v208 = vadd.f32 %v206, 1.0
    %v209 = vadd.f32 %v207, 1.0
    %v210 = vrcp.pop %v208
    %v211 = vmul.f32 1.0, %v210
    %v212 = vrcp.pop %v209
    %v213 = vmul.f32 1.0, %v212
    %v214 = vmul.f32 %v211, 1.0614054
    %v215 = vmul.f32 %v213, 1.0614054
    %v216 = vadd.f32 %v214, -1.4531521
    %v217 = vadd.f32 %v215, -1.4531521
    %v218 = vmul.f32 %v211, %v216
    %v219 = vmul.f32 %v213, %v217
    %v220 = vadd.f32 %v218, 1.4214138
    %v221 = vadd.f32 %v219, 1.4214138
    %v222 = vmul.f32 %v211, %v220
    %v223 = vmul.f32 %v213, %v221
    %v224 = vadd.f32 %v222, -0.28449672
    %v225 = vadd.f32 %v223, -0.28449672
    %v226 = vmul.f32 %v211, %v224
    %v227 = vmul.f32 %v213, %v225
    %v228 = vadd.f32 %v226, 0.2548296
    %v229 = vadd.f32 %v227, 0.2548296
    %v230 = vmul.f32 %v211, %v228
    %v231 = vmul.f32 %v213, %v229
    %v232 = vsub.f32 0.0, %v204
    %v233 = vsub.f32 0.0, %v205
    %v234 = vmul.f32 %v232, %v204
    %v235 = vmul.f32 %v233, %v205
    %v236 = vmul.f32 %v234, 1.442695
    %v237 = vpow.pop %v236
    %v238 = vmul.f32 %v235, 1.442695
    %v239 = vpow.pop %v238
    %v240 = vmul.f32 %v230, %v237
    %v241 = vmul.f32 %v231, %v239
    %v242 = vsub.f32 1.0, %v240
    %v243 = vsub.f32 1.0, %v241
    %vm244 = vcmp.lt.f32.partialorder %v202, 0.0
    %vm245 = vcmp.lt.f32.partialorder %v203, 0.0
    %v246 = vsub.f32 0.0, %v242
    %v247 = vsub.f32 0.0, %v243
    %v248 = vsel %vm244, %v246, %v242
    %v249 = vsel %vm245, %v247, %v243
    %v250 = vadd.f32 %v248, 1.0
    %v251 = vadd.f32 %v249, 1.0
    %v252 = vmul.f32 %v200, %v250
    %v253 = vmul.f32 %v201, %v251
    %v254 = vld [vmem:[%s5] sm:$0x1]
    %v255 = vld [vmem:[%s6] sm:$0x1]
    %vm256 = vcmask 523264
    %v257 = vsel %vm256, %v252, 0.0
    %v258 = vsel %vm256, %v253, 0.0
    %v259 = vadd.f32 %v257, %v258
    %v260 = vrot.slane %v259, 4
    %v261 = vadd.f32 %v259, %v260
    %v262 = vrot.slane %v261, 2
    %v263 = vadd.f32 %v261, %v262
    %v264 = vrot.slane %v263, 1
    %v265 = vadd.f32 %v263, %v264
    %v266 = vrcp.pop 16.0
    %v267 = vmul.f32 %v265, %v266
    %v268 = vsub.f32 %v252, %v267
    %v269 = vsub.f32 %v253, %v267
    %v270 = vmul.f32 %v268, %v268
    %v271 = vmul.f32 %v269, %v269
    %v272 = vsel %vm256, %v270, 0.0
    %v273 = vsel %vm256, %v271, 0.0
    %v274 = vadd.f32 %v272, %v273
    %v275 = vrot.slane %v274, 4
    %v276 = vadd.f32 %v274, %v275
    %v277 = vrot.slane %v276, 2
    %v278 = vadd.f32 %v276, %v277
    %v279 = vrot.slane %v278, 1
    %v280 = vadd.f32 %v278, %v279
    %v281 = vmul.f32 %v280, %v266
    %v282 = vadd.f32 %v281, 1e-05
    %v283 = vrsqrt.pop %v282
    %v284 = vmul.f32 %v268, %v283
    %v285 = vmul.f32 %v269, %v283
    %v287 = vlaneseq
    %v288 = vshrl.u32 %v287, 7
    %v289 = vsub.s32 0, %v288
    %v290 = vrot.slane %v254, %v289
    %v292 = vmul.f32 %v284, %v290
    %v293 = vmul.f32 %v285, %v290
    %v295 = vlaneseq
    %v296 = vshrl.u32 %v295, 7
    %v297 = vsub.s32 0, %v296
    %v298 = vrot.slane %v255, %v297
    %v300 = vadd.f32 %v292, %v298
    %v301 = vadd.f32 %v293, %v298
    %302 = vst.msk [vmem:[#allocation4] sm:$0xff] %vm256, %v300
    %303 = vst.msk [vmem:[#allocation4 + $0x8] sm:$0xff] %vm256, %v301
    %v304 = vld [vmem:[%s7] sm:$0xff]
    %v305 = vld [vmem:[%s7 + $0x8] sm:$0xff]
    %v306 = vld [vmem:[%s7 + $0x10] sm:$0xff]
    %v307 = vld [vmem:[%s7 + $0x18] sm:$0xff]
    %v308 = vld [vmem:[%s7 + $0x20] sm:$0xff]
    %v309 = vld [vmem:[%s7 + $0x28] sm:$0xff]
    %v310 = vld [vmem:[%s7 + $0x30] sm:$0xff]
    %v311 = vld [vmem:[%s7 + $0x38] sm:$0xff]
    %v312 = vld [vmem:[%s8] sm:$0x1]
    %v314 = vlaneseq
    %v315 = vshrl.u32 %v314, 7
    %v316 = vsub.s32 0, %v315
    %v317 = vrot.slane %v312, %v316
    %v320 = vsel %vm256, %v300, 0
    %v323 = vsel %vm256, %v301, 0
    %325 = vmatprep.subr.mxu0 0.0
    %326 = vmatpush1.msra.mxu0 0.0
    %327 = vmatprep.subr.mxu0 0.0
    %328 = vmatpush1.msra.mxu0 0.0
    %329 = vmatprep.subr.mxu0 0.0
    %330 = vmatpush1.msra.mxu0 0.0
    %331 = vmatprep.subr.mxu0 0.0
    %332 = vmatpush1.msra.mxu0 0.0
    %333 = vmatprep.subr.mxu0 0.0
    %334 = vmatpush1.msra.mxu0 0.0
    %335 = vmatprep.subr.mxu0 0.0
    %336 = vmatpush1.msra.mxu0 0.0
    %337 = vmatprep.subr.mxu0 0.0
    %338 = vmatpush1.msra.mxu0 0.0
    %339 = vmatprep.subr.mxu0 0.0
    %340 = vmatpush1.msra.mxu0 0.0
    %341 = vmatprep.subr.mxu0 0.0
    %342 = vmatpush1.msra.mxu0 %v311
    %343 = vmatprep.subr.mxu0 0.0
    %344 = vmatpush1.msra.mxu0 %v310
    %345 = vmatprep.subr.mxu0 0.0
    %346 = vmatpush1.msra.mxu0 %v309
    %347 = vmatprep.subr.mxu0 0.0
    %348 = vmatpush1.msra.mxu0 %v308
    %349 = vmatprep.subr.mxu0 0.0
    %350 = vmatpush1.msra.mxu0 %v307
    %351 = vmatprep.subr.mxu0 0.0
    %352 = vmatpush1.msra.mxu0 %v306
    %353 = vmatprep.subr.mxu0 0.0
    %354 = vmatpush1.msra.mxu0 %v305
    %355 = vmatprep.subr.mxu0 0.0
    %356 = vmatpush1.msra.mxu0 %v304
    %357 = vmatprep.subr.mxu0 0.0
    %358 = vmatpush2.msra.mxu0 0.0
    %359 = vmatprep.subr.mxu0 0.0
    %360 = vmatpush2.msra.mxu0 0.0
    %361 = vmatprep.subr.mxu0 0.0
    %362 = vmatpush2.msra.mxu0 0.0
    %363 = vmatprep.subr.mxu0 0.0
    %364 = vmatpush2.msra.mxu0 0.0
    %365 = vmatprep.subr.mxu0 0.0
    %366 = vmatpush2.msra.mxu0 0.0
    %367 = vmatprep.subr.mxu0 0.0
    %368 = vmatpush2.msra.mxu0 0.0
    %369 = vmatprep.subr.mxu0 0.0
    %370 = vmatpush2.msra.mxu0 0.0
    %371 = vmatprep.subr.mxu0 0.0
    %372 = vmatpush2.msra.mxu0 0.0
    %373 = vmatprep.subr.mxu0 0.0
    %374 = vmatpush2.msra.mxu0 0.0
    %375 = vmatprep.subr.mxu0 0.0
    %376 = vmatpush2.msra.mxu0 0.0
    %377 = vmatprep.subr.mxu0 0.0
    %378 = vmatpush2.msra.mxu0 0.0
    %379 = vmatprep.subr.mxu0 0.0
    %380 = vmatpush2.msra.mxu0 0.0
    %381 = vmatprep.subr.mxu0 0.0
    %382 = vmatpush2.msra.mxu0 0.0
    %383 = vmatprep.subr.mxu0 0.0
    %384 = vmatpush2.msra.mxu0 0.0
    %385 = vmatprep.subr.mxu0 0.0
    %386 = vmatpush2.msra.mxu0 0.0
    %387 = vmatprep.subr.mxu0 0.0
    %388 = vmatpush2.msra.mxu0 0.0
    %389 = vmatprep.mubr.f32.mxu0 0.0
    %390 = vmatmul.mubr.f32.gmra.mxu0 %v320
    %v391 = vpop.f32.mrf.mxu0
    %v392 = vadd.f32 %v317, %v391
    %v393 = vpop.f32.mrf.mxu0
    %394 = vmatprep.mubr.f32.mxu0 0.0
    %395 = vmatmul.mubr.f32.gmra.mxu0 %v323
    %v396 = vpop.f32.mrf.mxu0
    %v397 = vadd.f32 %v317, %v396
    %v398 = vpop.f32.mrf.mxu0
    %399 = vdwg.mxu0
    %vm400 = vcmask 261120
    %401 = vst.msk [vmem:[#allocation6] sm:$0xff] %vm400, %v392
    %402 = vst.msk [vmem:[#allocation6 + $0x8] sm:$0xff] %vm400, %v397
    %v403 = vmul.f32 %v392, 0.5
    %v404 = vmul.f32 %v397, 0.5
    %v405 = vmul.f32 %v392, 0.70710677
    %v406 = vmul.f32 %v397, 0.70710677
    %v407 = vand.u32 2147483647, %v405
    %v408 = vand.u32 2147483647, %v406
    %v409 = vmul.f32 %v407, 0.3275911
    %v410 = vmul.f32 %v408, 0.3275911
    %v411 = vadd.f32 %v409, 1.0
    %v412 = vadd.f32 %v410, 1.0
    %v413 = vrcp.pop %v411
    %v414 = vmul.f32 1.0, %v413
    %v415 = vrcp.pop %v412
    %v416 = vmul.f32 1.0, %v415
    %v417 = vmul.f32 %v414, 1.0614054
    %v418 = vmul.f32 %v416, 1.0614054
    %v419 = vadd.f32 %v417, -1.4531521
    %v420 = vadd.f32 %v418, -1.4531521
    %v421 = vmul.f32 %v414, %v419
    %v422 = vmul.f32 %v416, %v420
    %v423 = vadd.f32 %v421, 1.4214138
    %v424 = vadd.f32 %v422, 1.4214138
    %v425 = vmul.f32 %v414, %v423
    %v426 = vmul.f32 %v416, %v424
    %v427 = vadd.f32 %v425, -0.28449672
    %v428 = vadd.f32 %v426, -0.28449672
    %v429 = vmul.f32 %v414, %v427
    %v430 = vmul.f32 %v416, %v428
    %v431 = vadd.f32 %v429, 0.2548296
    %v432 = vadd.f32 %v430, 0.2548296
    %v433 = vmul.f32 %v414, %v431
    %v434 = vmul.f32 %v416, %v432
    %v435 = vsub.f32 0.0, %v407
    %v436 = vsub.f32 0.0, %v408
    %v437 = vmul.f32 %v435, %v407
    %v438 = vmul.f32 %v436, %v408
    %v439 = vmul.f32 %v437, 1.442695
    %v440 = vpow.pop %v439
    %v441 = vmul.f32 %v438, 1.442695
    %v442 = vpow.pop %v441
    %v443 = vmul.f32 %v433, %v440
    %v444 = vmul.f32 %v434, %v442
    %v445 = vsub.f32 1.0, %v443
    %v446 = vsub.f32 1.0, %v444
    %vm447 = vcmp.lt.f32.partialorder %v405, 0.0
    %vm448 = vcmp.lt.f32.partialorder %v406, 0.0
    %v449 = vsub.f32 0.0, %v445
    %v450 = vsub.f32 0.0, %v446
    %v451 = vsel %vm447, %v449, %v445
    %v452 = vsel %vm448, %v450, %v446
    %v453 = vadd.f32 %v451, 1.0
    %v454 = vadd.f32 %v452, 1.0
    %v455 = vmul.f32 %v403, %v453
    %v456 = vmul.f32 %v404, %v454
    %v457 = vld [vmem:[%s9] sm:$0xff]
    %v458 = vld [vmem:[%s9 + $0x8] sm:$0xff]
    %v459 = vld [vmem:[%s9 + $0x10] sm:$0xff]
    %v460 = vld [vmem:[%s9 + $0x18] sm:$0xff]
    %v461 = vld [vmem:[%s10] sm:$0x1]
    %v463 = vlaneseq
    %v464 = vshrl.u32 %v463, 7
    %v465 = vsub.s32 0, %v464
    %v466 = vrot.slane %v461, %v465
    %v469 = vsel %vm400, %v455, 0
    %v472 = vsel %vm400, %v456, 0
    %474 = vmatprep.subr.mxu0 0.0
    %475 = vmatpush1.msra.mxu0 0.0
    %476 = vmatprep.subr.mxu0 0.0
    %477 = vmatpush1.msra.mxu0 0.0
    %478 = vmatprep.subr.mxu0 0.0
    %479 = vmatpush1.msra.mxu0 0.0
    %480 = vmatprep.subr.mxu0 0.0
    %481 = vmatpush1.msra.mxu0 0.0
    %482 = vmatprep.subr.mxu0 0.0
    %483 = vmatpush1.msra.mxu0 0.0
    %484 = vmatprep.subr.mxu0 0.0
    %485 = vmatpush1.msra.mxu0 0.0
    %486 = vmatprep.subr.mxu0 0.0
    %487 = vmatpush1.msra.mxu0 0.0
    %488 = vmatprep.subr.mxu0 0.0
    %489 = vmatpush1.msra.mxu0 0.0
    %490 = vmatprep.subr.mxu0 0.0
    %491 = vmatpush1.msra.mxu0 0.0
    %492 = vmatprep.subr.mxu0 0.0
    %493 = vmatpush1.msra.mxu0 0.0
    %494 = vmatprep.subr.mxu0 0.0
    %495 = vmatpush1.msra.mxu0 0.0
    %496 = vmatprep.subr.mxu0 0.0
    %497 = vmatpush1.msra.mxu0 0.0
    %498 = vmatprep.subr.mxu0 0.0
    %499 = vmatpush1.msra.mxu0 %v460
    %500 = vmatprep.subr.mxu0 0.0
    %501 = vmatpush1.msra.mxu0 %v459
    %502 = vmatprep.subr.mxu0 0.0
    %503 = vmatpush1.msra.mxu0 %v458
    %504 = vmatprep.subr.mxu0 0.0
    %505 = vmatpush1.msra.mxu0 %v457
    %506 = vmatprep.subr.mxu0 0.0
    %507 = vmatpush2.msra.mxu0 0.0
    %508 = vmatprep.subr.mxu0 0.0
    %509 = vmatpush2.msra.mxu0 0.0
    %510 = vmatprep.subr.mxu0 0.0
    %511 = vmatpush2.msra.mxu0 0.0
    %512 = vmatprep.subr.mxu0 0.0
    %513 = vmatpush2.msra.mxu0 0.0
    %514 = vmatprep.subr.mxu0 0.0
    %515 = vmatpush2.msra.mxu0 0.0
    %516 = vmatprep.subr.mxu0 0.0
    %517 = vmatpush2.msra.mxu0 0.0
    %518 = vmatprep.subr.mxu0 0.0
    %519 = vmatpush2.msra.mxu0 0.0
    %520 = vmatprep.subr.mxu0 0.0
    %521 = vmatpush2.msra.mxu0 0.0
    %522 = vmatprep.subr.mxu0 0.0
    %523 = vmatpush2.msra.mxu0 0.0
    %524 = vmatprep.subr.mxu0 0.0
    %525 = vmatpush2.msra.mxu0 0.0
    %526 = vmatprep.subr.mxu0 0.0
    %527 = vmatpush2.msra.mxu0 0.0
    %528 = vmatprep.subr.mxu0 0.0
    %529 = vmatpush2.msra.mxu0 0.0
    %530 = vmatprep.subr.mxu0 0.0
    %531 = vmatpush2.msra.mxu0 0.0
    %532 = vmatprep.subr.mxu0 0.0
    %533 = vmatpush2.msra.mxu0 0.0
    %534 = vmatprep.subr.mxu0 0.0
    %535 = vmatpush2.msra.mxu0 0.0
    %536 = vmatprep.subr.mxu0 0.0
    %537 = vmatpush2.msra.mxu0 0.0
    %538 = vmatprep.mubr.f32.mxu0 0.0
    %539 = vmatmul.mubr.f32.gmra.mxu0 %v469
    %v540 = vpop.f32.mrf.mxu0
    %v541 = vadd.f32 %v466, %v540
    %v542 = vpop.f32.mrf.mxu0
    %543 = vmatprep.mubr.f32.mxu0 0.0
    %544 = vmatmul.mubr.f32.gmra.mxu0 %v472
    %v545 = vpop.f32.mrf.mxu0
    %v546 = vadd.f32 %v466, %v545
    %v547 = vpop.f32.mrf.mxu0
    %548 = vdwg.mxu0
    %v549 = vmul.f32 %v541, 0.5
    %v550 = vmul.f32 %v546, 0.5
    %v551 = vmul.f32 %v541, 0.70710677
    %v552 = vmul.f32 %v546, 0.70710677
    %v553 = vand.u32 2147483647, %v551
    %v554 = vand.u32 2147483647, %v552
    %v555 = vmul.f32 %v553, 0.3275911
    %v556 = vmul.f32 %v554, 0.3275911
    %v557 = vadd.f32 %v555, 1.0
    %v558 = vadd.f32 %v556, 1.0
    %v559 = vrcp.pop %v557
    %v560 = vmul.f32 1.0, %v559
    %v561 = vrcp.pop %v558
    %v562 = vmul.f32 1.0, %v561
    %v563 = vmul.f32 %v560, 1.0614054
    %v564 = vmul.f32 %v562, 1.0614054
    %v565 = vadd.f32 %v563, -1.4531521
    %v566 = vadd.f32 %v564, -1.4531521
    %v567 = vmul.f32 %v560, %v565
    %v568 = vmul.f32 %v562, %v566
    %v569 = vadd.f32 %v567, 1.4214138
    %v570 = vadd.f32 %v568, 1.4214138
    %v571 = vmul.f32 %v560, %v569
    %v572 = vmul.f32 %v562, %v570
    %v573 = vadd.f32 %v571, -0.28449672
    %v574 = vadd.f32 %v572, -0.28449672
    %v575 = vmul.f32 %v560, %v573
    %v576 = vmul.f32 %v562, %v574
    %v577 = vadd.f32 %v575, 0.2548296
    %v578 = vadd.f32 %v576, 0.2548296
    %v579 = vmul.f32 %v560, %v577
    %v580 = vmul.f32 %v562, %v578
    %v581 = vsub.f32 0.0, %v553
    %v582 = vsub.f32 0.0, %v554
    %v583 = vmul.f32 %v581, %v553
    %v584 = vmul.f32 %v582, %v554
    %v585 = vmul.f32 %v583, 1.442695
    %v586 = vpow.pop %v585
    %v587 = vmul.f32 %v584, 1.442695
    %v588 = vpow.pop %v587
    %v589 = vmul.f32 %v579, %v586
    %v590 = vmul.f32 %v580, %v588
    %v591 = vsub.f32 1.0, %v589
    %v592 = vsub.f32 1.0, %v590
    %vm593 = vcmp.lt.f32.partialorder %v551, 0.0
    %vm594 = vcmp.lt.f32.partialorder %v552, 0.0
    %v595 = vsub.f32 0.0, %v591
    %v596 = vsub.f32 0.0, %v592
    %v597 = vsel %vm593, %v595, %v591
    %v598 = vsel %vm594, %v596, %v592
    %v599 = vadd.f32 %v597, 1.0
    %v600 = vadd.f32 %v598, 1.0
    %v601 = vmul.f32 %v549, %v599
    %v602 = vmul.f32 %v550, %v600
    %v603 = vld [vmem:[%s11] sm:$0x1]
    %v604 = vld [vmem:[%s12] sm:$0x1]
    %v605 = vsel %vm256, %v601, 0.0
    %v606 = vsel %vm256, %v602, 0.0
    %v607 = vadd.f32 %v605, %v606
    %v608 = vrot.slane %v607, 4
    %v609 = vadd.f32 %v607, %v608
    %v610 = vrot.slane %v609, 2
    %v611 = vadd.f32 %v609, %v610
    %v612 = vrot.slane %v611, 1
    %v613 = vadd.f32 %v611, %v612
    %v614 = vmul.f32 %v613, %v266
    %v615 = vsub.f32 %v601, %v614
    %v616 = vsub.f32 %v602, %v614
    %v617 = vmul.f32 %v615, %v615
    %v618 = vmul.f32 %v616, %v616
    %v619 = vsel %vm256, %v617, 0.0
    %v620 = vsel %vm256, %v618, 0.0
    %v621 = vadd.f32 %v619, %v620
    %v622 = vrot.slane %v621, 4
    %v623 = vadd.f32 %v621, %v622
    %v624 = vrot.slane %v623, 2
    %v625 = vadd.f32 %v623, %v624
    %v626 = vrot.slane %v625, 1
    %v627 = vadd.f32 %v625, %v626
    %v628 = vmul.f32 %v627, %v266
    %v629 = vadd.f32 %v628, 1e-05
    %v630 = vrsqrt.pop %v629
    %v631 = vmul.f32 %v615, %v630
    %v632 = vmul.f32 %v616, %v630
    %v634 = vlaneseq
    %v635 = vshrl.u32 %v634, 7
    %v636 = vsub.s32 0, %v635
    %v637 = vrot.slane %v603, %v636
    %v639 = vmul.f32 %v631, %v637
    %v640 = vmul.f32 %v632, %v637
    %v642 = vlaneseq
    %v643 = vshrl.u32 %v642, 7
    %v644 = vsub.s32 0, %v643
    %v645 = vrot.slane %v604, %v644
    %v647 = vadd.f32 %v639, %v645
    %v648 = vadd.f32 %v640, %v645
    %v649 = vld [vmem:[%s13] sm:$0xff]
    %v650 = vld [vmem:[%s13 + $0x8] sm:$0xff]
    %v651 = vld [vmem:[%s13 + $0x10] sm:$0xff]
    %v652 = vld [vmem:[%s13 + $0x18] sm:$0xff]
    %v653 = vld [vmem:[%s13 + $0x20] sm:$0xff]
    %v654 = vld [vmem:[%s13 + $0x28] sm:$0xff]
    %v655 = vld [vmem:[%s13 + $0x30] sm:$0xff]
    %v656 = vld [vmem:[%s13 + $0x38] sm:$0xff]
    %v657 = vld [vmem:[%s14] sm:$0x1]
    %v659 = vlaneseq
    %v660 = vshrl.u32 %v659, 7
    %v661 = vsub.s32 0, %v660
    %v662 = vrot.slane %v657, %v661
    %v665 = vsel %vm256, %v647, 0
    %v668 = vsel %vm256, %v648, 0
    %670 = vmatprep.subr.mxu0 0.0
    %671 = vmatpush1.msra.mxu0 0.0
    %672 = vmatprep.subr.mxu0 0.0
    %673 = vmatpush1.msra.mxu0 0.0
    %674 = vmatprep.subr.mxu0 0.0
    %675 = vmatpush1.msra.mxu0 0.0
    %676 = vmatprep.subr.mxu0 0.0
    %677 = vmatpush1.msra.mxu0 0.0
    %678 = vmatprep.subr.mxu0 0.0
    %679 = vmatpush1.msra.mxu0 0.0
    %680 = vmatprep.subr.mxu0 0.0
    %681 = vmatpush1.msra.mxu0 0.0
    %682 = vmatprep.subr.mxu0 0.0
    %683 = vmatpush1.msra.mxu0 0.0
    %684 = vmatprep.subr.mxu0 0.0
    %685 = vmatpush1.msra.mxu0 0.0
    %686 = vmatprep.subr.mxu0 0.0
    %687 = vmatpush1.msra.mxu0 %v656
    %688 = vmatprep.subr.mxu0 0.0
    %689 = vmatpush1.msra.mxu0 %v655
    %690 = vmatprep.subr.mxu0 0.0
    %691 = vmatpush1.msra.mxu0 %v654
    %692 = vmatprep.subr.mxu0 0.0
    %693 = vmatpush1.msra.mxu0 %v653
    %694 = vmatprep.subr.mxu0 0.0
    %695 = vmatpush1.msra.mxu0 %v652
    %696 = vmatprep.subr.mxu0 0.0
    %697 = vmatpush1.msra.mxu0 %v651
    %698 = vmatprep.subr.mxu0 0.0
    %699 = vmatpush1.msra.mxu0 %v650
    %700 = vmatprep.subr.mxu0 0.0
    %701 = vmatpush1.msra.mxu0 %v649
    %702 = vmatprep.subr.mxu0 0.0
    %703 = vmatpush2.msra.mxu0 0.0
    %704 = vmatprep.subr.mxu0 0.0
    %705 = vmatpush2.msra.mxu0 0.0
    %706 = vmatprep.subr.mxu0 0.0
    %707 = vmatpush2.msra.mxu0 0.0
    %708 = vmatprep.subr.mxu0 0.0
    %709 = vmatpush2.msra.mxu0 0.0
    %710 = vmatprep.subr.mxu0 0.0
    %711 = vmatpush2.msra.mxu0 0.0
    %712 = vmatprep.subr.mxu0 0.0
    %713 = vmatpush2.msra.mxu0 0.0
    %714 = vmatprep.subr.mxu0 0.0
    %715 = vmatpush2.msra.mxu0 0.0
    %716 = vmatprep.subr.mxu0 0.0
    %717 = vmatpush2.msra.mxu0 0.0
    %718 = vmatprep.subr.mxu0 0.0
    %719 = vmatpush2.msra.mxu0 0.0
    %720 = vmatprep.subr.mxu0 0.0
    %721 = vmatpush2.msra.mxu0 0.0
    %722 = vmatprep.subr.mxu0 0.0
    %723 = vmatpush2.msra.mxu0 0.0
    %724 = vmatprep.subr.mxu0 0.0
    %725 = vmatpush2.msra.mxu0 0.0
    %726 = vmatprep.subr.mxu0 0.0
    %727 = vmatpush2.msra.mxu0 0.0
    %728 = vmatprep.subr.mxu0 0.0
    %729 = vmatpush2.msra.mxu0 0.0
    %730 = vmatprep.subr.mxu0 0.0
    %731 = vmatpush2.msra.mxu0 0.0
    %732 = vmatprep.subr.mxu0 0.0
    %733 = vmatpush2.msra.mxu0 0.0
    %734 = vmatprep.mubr.f32.mxu0 0.0
    %735 = vmatmul.mubr.f32.gmra.mxu0 %v665
    %v736 = vpop.f32.mrf.mxu0
    %v737 = vadd.f32 %v662, %v736
    %v738 = vpop.f32.mrf.mxu0
    %739 = vmatprep.mubr.f32.mxu0 0.0
    %740 = vmatmul.mubr.f32.gmra.mxu0 %v668
    %v741 = vpop.f32.mrf.mxu0
    %v742 = vadd.f32 %v662, %v741
    %v743 = vpop.f32.mrf.mxu0
    %744 = vdwg.mxu0
    %745 = vst [vmem:[#allocation7] sm:$0xff] %v737
    %746 = vst [vmem:[#allocation7 + $0x8] sm:$0xff] %v742
    // Predicated region
    $region62: #{feature_encoder_forward.9} parent=1 // pred_check
      _
    $region63: #{feature_encoder_forward.9} parent=1 // pred_check_branch
      %748 = sbr.rel (0) target = $region65
    $region64: #{feature_encoder_forward.9} parent=1 // pred_region
      %s750 = ssub.s32 256, 256
      %751 = vsyncadd [#allocation3], %s750
      %s752 = sshll.u32 [#allocation2], 4
      %s753 = int_to_ptr.vmem [resolvable:$true] %s752
      %758 = dma.vmem_to_hbm [thread:$0]  %s753, 256, %s15, [#allocation3], 128, 128, 8
    $region65: #{feature_encoder_forward.9} parent=1 // pred_fallthru
      _
    // Predicated region
    $region66: #{feature_encoder_forward.9} parent=1 // pred_check
      _
    $region67: #{feature_encoder_forward.9} parent=1 // pred_check_branch
      %760 = sbr.rel (0) target = $region69
    $region68: #{feature_encoder_forward.9} parent=1 // pred_region
      %s762 = ssub.s32 256, 256
      %763 = vsyncadd [#allocation5], %s762
      %s764 = sshll.u32 [#allocation4], 4
      %s765 = int_to_ptr.vmem [resolvable:$true] %s764
      %770 = dma.vmem_to_hbm [thread:$0]  %s765, 256, %s16, [#allocation5], 128, 128, 8
    $region69: #{feature_encoder_forward.9} parent=1 // pred_fallthru
      _
    // Predicated region
    $region70: #{feature_encoder_forward.9} parent=1 // pred_check
      _
    $region71: #{feature_encoder_forward.9} parent=1 // pred_check_branch
      %772 = sbr.rel (0) target = $region73
    $region72: #{feature_encoder_forward.9} parent=1 // pred_region
      %s774 = ssub.s32 256, 256
      %775 = vsyncadd [#allocation5], %s774
      %s776 = sshll.u32 [#allocation6], 4
      %s777 = int_to_ptr.vmem [resolvable:$true] %s776
      %782 = dma.vmem_to_hbm [thread:$0]  %s777, 256, %s17, [#allocation5], 128, 128, 8
    $region73: #{feature_encoder_forward.9} parent=1 // pred_fallthru
      _
    // Predicated region
    $region74: #{feature_encoder_forward.9} parent=1 // pred_check
      _
    $region75: #{feature_encoder_forward.9} parent=1 // pred_check_branch
      %784 = sbr.rel (0) target = $region77
    $region76: #{feature_encoder_forward.9} parent=1 // pred_region
      %s786 = ssub.s32 256, 256
      %787 = vsyncadd [#allocation8], %s786
      %s788 = sshll.u32 [#allocation7], 4
      %s789 = int_to_ptr.vmem [resolvable:$true] %s788
      %794 = dma.vmem_to_hbm [thread:$0]  %s789, 256, %s18, [#allocation8], 128, 128, 8
    $region77: #{feature_encoder_forward.9} parent=1 // pred_fallthru
      _
    // Predicated region
    $region78: #{feature_encoder_forward.9} parent=1 // pred_check
      _
    $region79: #{feature_encoder_forward.9} parent=1 // pred_check_branch
      %796 = sbr.rel (0) target = $region81
    $region80: #{feature_encoder_forward.9} parent=1 // pred_region
      %797 = dma.done [#allocation3], 256
    $region81: #{feature_encoder_forward.9} parent=1 // pred_fallthru
      _
    // Predicated region
    $region82: #{feature_encoder_forward.9} parent=1 // pred_check
      _
    $region83: #{feature_encoder_forward.9} parent=1 // pred_check_branch
      %799 = sbr.rel (0) target = $region85
    $region84: #{feature_encoder_forward.9} parent=1 // pred_region
      %800 = dma.done [#allocation5], 256
    $region85: #{feature_encoder_forward.9} parent=1 // pred_fallthru
      _
    // Predicated region
    $region86: #{feature_encoder_forward.9} parent=1 // pred_check
      _
    $region87: #{feature_encoder_forward.9} parent=1 // pred_check_branch
      %802 = sbr.rel (0) target = $region89
    $region88: #{feature_encoder_forward.9} parent=1 // pred_region
      %803 = dma.done [#allocation5], 256
    $region89: #{feature_encoder_forward.9} parent=1 // pred_fallthru
      _
    // Predicated region
    $region90: #{feature_encoder_forward.9} parent=1 // pred_check
      _
    $region91: #{feature_encoder_forward.9} parent=1 // pred_check_branch
      %805 = sbr.rel (0) target = $region93
    $region92: #{feature_encoder_forward.9} parent=1 // pred_region
      %806 = dma.done [#allocation8], 256
    $region93: #{feature_encoder_forward.9} parent=1 // pred_fallthru
      _
    %807 = vsyncpa [#allocation3], 1
    %808 = vsyncpa [#allocation5], 1
    %809 = vsyncpa [#allocation8], 1

// kernel: feature_encoder_forward.7
$region0: #{feature_encoder_forward.7}
  #allocation0 [shape = 'u32[]', space=smem, size = 0x4, offset = 0x4, fixed_abs, tag = 'smem constant byte address 0x4 - core index']
  #allocation1 [shape = 'u32[144,128]{1,0:T(1,128)}', space=vmem, size = 0x12000, scoped, tag = 'internal scratch']
  %s0 = inlined_call_operand.vmem [shape: f32[16,128], index: 0, kind: input, shape index: {}]
  %s1 = inlined_call_operand.vmem [shape: f32[128,128], index: 1, kind: input, shape index: {}]
  %s2 = inlined_call_operand.vmem [shape: f32[128,128], index: 2, kind: input, shape index: {}]
  %s3 = inlined_call_operand.vmem [shape: f32[128,128], index: 3, kind: input, shape index: {}]
  %s4 = inlined_call_operand.vmem [shape: f32[16,128], index: 4, kind: output, shape index: {}]
  %s5 = sld [smem:[#allocation0]]
  $region26: #{feature_encoder_forward.7} parent=0
    _
  %s7 = ssub.s32 1, %s5
  %s8 = scalar_select 0, %s7, %s5
  // Predicated region
  $region2: #{feature_encoder_forward.7} parent=0 // pred_check
    _
  $region3: #{feature_encoder_forward.7} parent=0 // pred_check_branch
    %10 = sbr.rel (0) target = $region5
  $region4: #{feature_encoder_forward.7} parent=0 // pred_region
    _
  $region5: #{feature_encoder_forward.7} parent=0 // pred_fallthru
    _
  // Predicated region
  $region6: #{feature_encoder_forward.7} parent=0 // pred_check
    _
  $region7: #{feature_encoder_forward.7} parent=0 // pred_check_branch
    %12 = sbr.rel (0) target = $region9
  $region8: #{feature_encoder_forward.7} parent=0 // pred_region
    _
  $region9: #{feature_encoder_forward.7} parent=0 // pred_fallthru
    _
  // Predicated region
  $region10: #{feature_encoder_forward.7} parent=0 // pred_check
    _
  $region11: #{feature_encoder_forward.7} parent=0 // pred_check_branch
    %14 = sbr.rel (0) target = $region13
  $region12: #{feature_encoder_forward.7} parent=0 // pred_region
    _
  $region13: #{feature_encoder_forward.7} parent=0 // pred_fallthru
    _
  // Predicated region
  $region14: #{feature_encoder_forward.7} parent=0 // pred_check
    _
  $region15: #{feature_encoder_forward.7} parent=0 // pred_check_branch
    %16 = sbr.rel (0) target = $region17
  $region16: #{feature_encoder_forward.7} parent=0 // pred_region
    _
  $region17: #{feature_encoder_forward.7} parent=0 // pred_fallthru
    _
  %v17 = vld [vmem:[%s0] sm:$0xff]
  %v18 = vld [vmem:[%s0 + $0x8] sm:$0xff]
  %v19 = vld [vmem:[%s1] sm:$0xff]
  %v20 = vld [vmem:[%s1 + $0x8] sm:$0xff]
  %v21 = vld [vmem:[%s1 + $0x10] sm:$0xff]
  %v22 = vld [vmem:[%s1 + $0x18] sm:$0xff]
  %v23 = vld [vmem:[%s1 + $0x20] sm:$0xff]
  %v24 = vld [vmem:[%s1 + $0x28] sm:$0xff]
  %v25 = vld [vmem:[%s1 + $0x30] sm:$0xff]
  %v26 = vld [vmem:[%s1 + $0x38] sm:$0xff]
  %v27 = vld [vmem:[%s1 + $0x40] sm:$0xff]
  %v28 = vld [vmem:[%s1 + $0x48] sm:$0xff]
  %v29 = vld [vmem:[%s1 + $0x50] sm:$0xff]
  %v30 = vld [vmem:[%s1 + $0x58] sm:$0xff]
  %v31 = vld [vmem:[%s1 + $0x60] sm:$0xff]
  %v32 = vld [vmem:[%s1 + $0x68] sm:$0xff]
  %v33 = vld [vmem:[%s1 + $0x70] sm:$0xff]
  %v34 = vld [vmem:[%s1 + $0x78] sm:$0xff]
  %35 = vmatprep.subr.mxu0 0.0
  %36 = vmatpush1.msra.mxu0 %v34
  %37 = vmatprep.subr.mxu0 0.0
  %38 = vmatpush1.msra.mxu0 %v33
  %39 = vmatprep.subr.mxu0 0.0
  %40 = vmatpush1.msra.mxu0 %v32
  %41 = vmatprep.subr.mxu0 0.0
  %42 = vmatpush1.msra.mxu0 %v31
  %43 = vmatprep.subr.mxu0 0.0
  %44 = vmatpush1.msra.mxu0 %v30
  %45 = vmatprep.subr.mxu0 0.0
  %46 = vmatpush1.msra.mxu0 %v29
  %47 = vmatprep.subr.mxu0 0.0
  %48 = vmatpush1.msra.mxu0 %v28
  %49 = vmatprep.subr.mxu0 0.0
  %50 = vmatpush1.msra.mxu0 %v27
  %51 = vmatprep.subr.mxu0 0.0
  %52 = vmatpush1.msra.mxu0 %v26
  %53 = vmatprep.subr.mxu0 0.0
  %54 = vmatpush1.msra.mxu0 %v25
  %55 = vmatprep.subr.mxu0 0.0
  %56 = vmatpush1.msra.mxu0 %v24
  %57 = vmatprep.subr.mxu0 0.0
  %58 = vmatpush1.msra.mxu0 %v23
  %59 = vmatprep.subr.mxu0 0.0
  %60 = vmatpush1.msra.mxu0 %v22
  %61 = vmatprep.subr.mxu0 0.0
  %62 = vmatpush1.msra.mxu0 %v21
  %63 = vmatprep.subr.mxu0 0.0
  %64 = vmatpush1.msra.mxu0 %v20
  %65 = vmatprep.subr.mxu0 0.0
  %66 = vmatpush1.msra.mxu0 %v19
  %67 = vmatprep.subr.mxu0 0.0
  %68 = vmatpush2.msra.mxu0 0.0
  %69 = vmatprep.subr.mxu0 0.0
  %70 = vmatpush2.msra.mxu0 0.0
  %71 = vmatprep.subr.mxu0 0.0
  %72 = vmatpush2.msra.mxu0 0.0
  %73 = vmatprep.subr.mxu0 0.0
  %74 = vmatpush2.msra.mxu0 0.0
  %75 = vmatprep.subr.mxu0 0.0
  %76 = vmatpush2.msra.mxu0 0.0
  %77 = vmatprep.subr.mxu0 0.0
  %78 = vmatpush2.msra.mxu0 0.0
  %79 = vmatprep.subr.mxu0 0.0
  %80 = vmatpush2.msra.mxu0 0.0
  %81 = vmatprep.subr.mxu0 0.0
  %82 = vmatpush2.msra.mxu0 0.0
  %83 = vmatprep.subr.mxu0 0.0
  %84 = vmatpush2.msra.mxu0 0.0
  %85 = vmatprep.subr.mxu0 0.0
  %86 = vmatpush2.msra.mxu0 0.0
  %87 = vmatprep.subr.mxu0 0.0
  %88 = vmatpush2.msra.mxu0 0.0
  %89 = vmatprep.subr.mxu0 0.0
  %90 = vmatpush2.msra.mxu0 0.0
  %91 = vmatprep.subr.mxu0 0.0
  %92 = vmatpush2.msra.mxu0 0.0
  %93 = vmatprep.subr.mxu0 0.0
  %94 = vmatpush2.msra.mxu0 0.0
  %95 = vmatprep.subr.mxu0 0.0
  %96 = vmatpush2.msra.mxu0 0.0
  %97 = vmatprep.subr.mxu0 0.0
  %98 = vmatpush2.msra.mxu0 0.0
  %99 = vmatprep.mubr.f32.mxu0 0.0
  %100 = vmatmul.mubr.f32.gmra.mxu0 %v17
  %v101 = vpop.f32.mrf.mxu0
  %v102 = vadd.f32 0.0, %v101
  %v103 = vpop.f32.mrf.mxu0
  %104 = vmatprep.mubr.f32.mxu0 0.0
  %105 = vmatmul.mubr.f32.gmra.mxu0 %v18
  %v106 = vpop.f32.mrf.mxu0
  %v107 = vadd.f32 0.0, %v106
  %v108 = vpop.f32.mrf.mxu0
  %109 = vdwg.mxu0
  %v110 = vld [vmem:[%s2] sm:$0xff]
  %v111 = vld [vmem:[%s2 + $0x8] sm:$0xff]
  %v112 = vld [vmem:[%s2 + $0x10] sm:$0xff]
  %v113 = vld [vmem:[%s2 + $0x18] sm:$0xff]
  %v114 = vld [vmem:[%s2 + $0x20] sm:$0xff]
  %v115 = vld [vmem:[%s2 + $0x28] sm:$0xff]
  %v116 = vld [vmem:[%s2 + $0x30] sm:$0xff]
  %v117 = vld [vmem:[%s2 + $0x38] sm:$0xff]
  %v118 = vld [vmem:[%s2 + $0x40] sm:$0xff]
  %v119 = vld [vmem:[%s2 + $0x48] sm:$0xff]
  %v120 = vld [vmem:[%s2 + $0x50] sm:$0xff]
  %v121 = vld [vmem:[%s2 + $0x58] sm:$0xff]
  %v122 = vld [vmem:[%s2 + $0x60] sm:$0xff]
  %v123 = vld [vmem:[%s2 + $0x68] sm:$0xff]
  %v124 = vld [vmem:[%s2 + $0x70] sm:$0xff]
  %v125 = vld [vmem:[%s2 + $0x78] sm:$0xff]
  %126 = vmatprep.subr.mxu0 0.0
  %127 = vmatpush1.msra.mxu0 %v125
  %128 = vmatprep.subr.mxu0 0.0
  %129 = vmatpush1.msra.mxu0 %v124
  %130 = vmatprep.subr.mxu0 0.0
  %131 = vmatpush1.msra.mxu0 %v123
  %132 = vmatprep.subr.mxu0 0.0
  %133 = vmatpush1.msra.mxu0 %v122
  %134 = vmatprep.subr.mxu0 0.0
  %135 = vmatpush1.msra.mxu0 %v121
  %136 = vmatprep.subr.mxu0 0.0
  %137 = vmatpush1.msra.mxu0 %v120
  %138 = vmatprep.subr.mxu0 0.0
  %139 = vmatpush1.msra.mxu0 %v119
  %140 = vmatprep.subr.mxu0 0.0
  %141 = vmatpush1.msra.mxu0 %v118
  %142 = vmatprep.subr.mxu0 0.0
  %143 = vmatpush1.msra.mxu0 %v117
  %144 = vmatprep.subr.mxu0 0.0
  %145 = vmatpush1.msra.mxu0 %v116
  %146 = vmatprep.subr.mxu0 0.0
  %147 = vmatpush1.msra.mxu0 %v115
  %148 = vmatprep.subr.mxu0 0.0
  %149 = vmatpush1.msra.mxu0 %v114
  %150 = vmatprep.subr.mxu0 0.0
  %151 = vmatpush1.msra.mxu0 %v113
  %152 = vmatprep.subr.mxu0 0.0
  %153 = vmatpush1.msra.mxu0 %v112
  %154 = vmatprep.subr.mxu0 0.0
  %155 = vmatpush1.msra.mxu0 %v111
  %156 = vmatprep.subr.mxu0 0.0
  %157 = vmatpush1.msra.mxu0 %v110
  %158 = vmatprep.subr.mxu0 0.0
  %159 = vmatpush2.msra.mxu0 0.0
  %160 = vmatprep.subr.mxu0 0.0
  %161 = vmatpush2.msra.mxu0 0.0
  %162 = vmatprep.subr.mxu0 0.0
  %163 = vmatpush2.msra.mxu0 0.0
  %164 = vmatprep.subr.mxu0 0.0
  %165 = vmatpush2.msra.mxu0 0.0
  %166 = vmatprep.subr.mxu0 0.0
  %167 = vmatpush2.msra.mxu0 0.0
  %168 = vmatprep.subr.mxu0 0.0
  %169 = vmatpush2.msra.mxu0 0.0
  %170 = vmatprep.subr.mxu0 0.0
  %171 = vmatpush2.msra.mxu0 0.0
  %172 = vmatprep.subr.mxu0 0.0
  %173 = vmatpush2.msra.mxu0 0.0
  %174 = vmatprep.subr.mxu0 0.0
  %175 = vmatpush2.msra.mxu0 0.0
  %176 = vmatprep.subr.mxu0 0.0
  %177 = vmatpush2.msra.mxu0 0.0
  %178 = vmatprep.subr.mxu0 0.0
  %179 = vmatpush2.msra.mxu0 0.0
  %180 = vmatprep.subr.mxu0 0.0
  %181 = vmatpush2.msra.mxu0 0.0
  %182 = vmatprep.subr.mxu0 0.0
  %183 = vmatpush2.msra.mxu0 0.0
  %184 = vmatprep.subr.mxu0 0.0
  %185 = vmatpush2.msra.mxu0 0.0
  %186 = vmatprep.subr.mxu0 0.0
  %187 = vmatpush2.msra.mxu0 0.0
  %188 = vmatprep.subr.mxu0 0.0
  %189 = vmatpush2.msra.mxu0 0.0
  %190 = vmatprep.mubr.f32.mxu0 0.0
  %191 = vmatmul.mubr.f32.gmra.mxu0 %v17
  %v192 = vpop.f32.mrf.mxu0
  %v193 = vadd.f32 0.0, %v192
  %v194 = vpop.f32.mrf.mxu0
  %195 = vmatprep.mubr.f32.mxu0 0.0
  %196 = vmatmul.mubr.f32.gmra.mxu0 %v18
  %v197 = vpop.f32.mrf.mxu0
  %v198 = vadd.f32 0.0, %v197
  %v199 = vpop.f32.mrf.mxu0
  %200 = vdwg.mxu0
  %v201 = vld [vmem:[%s3] sm:$0xff]
  %v202 = vld [vmem:[%s3 + $0x8] sm:$0xff]
  %v203 = vld [vmem:[%s3 + $0x10] sm:$0xff]
  %v204 = vld [vmem:[%s3 + $0x18] sm:$0xff]
  %v205 = vld [vmem:[%s3 + $0x20] sm:$0xff]
  %v206 = vld [vmem:[%s3 + $0x28] sm:$0xff]
  %v207 = vld [vmem:[%s3 + $0x30] sm:$0xff]
  %v208 = vld [vmem:[%s3 + $0x38] sm:$0xff]
  %v209 = vld [vmem:[%s3 + $0x40] sm:$0xff]
  %v210 = vld [vmem:[%s3 + $0x48] sm:$0xff]
  %v211 = vld [vmem:[%s3 + $0x50] sm:$0xff]
  %v212 = vld [vmem:[%s3 + $0x58] sm:$0xff]
  %v213 = vld [vmem:[%s3 + $0x60] sm:$0xff]
  %v214 = vld [vmem:[%s3 + $0x68] sm:$0xff]
  %v215 = vld [vmem:[%s3 + $0x70] sm:$0xff]
  %v216 = vld [vmem:[%s3 + $0x78] sm:$0xff]
  %217 = vmatprep.subr.mxu0 0.0
  %218 = vmatpush1.msra.mxu0 %v216
  %219 = vmatprep.subr.mxu0 0.0
  %220 = vmatpush1.msra.mxu0 %v215
  %221 = vmatprep.subr.mxu0 0.0
  %222 = vmatpush1.msra.mxu0 %v214
  %223 = vmatprep.subr.mxu0 0.0
  %224 = vmatpush1.msra.mxu0 %v213
  %225 = vmatprep.subr.mxu0 0.0
  %226 = vmatpush1.msra.mxu0 %v212
  %227 = vmatprep.subr.mxu0 0.0
  %228 = vmatpush1.msra.mxu0 %v211
  %229 = vmatprep.subr.mxu0 0.0
  %230 = vmatpush1.msra.mxu0 %v210
  %231 = vmatprep.subr.mxu0 0.0
  %232 = vmatpush1.msra.mxu0 %v209
  %233 = vmatprep.subr.mxu0 0.0
  %234 = vmatpush1.msra.mxu0 %v208
  %235 = vmatprep.subr.mxu0 0.0
  %236 = vmatpush1.msra.mxu0 %v207
  %237 = vmatprep.subr.mxu0 0.0
  %238 = vmatpush1.msra.mxu0 %v206
  %239 = vmatprep.subr.mxu0 0.0
  %240 = vmatpush1.msra.mxu0 %v205
  %241 = vmatprep.subr.mxu0 0.0
  %242 = vmatpush1.msra.mxu0 %v204
  %243 = vmatprep.subr.mxu0 0.0
  %244 = vmatpush1.msra.mxu0 %v203
  %245 = vmatprep.subr.mxu0 0.0
  %246 = vmatpush1.msra.mxu0 %v202
  %247 = vmatprep.subr.mxu0 0.0
  %248 = vmatpush1.msra.mxu0 %v201
  %249 = vmatprep.subr.mxu0 0.0
  %250 = vmatpush2.msra.mxu0 0.0
  %251 = vmatprep.subr.mxu0 0.0
  %252 = vmatpush2.msra.mxu0 0.0
  %253 = vmatprep.subr.mxu0 0.0
  %254 = vmatpush2.msra.mxu0 0.0
  %255 = vmatprep.subr.mxu0 0.0
  %256 = vmatpush2.msra.mxu0 0.0
  %257 = vmatprep.subr.mxu0 0.0
  %258 = vmatpush2.msra.mxu0 0.0
  %259 = vmatprep.subr.mxu0 0.0
  %260 = vmatpush2.msra.mxu0 0.0
  %261 = vmatprep.subr.mxu0 0.0
  %262 = vmatpush2.msra.mxu0 0.0
  %263 = vmatprep.subr.mxu0 0.0
  %264 = vmatpush2.msra.mxu0 0.0
  %265 = vmatprep.subr.mxu0 0.0
  %266 = vmatpush2.msra.mxu0 0.0
  %267 = vmatprep.subr.mxu0 0.0
  %268 = vmatpush2.msra.mxu0 0.0
  %269 = vmatprep.subr.mxu0 0.0
  %270 = vmatpush2.msra.mxu0 0.0
  %271 = vmatprep.subr.mxu0 0.0
  %272 = vmatpush2.msra.mxu0 0.0
  %273 = vmatprep.subr.mxu0 0.0
  %274 = vmatpush2.msra.mxu0 0.0
  %275 = vmatprep.subr.mxu0 0.0
  %276 = vmatpush2.msra.mxu0 0.0
  %277 = vmatprep.subr.mxu0 0.0
  %278 = vmatpush2.msra.mxu0 0.0
  %279 = vmatprep.subr.mxu0 0.0
  %280 = vmatpush2.msra.mxu0 0.0
  %281 = vmatprep.mubr.f32.mxu0 0.0
  %282 = vmatmul.mubr.f32.gmra.mxu0 %v17
  %v283 = vpop.f32.mrf.mxu0
  %v284 = vadd.f32 0.0, %v283
  %v285 = vpop.f32.mrf.mxu0
  %286 = vmatprep.mubr.f32.mxu0 0.0
  %287 = vmatmul.mubr.f32.gmra.mxu0 %v18
  %v288 = vpop.f32.mrf.mxu0
  %v289 = vadd.f32 0.0, %v288
  %v290 = vpop.f32.mrf.mxu0
  %291 = vdwg.mxu0
  %vm292 = vcmask 261120
  %v294 = vsel %vm292, %v102, 0
  %v297 = vsel %vm292, %v107, 0
  %v300 = vsel %vm292, %v193, 0
  %v303 = vsel %vm292, %v198, 0
  %305 = vmatprep.subr.mxu0 0.0
  %306 = vmatpush1.xpose.msra.mxu0 0.0
  %307 = vmatprep.subr.mxu0 0.0
  %308 = vmatpush1.xpose.msra.mxu0 0.0
  %309 = vmatprep.subr.mxu0 0.0
  %310 = vmatpush1.xpose.msra.mxu0 0.0
  %311 = vmatprep.subr.mxu0 0.0
  %312 = vmatpush1.xpose.msra.mxu0 0.0
  %313 = vmatprep.subr.mxu0 0.0
  %314 = vmatpush1.xpose.msra.mxu0 0.0
  %315 = vmatprep.subr.mxu0 0.0
  %316 = vmatpush1.xpose.msra.mxu0 0.0
  %317 = vmatprep.subr.mxu0 0.0
  %318 = vmatpush1.xpose.msra.mxu0 0.0
  %319 = vmatprep.subr.mxu0 0.0
  %320 = vmatpush1.xpose.msra.mxu0 0.0
  %321 = vmatprep.subr.mxu0 0.0
  %322 = vmatpush1.xpose.msra.mxu0 0.0
  %323 = vmatprep.subr.mxu0 0.0
  %324 = vmatpush1.xpose.msra.mxu0 0.0
  %325 = vmatprep.subr.mxu0 0.0
  %326 = vmatpush1.xpose.msra.mxu0 0.0
  %327 = vmatprep.subr.mxu0 0.0
  %328 = vmatpush1.xpose.msra.mxu0 0.0
  %329 = vmatprep.subr.mxu0 0.0
  %330 = vmatpush1.xpose.msra.mxu0 0.0
  %331 = vmatprep.subr.mxu0 0.0
  %332 = vmatpush1.xpose.msra.mxu0 0.0
  %333 = vmatprep.subr.mxu0 0.0
  %334 = vmatpush1.xpose.msra.mxu0 %v303
  %335 = vmatprep.subr.mxu0 0.0
  %336 = vmatpush1.xpose.msra.mxu0 %v300
  %337 = vmatprep.subr.mxu0 0.0
  %338 = vmatpush2.xpose.msra.mxu0 0.0
  %339 = vmatprep.subr.mxu0 0.0
  %340 = vmatpush2.xpose.msra.mxu0 0.0
  %341 = vmatprep.subr.mxu0 0.0
  %342 = vmatpush2.xpose.msra.mxu0 0.0
  %343 = vmatprep.subr.mxu0 0.0
  %344 = vmatpush2.xpose.msra.mxu0 0.0
  %345 = vmatprep.subr.mxu0 0.0
  %346 = vmatpush2.xpose.msra.mxu0 0.0
  %347 = vmatprep.subr.mxu0 0.0
  %348 = vmatpush2.xpose.msra.mxu0 0.0
  %349 = vmatprep.subr.mxu0 0.0
  %350 = vmatpush2.xpose.msra.mxu0 0.0
  %351 = vmatprep.subr.mxu0 0.0
  %352 = vmatpush2.xpose.msra.mxu0 0.0
  %353 = vmatprep.subr.mxu0 0.0
  %354 = vmatpush2.xpose.msra.mxu0 0.0
  %355 = vmatprep.subr.mxu0 0.0
  %356 = vmatpush2.xpose.msra.mxu0 0.0
  %357 = vmatprep.subr.mxu0 0.0
  %358 = vmatpush2.xpose.msra.mxu0 0.0
  %359 = vmatprep.subr.mxu0 0.0
  %360 = vmatpush2.xpose.msra.mxu0 0.0
  %361 = vmatprep.subr.mxu0 0.0
  %362 = vmatpush2.xpose.msra.mxu0 0.0
  %363 = vmatprep.subr.mxu0 0.0
  %364 = vmatpush2.xpose.msra.mxu0 0.0
  %365 = vmatprep.subr.mxu0 0.0
  %366 = vmatpush2.xpose.msra.mxu0 0.0
  %367 = vmatprep.subr.mxu0 0.0
  %368 = vmatpush2.xpose.msra.mxu0 0.0
  %369 = vmatprep.mubr.f32.mxu0 0.0
  %370 = vmatmul.mubr.f32.gmra.mxu0 %v294
  %v371 = vpop.f32.mrf.mxu0
  %v372 = vadd.f32 0.0, %v371
  %v373 = vpop.f32.mrf.mxu0
  %374 = vmatprep.mubr.f32.mxu0 0.0
  %375 = vmatmul.mubr.f32.gmra.mxu0 %v297
  %v376 = vpop.f32.mrf.mxu0
  %v377 = vadd.f32 0.0, %v376
  %v378 = vpop.f32.mrf.mxu0
  %379 = vdwg.mxu0
  %v380 = vmul.f32 %v372, 0.17677669
  %v381 = vmul.f32 %v377, 0.17677669
  %vm382 = vcmask 130048
  %v383 = vsel %vm382, %v380, -inf
  %384 = vmax.xlane.f32.xlu0 %v383
  %v385 = vpop.xlane.xlu0 %384
  %v386 = vsel %vm382, %v381, -inf
  %387 = vmax.xlane.f32.xlu0 %v386
  %v388 = vpop.xlane.xlu0 %387
  %v389 = vsub.f32 %v380, %v385
  %v390 = vsub.f32 %v381, %v388
  %v391 = vmul.f32 %v389, 1.442695
  %v392 = vpow.pop %v391
  %v393 = vmul.f32 %v390, 1.442695
  %v394 = vpow.pop %v393
  %v395 = vsel %vm382, %v392, 0.0
  %396 = vadd.xlane.f32.xlu0 %v395
  %v397 = vpop.xlane.xlu0 %396
  %v398 = vsel %vm382, %v394, 0.0
  %399 = vadd.xlane.f32.xlu0 %v398
  %v400 = vpop.xlane.xlu0 %399
  %v401 = vrcp.pop %v397
  %v402 = vmul.f32 %v392, %v401
  %v403 = vrcp.pop %v400
  %v404 = vmul.f32 %v394, %v403
  %v406 = vsel %vm382, %v402, 0
  %v409 = vsel %vm382, %v404, 0
  %411 = vmatprep.subr.mxu0 0.0
  %412 = vmatpush1.msra.mxu0 0.0
  %413 = vmatprep.subr.mxu0 0.0
  %414 = vmatpush1.msra.mxu0 0.0
  %415 = vmatprep.subr.mxu0 0.0
  %416 = vmatpush1.msra.mxu0 0.0
  %417 = vmatprep.subr.mxu0 0.0
  %418 = vmatpush1.msra.mxu0 0.0
  %419 = vmatprep.subr.mxu0 0.0
  %420 = vmatpush1.msra.mxu0 0.0
  %421 = vmatprep.subr.mxu0 0.0
  %422 = vmatpush1.msra.mxu0 0.0
  %423 = vmatprep.subr.mxu0 0.0
  %424 = vmatpush1.msra.mxu0 0.0
  %425 = vmatprep.subr.mxu0 0.0
  %426 = vmatpush1.msra.mxu0 0.0
  %427 = vmatprep.subr.mxu0 0.0
  %428 = vmatpush1.msra.mxu0 0.0
  %429 = vmatprep.subr.mxu0 0.0
  %430 = vmatpush1.msra.mxu0 0.0
  %431 = vmatprep.subr.mxu0 0.0
  %432 = vmatpush1.msra.mxu0 0.0
  %433 = vmatprep.subr.mxu0 0.0
  %434 = vmatpush1.msra.mxu0 0.0
  %435 = vmatprep.subr.mxu0 0.0
  %436 = vmatpush1.msra.mxu0 0.0
  %437 = vmatprep.subr.mxu0 0.0
  %438 = vmatpush1.msra.mxu0 0.0
  %439 = vmatprep.subr.mxu0 0.0
  %440 = vmatpush1.msra.mxu0 %v289
  %441 = vmatprep.subr.mxu0 0.0
  %442 = vmatpush1.msra.mxu0 %v284
  %443 = vmatprep.subr.mxu0 0.0
  %444 = vmatpush2.msra.mxu0 0.0
  %445 = vmatprep.subr.mxu0 0.0
  %446 = vmatpush2.msra.mxu0 0.0
  %447 = vmatprep.subr.mxu0 0.0
  %448 = vmatpush2.msra.mxu0 0.0
  %449 = vmatprep.subr.mxu0 0.0
  %450 = vmatpush2.msra.mxu0 0.0
  %451 = vmatprep.subr.mxu0 0.0
  %452 = vmatpush2.msra.mxu0 0.0
  %453 = vmatprep.subr.mxu0 0.0
  %454 = vmatpush2.msra.mxu0 0.0
  %455 = vmatprep.subr.mxu0 0.0
  %456 = vmatpush2.msra.mxu0 0.0
  %457 = vmatprep.subr.mxu0 0.0
  %458 = vmatpush2.msra.mxu0 0.0
  %459 = vmatprep.subr.mxu0 0.0
  %460 = vmatpush2.msra.mxu0 0.0
  %461 = vmatprep.subr.mxu0 0.0
  %462 = vmatpush2.msra.mxu0 0.0
  %463 = vmatprep.subr.mxu0 0.0
  %464 = vmatpush2.msra.mxu0 0.0
  %465 = vmatprep.subr.mxu0 0.0
  %466 = vmatpush2.msra.mxu0 0.0
  %467 = vmatprep.subr.mxu0 0.0
  %468 = vmatpush2.msra.mxu0 0.0
  %469 = vmatprep.subr.mxu0 0.0
  %470 = vmatpush2.msra.mxu0 0.0
  %471 = vmatprep.subr.mxu0 0.0
  %472 = vmatpush2.msra.mxu0 0.0
  %473 = vmatprep.subr.mxu0 0.0
  %474 = vmatpush2.msra.mxu0 0.0
  %475 = vmatprep.mubr.f32.mxu0 0.0
  %476 = vmatmul.mubr.f32.gmra.mxu0 %v406
  %v477 = vpop.f32.mrf.mxu0
  %v478 = vadd.f32 0.0, %v477
  %v479 = vpop.f32.mrf.mxu0
  %480 = vmatprep.mubr.f32.mxu0 0.0
  %481 = vmatmul.mubr.f32.gmra.mxu0 %v409
  %v482 = vpop.f32.mrf.mxu0
  %v483 = vadd.f32 0.0, %v482
  %v484 = vpop.f32.mrf.mxu0
  %485 = vdwg.mxu0
  %486 = vrot.lane.b32.xlu0 %v102, 96
  %v487 = vpop.permute.xlu0 %486
  %488 = vrot.lane.b32.xlu0 %v107, 96
  %v489 = vpop.permute.xlu0 %488
  %490 = vrot.lane.b32.xlu0 %v193, 96
  %v491 = vpop.permute.xlu0 %490
  %492 = vrot.lane.b32.xlu0 %v198, 96
  %v493 = vpop.permute.xlu0 %492
  %v494 = vsel %vm292, %v487, 0
  %v496 = vsel %vm292, %v489, 0
  %v498 = vsel %vm292, %v491, 0
  %v500 = vsel %vm292, %v493, 0
  %502 = vmatprep.subr.mxu0 0.0
  %503 = vmatpush1.xpose.msra.mxu0 0.0
  %504 = vmatprep.subr.mxu0 0.0
  %505 = vmatpush1.xpose.msra.mxu0 0.0
  %506 = vmatprep.subr.mxu0 0.0
  %507 = vmatpush1.xpose.msra.mxu0 0.0
  %508 = vmatprep.subr.mxu0 0.0
  %509 = vmatpush1.xpose.msra.mxu0 0.0
  %510 = vmatprep.subr.mxu0 0.0
  %511 = vmatpush1.xpose.msra.mxu0 0.0
  %512 = vmatprep.subr.mxu0 0.0
  %513 = vmatpush1.xpose.msra.mxu0 0.0
  %514 = vmatprep.subr.mxu0 0.0
  %515 = vmatpush1.xpose.msra.mxu0 0.0
  %516 = vmatprep.subr.mxu0 0.0
  %517 = vmatpush1.xpose.msra.mxu0 0.0
  %518 = vmatprep.subr.mxu0 0.0
  %519 = vmatpush1.xpose.msra.mxu0 0.0
  %520 = vmatprep.subr.mxu0 0.0
  %521 = vmatpush1.xpose.msra.mxu0 0.0
  %522 = vmatprep.subr.mxu0 0.0
  %523 = vmatpush1.xpose.msra.mxu0 0.0
  %524 = vmatprep.subr.mxu0 0.0
  %525 = vmatpush1.xpose.msra.mxu0 0.0
  %526 = vmatprep.subr.mxu0 0.0
  %527 = vmatpush1.xpose.msra.mxu0 0.0
  %528 = vmatprep.subr.mxu0 0.0
  %529 = vmatpush1.xpose.msra.mxu0 0.0
  %530 = vmatprep.subr.mxu0 0.0
  %531 = vmatpush1.xpose.msra.mxu0 %v500
  %532 = vmatprep.subr.mxu0 0.0
  %533 = vmatpush1.xpose.msra.mxu0 %v498
  %534 = vmatprep.subr.mxu0 0.0
  %535 = vmatpush2.xpose.msra.mxu0 0.0
  %536 = vmatprep.subr.mxu0 0.0
  %537 = vmatpush2.xpose.msra.mxu0 0.0
  %538 = vmatprep.subr.mxu0 0.0
  %539 = vmatpush2.xpose.msra.mxu0 0.0
  %540 = vmatprep.subr.mxu0 0.0
  %541 = vmatpush2.xpose.msra.mxu0 0.0
  %542 = vmatprep.subr.mxu0 0.0
  %543 = vmatpush2.xpose.msra.mxu0 0.0
  %544 = vmatprep.subr.mxu0 0.0
  %545 = vmatpush2.xpose.msra.mxu0 0.0
  %546 = vmatprep.subr.mxu0 0.0
  %547 = vmatpush2.xpose.msra.mxu0 0.0
  %548 = vmatprep.subr.mxu0 0.0
  %549 = vmatpush2.xpose.msra.mxu0 0.0
  %550 = vmatprep.subr.mxu0 0.0
  %551 = vmatpush2.xpose.msra.mxu0 0.0
  %552 = vmatprep.subr.mxu0 0.0
  %553 = vmatpush2.xpose.msra.mxu0 0.0
  %554 = vmatprep.subr.mxu0 0.0
  %555 = vmatpush2.xpose.msra.mxu0 0.0
  %556 = vmatprep.subr.mxu0 0.0
  %557 = vmatpush2.xpose.msra.mxu0 0.0
  %558 = vmatprep.subr.mxu0 0.0
  %559 = vmatpush2.xpose.msra.mxu0 0.0
  %560 = vmatprep.subr.mxu0 0.0
  %561 = vmatpush2.xpose.msra.mxu0 0.0
  %562 = vmatprep.subr.mxu0 0.0
  %563 = vmatpush2.xpose.msra.mxu0 0.0
  %564 = vmatprep.subr.mxu0 0.0
  %565 = vmatpush2.xpose.msra.mxu0 0.0
  %566 = vmatprep.mubr.f32.mxu0 0.0
  %567 = vmatmul.mubr.f32.gmra.mxu0 %v494
  %v568 = vpop.f32.mrf.mxu0
  %v569 = vadd.f32 0.0, %v568
  %v570 = vpop.f32.mrf.mxu0
  %571 = vmatprep.mubr.f32.mxu0 0.0
  %572 = vmatmul.mubr.f32.gmra.mxu0 %v496
  %v573 = vpop.f32.mrf.mxu0
  %v574 = vadd.f32 0.0, %v573
  %v575 = vpop.f32.mrf.mxu0
  %576 = vdwg.mxu0
  %v577 = vmul.f32 %v569, 0.17677669
  %v578 = vmul.f32 %v574, 0.17677669
  %v579 = vsel %vm382, %v577, -inf
  %580 = vmax.xlane.f32.xlu0 %v579
  %v581 = vpop.xlane.xlu0 %580
  %v582 = vsel %vm382, %v578, -inf
  %583 = vmax.xlane.f32.xlu0 %v582
  %v584 = vpop.xlane.xlu0 %583
  %v585 = vsub.f32 %v577, %v581
  %v586 = vsub.f32 %v578, %v584
  %v587 = vmul.f32 %v585, 1.442695
  %v588 = vpow.pop %v587
  %v589 = vmul.f32 %v586, 1.442695
  %v590 = vpow.pop %v589
  %v591 = vsel %vm382, %v588, 0.0
  %592 = vadd.xlane.f32.xlu0 %v591
  %v593 = vpop.xlane.xlu0 %592
  %v594 = vsel %vm382, %v590, 0.0
  %595 = vadd.xlane.f32.xlu0 %v594
  %v596 = vpop.xlane.xlu0 %595
  %v597 = vrcp.pop %v593
  %v598 = vmul.f32 %v588, %v597
  %v599 = vrcp.pop %v596
  %v600 = vmul.f32 %v590, %v599
  %603 = vrot.lane.b32.xlu0 %v284, 96
  %v604 = vpop.permute.xlu0 %603
  %605 = vrot.lane.b32.xlu0 %v289, 96
  %v606 = vpop.permute.xlu0 %605
  %v610 = vsel %vm382, %v598, 0
  %v613 = vsel %vm382, %v600, 0
  %615 = vmatprep.subr.mxu0 0.0
  %616 = vmatpush1.msra.mxu0 0.0
  %617 = vmatprep.subr.mxu0 0.0
  %618 = vmatpush1.msra.mxu0 0.0
  %619 = vmatprep.subr.mxu0 0.0
  %620 = vmatpush1.msra.mxu0 0.0
  %621 = vmatprep.subr.mxu0 0.0
  %622 = vmatpush1.msra.mxu0 0.0
  %623 = vmatprep.subr.mxu0 0.0
  %624 = vmatpush1.msra.mxu0 0.0
  %625 = vmatprep.subr.mxu0 0.0
  %626 = vmatpush1.msra.mxu0 0.0
  %627 = vmatprep.subr.mxu0 0.0
  %628 = vmatpush1.msra.mxu0 0.0
  %629 = vmatprep.subr.mxu0 0.0
  %630 = vmatpush1.msra.mxu0 0.0
  %631 = vmatprep.subr.mxu0 0.0
  %632 = vmatpush1.msra.mxu0 0.0
  %633 = vmatprep.subr.mxu0 0.0
  %634 = vmatpush1.msra.mxu0 0.0
  %635 = vmatprep.subr.mxu0 0.0
  %636 = vmatpush1.msra.mxu0 0.0
  %637 = vmatprep.subr.mxu0 0.0
  %638 = vmatpush1.msra.mxu0 0.0
  %639 = vmatprep.subr.mxu0 0.0
  %640 = vmatpush1.msra.mxu0 0.0
  %641 = vmatprep.subr.mxu0 0.0
  %642 = vmatpush1.msra.mxu0 0.0
  %643 = vmatprep.subr.mxu0 0.0
  %644 = vmatpush1.msra.mxu0 %v606
  %645 = vmatprep.subr.mxu0 0.0
  %646 = vmatpush1.msra.mxu0 %v604
  %647 = vmatprep.subr.mxu0 0.0
  %648 = vmatpush2.msra.mxu0 0.0
  %649 = vmatprep.subr.mxu0 0.0
  %650 = vmatpush2.msra.mxu0 0.0
  %651 = vmatprep.subr.mxu0 0.0
  %652 = vmatpush2.msra.mxu0 0.0
  %653 = vmatprep.subr.mxu0 0.0
  %654 = vmatpush2.msra.mxu0 0.0
  %655 = vmatprep.subr.mxu0 0.0
  %656 = vmatpush2.msra.mxu0 0.0
  %657 = vmatprep.subr.mxu0 0.0
  %658 = vmatpush2.msra.mxu0 0.0
  %659 = vmatprep.subr.mxu0 0.0
  %660 = vmatpush2.msra.mxu0 0.0
  %661 = vmatprep.subr.mxu0 0.0
  %662 = vmatpush2.msra.mxu0 0.0
  %663 = vmatprep.subr.mxu0 0.0
  %664 = vmatpush2.msra.mxu0 0.0
  %665 = vmatprep.subr.mxu0 0.0
  %666 = vmatpush2.msra.mxu0 0.0
  %667 = vmatprep.subr.mxu0 0.0
  %668 = vmatpush2.msra.mxu0 0.0
  %669 = vmatprep.subr.mxu0 0.0
  %670 = vmatpush2.msra.mxu0 0.0
  %671 = vmatprep.subr.mxu0 0.0
  %672 = vmatpush2.msra.mxu0 0.0
  %673 = vmatprep.subr.mxu0 0.0
  %674 = vmatpush2.msra.mxu0 0.0
  %675 = vmatprep.subr.mxu0 0.0
  %676 = vmatpush2.msra.mxu0 0.0
  %677 = vmatprep.subr.mxu0 0.0
  %678 = vmatpush2.msra.mxu0 0.0
  %679 = vmatprep.mubr.f32.mxu0 0.0
  %680 = vmatmul.mubr.f32.gmra.mxu0 %v610
  %v681 = vpop.f32.mrf.mxu0
  %v682 = vadd.f32 0.0, %v681
  %v683 = vpop.f32.mrf.mxu0
  %684 = vmatprep.mubr.f32.mxu0 0.0
  %685 = vmatmul.mubr.f32.gmra.mxu0 %v613
  %v686 = vpop.f32.mrf.mxu0
  %v687 = vadd.f32 0.0, %v686
  %v688 = vpop.f32.mrf.mxu0
  %689 = vdwg.mxu0
  %690 = vrot.lane.b32.xlu0 %v102, 64
  %v691 = vpop.permute.xlu0 %690
  %692 = vrot.lane.b32.xlu0 %v107, 64
  %v693 = vpop.permute.xlu0 %692
  %694 = vrot.lane.b32.xlu0 %v193, 64
  %v695 = vpop.permute.xlu0 %694
  %696 = vrot.lane.b32.xlu0 %v198, 64
  %v697 = vpop.permute.xlu0 %696
  %v698 = vsel %vm292, %v691, 0
  %v700 = vsel %vm292, %v693, 0
  %v702 = vsel %vm292, %v695, 0
  %v704 = vsel %vm292, %v697, 0
  %706 = vmatprep.subr.mxu0 0.0
  %707 = vmatpush1.xpose.msra.mxu0 0.0
  %708 = vmatprep.subr.mxu0 0.0
  %709 = vmatpush1.xpose.msra.mxu0 0.0
  %710 = vmatprep.subr.mxu0 0.0
  %711 = vmatpush1.xpose.msra.mxu0 0.0
  %712 = vmatprep.subr.mxu0 0.0
  %713 = vmatpush1.xpose.msra.mxu0 0.0
  %714 = vmatprep.subr.mxu0 0.0
  %715 = vmatpush1.xpose.msra.mxu0 0.0
  %716 = vmatprep.subr.mxu0 0.0
  %717 = vmatpush1.xpose.msra.mxu0 0.0
  %718 = vmatprep.subr.mxu0 0.0
  %719 = vmatpush1.xpose.msra.mxu0 0.0
  %720 = vmatprep.subr.mxu0 0.0
  %721 = vmatpush1.xpose.msra.mxu0 0.0
  %722 = vmatprep.subr.mxu0 0.0
  %723 = vmatpush1.xpose.msra.mxu0 0.0
  %724 = vmatprep.subr.mxu0 0.0
  %725 = vmatpush1.xpose.msra.mxu0 0.0
  %726 = vmatprep.subr.mxu0 0.0
  %727 = vmatpush1.xpose.msra.mxu0 0.0
  %728 = vmatprep.subr.mxu0 0.0
  %729 = vmatpush1.xpose.msra.mxu0 0.0
  %730 = vmatprep.subr.mxu0 0.0
  %731 = vmatpush1.xpose.msra.mxu0 0.0
  %732 = vmatprep.subr.mxu0 0.0
  %733 = vmatpush1.xpose.msra.mxu0 0.0
  %734 = vmatprep.subr.mxu0 0.0
  %735 = vmatpush1.xpose.msra.mxu0 %v704
  %736 = vmatprep.subr.mxu0 0.0
  %737 = vmatpush1.xpose.msra.mxu0 %v702
  %738 = vmatprep.subr.mxu0 0.0
  %739 = vmatpush2.xpose.msra.mxu0 0.0
  %740 = vmatprep.subr.mxu0 0.0
  %741 = vmatpush2.xpose.msra.mxu0 0.0
  %742 = vmatprep.subr.mxu0 0.0
  %743 = vmatpush2.xpose.msra.mxu0 0.0
  %744 = vmatprep.subr.mxu0 0.0
  %745 = vmatpush2.xpose.msra.mxu0 0.0
  %746 = vmatprep.subr.mxu0 0.0
  %747 = vmatpush2.xpose.msra.mxu0 0.0
  %748 = vmatprep.subr.mxu0 0.0
  %749 = vmatpush2.xpose.msra.mxu0 0.0
  %750 = vmatprep.subr.mxu0 0.0
  %751 = vmatpush2.xpose.msra.mxu0 0.0
  %752 = vmatprep.subr.mxu0 0.0
  %753 = vmatpush2.xpose.msra.mxu0 0.0
  %754 = vmatprep.subr.mxu0 0.0
  %755 = vmatpush2.xpose.msra.mxu0 0.0
  %756 = vmatprep.subr.mxu0 0.0
  %757 = vmatpush2.xpose.msra.mxu0 0.0
  %758 = vmatprep.subr.mxu0 0.0
  %759 = vmatpush2.xpose.msra.mxu0 0.0
  %760 = vmatprep.subr.mxu0 0.0
  %761 = vmatpush2.xpose.msra.mxu0 0.0
  %762 = vmatprep.subr.mxu0 0.0
  %763 = vmatpush2.xpose.msra.mxu0 0.0
  %764 = vmatprep.subr.mxu0 0.0
  %765 = vmatpush2.xpose.msra.mxu0 0.0
  %766 = vmatprep.subr.mxu0 0.0
  %767 = vmatpush2.xpose.msra.mxu0 0.0
  %768 = vmatprep.subr.mxu0 0.0
  %769 = vmatpush2.xpose.msra.mxu0 0.0
  %770 = vmatprep.mubr.f32.mxu0 0.0
  %771 = vmatmul.mubr.f32.gmra.mxu0 %v698
  %v772 = vpop.f32.mrf.mxu0
  %v773 = vadd.f32 0.0, %v772
  %v774 = vpop.f32.mrf.mxu0
  %775 = vmatprep.mubr.f32.mxu0 0.0
  %776 = vmatmul.mubr.f32.gmra.mxu0 %v700
  %v777 = vpop.f32.mrf.mxu0
  %v778 = vadd.f32 0.0, %v777
  %v779 = vpop.f32.mrf.mxu0
  %780 = vdwg.mxu0
  %v781 = vmul.f32 %v773, 0.17677669
  %v782 = vmul.f32 %v778, 0.17677669
  %v783 = vsel %vm382, %v781, -inf
  %784 = vmax.xlane.f32.xlu0 %v783
  %v785 = vpop.xlane.xlu0 %784
  %v786 = vsel %vm382, %v782, -inf
  %787 = vmax.xlane.f32.xlu0 %v786
  %v788 = vpop.xlane.xlu0 %787
  %v789 = vsub.f32 %v781, %v785
  %v790 = vsub.f32 %v782, %v788
  %v791 = vmul.f32 %v789, 1.442695
  %v792 = vpow.pop %v791
  %v793 = vmul.f32 %v790, 1.442695
  %v794 = vpow.pop %v793
  %v795 = vsel %vm382, %v792, 0.0
  %796 = vadd.xlane.f32.xlu0 %v795
  %v797 = vpop.xlane.xlu0 %796
  %v798 = vsel %vm382, %v794, 0.0
  %799 = vadd.xlane.f32.xlu0 %v798
  %v800 = vpop.xlane.xlu0 %799
  %v801 = vrcp.pop %v797
  %v802 = vmul.f32 %v792, %v801
  %v803 = vrcp.pop %v800
  %v804 = vmul.f32 %v794, %v803
  %805 = vrot.lane.b32.xlu0 %v284, 64
  %v806 = vpop.permute.xlu0 %805
  %807 = vrot.lane.b32.xlu0 %v289, 64
  %v808 = vpop.permute.xlu0 %807
  %v812 = vsel %vm382, %v802, 0
  %v815 = vsel %vm382, %v804, 0
  %817 = vmatprep.subr.mxu0 0.0
  %818 = vmatpush1.msra.mxu0 0.0
  %819 = vmatprep.subr.mxu0 0.0
  %820 = vmatpush1.msra.mxu0 0.0
  %821 = vmatprep.subr.mxu0 0.0
  %822 = vmatpush1.msra.mxu0 0.0
  %823 = vmatprep.subr.mxu0 0.0
  %824 = vmatpush1.msra.mxu0 0.0
  %825 = vmatprep.subr.mxu0 0.0
  %826 = vmatpush1.msra.mxu0 0.0
  %827 = vmatprep.subr.mxu0 0.0
  %828 = vmatpush1.msra.mxu0 0.0
  %829 = vmatprep.subr.mxu0 0.0
  %830 = vmatpush1.msra.mxu0 0.0
  %831 = vmatprep.subr.mxu0 0.0
  %832 = vmatpush1.msra.mxu0 0.0
  %833 = vmatprep.subr.mxu0 0.0
  %834 = vmatpush1.msra.mxu0 0.0
  %835 = vmatprep.subr.mxu0 0.0
  %836 = vmatpush1.msra.mxu0 0.0
  %837 = vmatprep.subr.mxu0 0.0
  %838 = vmatpush1.msra.mxu0 0.0
  %839 = vmatprep.subr.mxu0 0.0
  %840 = vmatpush1.msra.mxu0 0.0
  %841 = vmatprep.subr.mxu0 0.0
  %842 = vmatpush1.msra.mxu0 0.0
  %843 = vmatprep.subr.mxu0 0.0
  %844 = vmatpush1.msra.mxu0 0.0
  %845 = vmatprep.subr.mxu0 0.0
  %846 = vmatpush1.msra.mxu0 %v808
  %847 = vmatprep.subr.mxu0 0.0
  %848 = vmatpush1.msra.mxu0 %v806
  %849 = vmatprep.subr.mxu0 0.0
  %850 = vmatpush2.msra.mxu0 0.0
  %851 = vmatprep.subr.mxu0 0.0
  %852 = vmatpush2.msra.mxu0 0.0
  %853 = vmatprep.subr.mxu0 0.0
  %854 = vmatpush2.msra.mxu0 0.0
  %855 = vmatprep.subr.mxu0 0.0
  %856 = vmatpush2.msra.mxu0 0.0
  %857 = vmatprep.subr.mxu0 0.0
  %858 = vmatpush2.msra.mxu0 0.0
  %859 = vmatprep.subr.mxu0 0.0
  %860 = vmatpush2.msra.mxu0 0.0
  %861 = vmatprep.subr.mxu0 0.0
  %862 = vmatpush2.msra.mxu0 0.0
  %863 = vmatprep.subr.mxu0 0.0
  %864 = vmatpush2.msra.mxu0 0.0
  %865 = vmatprep.subr.mxu0 0.0
  %866 = vmatpush2.msra.mxu0 0.0
  %867 = vmatprep.subr.mxu0 0.0
  %868 = vmatpush2.msra.mxu0 0.0
  %869 = vmatprep.subr.mxu0 0.0
  %870 = vmatpush2.msra.mxu0 0.0
  %871 = vmatprep.subr.mxu0 0.0
  %872 = vmatpush2.msra.mxu0 0.0
  %873 = vmatprep.subr.mxu0 0.0
  %874 = vmatpush2.msra.mxu0 0.0
  %875 = vmatprep.subr.mxu0 0.0
  %876 = vmatpush2.msra.mxu0 0.0
  %877 = vmatprep.subr.mxu0 0.0
  %878 = vmatpush2.msra.mxu0 0.0
  %879 = vmatprep.subr.mxu0 0.0
  %880 = vmatpush2.msra.mxu0 0.0
  %881 = vmatprep.mubr.f32.mxu0 0.0
  %882 = vmatmul.mubr.f32.gmra.mxu0 %v812
  %v883 = vpop.f32.mrf.mxu0
  %v884 = vadd.f32 0.0, %v883
  %v885 = vpop.f32.mrf.mxu0
  %886 = vmatprep.mubr.f32.mxu0 0.0
  %887 = vmatmul.mubr.f32.gmra.mxu0 %v815
  %v888 = vpop.f32.mrf.mxu0
  %v889 = vadd.f32 0.0, %v888
  %v890 = vpop.f32.mrf.mxu0
  %891 = vdwg.mxu0
  %892 = vrot.lane.b32.xlu0 %v102, 32
  %v893 = vpop.permute.xlu0 %892
  %894 = vrot.lane.b32.xlu0 %v107, 32
  %v895 = vpop.permute.xlu0 %894
  %896 = vrot.lane.b32.xlu0 %v193, 32
  %v897 = vpop.permute.xlu0 %896
  %898 = vrot.lane.b32.xlu0 %v198, 32
  %v899 = vpop.permute.xlu0 %898
  %v900 = vsel %vm292, %v893, 0
  %v902 = vsel %vm292, %v895, 0
  %v904 = vsel %vm292, %v897, 0
  %v906 = vsel %vm292, %v899, 0
  %908 = vmatprep.subr.mxu0 0.0
  %909 = vmatpush1.xpose.msra.mxu0 0.0
  %910 = vmatprep.subr.mxu0 0.0
  %911 = vmatpush1.xpose.msra.mxu0 0.0
  %912 = vmatprep.subr.mxu0 0.0
  %913 = vmatpush1.xpose.msra.mxu0 0.0
  %914 = vmatprep.subr.mxu0 0.0
  %915 = vmatpush1.xpose.msra.mxu0 0.0
  %916 = vmatprep.subr.mxu0 0.0
  %917 = vmatpush1.xpose.msra.mxu0 0.0
  %918 = vmatprep.subr.mxu0 0.0
  %919 = vmatpush1.xpose.msra.mxu0 0.0
  %920 = vmatprep.subr.mxu0 0.0
  %921 = vmatpush1.xpose.msra.mxu0 0.0
  %922 = vmatprep.subr.mxu0 0.0
  %923 = vmatpush1.xpose.msra.mxu0 0.0
  %924 = vmatprep.subr.mxu0 0.0
  %925 = vmatpush1.xpose.msra.mxu0 0.0
  %926 = vmatprep.subr.mxu0 0.0
  %927 = vmatpush1.xpose.msra.mxu0 0.0
  %928 = vmatprep.subr.mxu0 0.0
  %929 = vmatpush1.xpose.msra.mxu0 0.0
  %930 = vmatprep.subr.mxu0 0.0
  %931 = vmatpush1.xpose.msra.mxu0 0.0
  %932 = vmatprep.subr.mxu0 0.0
  %933 = vmatpush1.xpose.msra.mxu0 0.0
  %934 = vmatprep.subr.mxu0 0.0
  %935 = vmatpush1.xpose.msra.mxu0 0.0
  %936 = vmatprep.subr.mxu0 0.0
  %937 = vmatpush1.xpose.msra.mxu0 %v906
  %938 = vmatprep.subr.mxu0 0.0
  %939 = vmatpush1.xpose.msra.mxu0 %v904
  %940 = vmatprep.subr.mxu0 0.0
  %941 = vmatpush2.xpose.msra.mxu0 0.0
  %942 = vmatprep.subr.mxu0 0.0
  %943 = vmatpush2.xpose.msra.mxu0 0.0
  %944 = vmatprep.subr.mxu0 0.0
  %945 = vmatpush2.xpose.msra.mxu0 0.0
  %946 = vmatprep.subr.mxu0 0.0
  %947 = vmatpush2.xpose.msra.mxu0 0.0
  %948 = vmatprep.subr.mxu0 0.0
  %949 = vmatpush2.xpose.msra.mxu0 0.0
  %950 = vmatprep.subr.mxu0 0.0
  %951 = vmatpush2.xpose.msra.mxu0 0.0
  %952 = vmatprep.subr.mxu0 0.0
  %953 = vmatpush2.xpose.msra.mxu0 0.0
  %954 = vmatprep.subr.mxu0 0.0
  %955 = vmatpush2.xpose.msra.mxu0 0.0
  %956 = vmatprep.subr.mxu0 0.0
  %957 = vmatpush2.xpose.msra.mxu0 0.0
  %958 = vmatprep.subr.mxu0 0.0
  %959 = vmatpush2.xpose.msra.mxu0 0.0
  %960 = vmatprep.subr.mxu0 0.0
  %961 = vmatpush2.xpose.msra.mxu0 0.0
  %962 = vmatprep.subr.mxu0 0.0
  %963 = vmatpush2.xpose.msra.mxu0 0.0
  %964 = vmatprep.subr.mxu0 0.0
  %965 = vmatpush2.xpose.msra.mxu0 0.0
  %966 = vmatprep.subr.mxu0 0.0
  %967 = vmatpush2.xpose.msra.mxu0 0.0
  %968 = vmatprep.subr.mxu0 0.0
  %969 = vmatpush2.xpose.msra.mxu0 0.0
  %970 = vmatprep.subr.mxu0 0.0
  %971 = vmatpush2.xpose.msra.mxu0 0.0
  %972 = vmatprep.mubr.f32.mxu0 0.0
  %973 = vmatmul.mubr.f32.gmra.mxu0 %v900
  %v974 = vpop.f32.mrf.mxu0
  %v975 = vadd.f32 0.0, %v974
  %v976 = vpop.f32.mrf.mxu0
  %977 = vmatprep.mubr.f32.mxu0 0.0
  %978 = vmatmul.mubr.f32.gmra.mxu0 %v902
  %v979 = vpop.f32.mrf.mxu0
  %v980 = vadd.f32 0.0, %v979
  %v981 = vpop.f32.mrf.mxu0
  %982 = vdwg.mxu0
  %v983 = vmul.f32 %v975, 0.17677669
  %v984 = vmul.f32 %v980, 0.17677669
  %v985 = vsel %vm382, %v983, -inf
  %986 = vmax.xlane.f32.xlu0 %v985
  %v987 = vpop.xlane.xlu0 %986
  %v988 = vsel %vm382, %v984, -inf
  %989 = vmax.xlane.f32.xlu0 %v988
  %v990 = vpop.xlane.xlu0 %989
  %v991 = vsub.f32 %v983, %v987
  %v992 = vsub.f32 %v984, %v990
  %v993 = vmul.f32 %v991, 1.442695
  %v994 = vpow.pop %v993
  %v995 = vmul.f32 %v992, 1.442695
  %v996 = vpow.pop %v995
  %v997 = vsel %vm382, %v994, 0.0
  %998 = vadd.xlane.f32.xlu0 %v997
  %v999 = vpop.xlane.xlu0 %998
  %v1000 = vsel %vm382, %v996, 0.0
  %1001 = vadd.xlane.f32.xlu0 %v1000
  %v1002 = vpop.xlane.xlu0 %1001
  %v1003 = vrcp.pop %v999
  %v1004 = vmul.f32 %v994, %v1003
  %v1005 = vrcp.pop %v1002
  %v1006 = vmul.f32 %v996, %v1005
  %1007 = vrot.lane.b32.xlu0 %v284, 32
  %v1008 = vpop.permute.xlu0 %1007
  %1009 = vrot.lane.b32.xlu0 %v289, 32
  %v1010 = vpop.permute.xlu0 %1009
  %v1014 = vsel %vm382, %v1004, 0
  %v1017 = vsel %vm382, %v1006, 0
  %1019 = vmatprep.subr.mxu0 0.0
  %1020 = vmatpush1.msra.mxu0 0.0
  %1021 = vmatprep.subr.mxu0 0.0
  %1022 = vmatpush1.msra.mxu0 0.0
  %1023 = vmatprep.subr.mxu0 0.0
  %1024 = vmatpush1.msra.mxu0 0.0
  %1025 = vmatprep.subr.mxu0 0.0
  %1026 = vmatpush1.msra.mxu0 0.0
  %1027 = vmatprep.subr.mxu0 0.0
  %1028 = vmatpush1.msra.mxu0 0.0
  %1029 = vmatprep.subr.mxu0 0.0
  %1030 = vmatpush1.msra.mxu0 0.0
  %1031 = vmatprep.subr.mxu0 0.0
  %1032 = vmatpush1.msra.mxu0 0.0
  %1033 = vmatprep.subr.mxu0 0.0
  %1034 = vmatpush1.msra.mxu0 0.0
  %1035 = vmatprep.subr.mxu0 0.0
  %1036 = vmatpush1.msra.mxu0 0.0
  %1037 = vmatprep.subr.mxu0 0.0
  %1038 = vmatpush1.msra.mxu0 0.0
  %1039 = vmatprep.subr.mxu0 0.0
  %1040 = vmatpush1.msra.mxu0 0.0
  %1041 = vmatprep.subr.mxu0 0.0
  %1042 = vmatpush1.msra.mxu0 0.0
  %1043 = vmatprep.subr.mxu0 0.0
  %1044 = vmatpush1.msra.mxu0 0.0
  %1045 = vmatprep.subr.mxu0 0.0
  %1046 = vmatpush1.msra.mxu0 0.0
  %1047 = vmatprep.subr.mxu0 0.0
  %1048 = vmatpush1.msra.mxu0 %v1010
  %1049 = vmatprep.subr.mxu0 0.0
  %1050 = vmatpush1.msra.mxu0 %v1008
  %1051 = vmatprep.subr.mxu0 0.0
  %1052 = vmatpush2.msra.mxu0 0.0
  %1053 = vmatprep.subr.mxu0 0.0
  %1054 = vmatpush2.msra.mxu0 0.0
  %1055 = vmatprep.subr.mxu0 0.0
  %1056 = vmatpush2.msra.mxu0 0.0
  %1057 = vmatprep.subr.mxu0 0.0
  %1058 = vmatpush2.msra.mxu0 0.0
  %1059 = vmatprep.subr.mxu0 0.0
  %1060 = vmatpush2.msra.mxu0 0.0
  %1061 = vmatprep.subr.mxu0 0.0
  %1062 = vmatpush2.msra.mxu0 0.0
  %1063 = vmatprep.subr.mxu0 0.0
  %1064 = vmatpush2.msra.mxu0 0.0
  %1065 = vmatprep.subr.mxu0 0.0
  %1066 = vmatpush2.msra.mxu0 0.0
  %1067 = vmatprep.subr.mxu0 0.0
  %1068 = vmatpush2.msra.mxu0 0.0
  %1069 = vmatprep.subr.mxu0 0.0
  %1070 = vmatpush2.msra.mxu0 0.0
  %1071 = vmatprep.subr.mxu0 0.0
  %1072 = vmatpush2.msra.mxu0 0.0
  %1073 = vmatprep.subr.mxu0 0.0
  %1074 = vmatpush2.msra.mxu0 0.0
  %1075 = vmatprep.subr.mxu0 0.0
  %1076 = vmatpush2.msra.mxu0 0.0
  %1077 = vmatprep.subr.mxu0 0.0
  %1078 = vmatpush2.msra.mxu0 0.0
  %1079 = vmatprep.subr.mxu0 0.0
  %1080 = vmatpush2.msra.mxu0 0.0
  %1081 = vmatprep.subr.mxu0 0.0
  %1082 = vmatpush2.msra.mxu0 0.0
  %1083 = vmatprep.mubr.f32.mxu0 0.0
  %1084 = vmatmul.mubr.f32.gmra.mxu0 %v1014
  %v1085 = vpop.f32.mrf.mxu0
  %v1086 = vadd.f32 0.0, %v1085
  %v1087 = vpop.f32.mrf.mxu0
  %1088 = vmatprep.mubr.f32.mxu0 0.0
  %1089 = vmatmul.mubr.f32.gmra.mxu0 %v1017
  %v1090 = vpop.f32.mrf.mxu0
  %v1091 = vadd.f32 0.0, %v1090
  %v1092 = vpop.f32.mrf.mxu0
  %1093 = vdwg.mxu0
  %1096 = vrot.lane.b32.xlu0 %v682, 32
  %v1097 = vpop.permute.xlu0 %1096
  %1098 = vrot.lane.b32.xlu0 %v687, 32
  %v1099 = vpop.permute.xlu0 %1098
  %1104 = vrot.lane.b32.xlu0 %v884, 64
  %v1105 = vpop.permute.xlu0 %1104
  %1106 = vrot.lane.b32.xlu0 %v889, 64
  %v1107 = vpop.permute.xlu0 %1106
  %1112 = vrot.lane.b32.xlu0 %v1086, 96
  %v1113 = vpop.permute.xlu0 %1112
  %1114 = vrot.lane.b32.xlu0 %v1091, 96
  %v1115 = vpop.permute.xlu0 %1114
  %v1118 = vsel %vm292, %v478, %v1097
  %v1119 = vsel %vm292, %v483, %v1099
  %vm1120 = vcmask 523264
  %v1121 = vsel %vm1120, %v1118, %v1105
  %v1122 = vsel %vm1120, %v1119, %v1107
  %vm1123 = vcmask 785408
  %v1124 = vsel %vm1123, %v1121, %v1113
  %v1125 = vsel %vm1123, %v1122, %v1115
  %1126 = vst [vmem:[%s4] sm:$0xff] %v1124
  %1127 = vst [vmem:[%s4 + $0x8] sm:$0xff] %v1125
  // Predicated region
  $region18: #{feature_encoder_forward.7} parent=0 // pred_check
    _
  $region19: #{feature_encoder_forward.7} parent=0 // pred_check_branch
    %1129 = sbr.rel (0) target = $region21
  $region20: #{feature_encoder_forward.7} parent=0 // pred_region
    _
  $region21: #{feature_encoder_forward.7} parent=0 // pred_fallthru
    _
  // Predicated region
  $region22: #{feature_encoder_forward.7} parent=0 // pred_check
    _
  $region23: #{feature_encoder_forward.7} parent=0 // pred_check_branch
    %1131 = sbr.rel (0) target = $region25
  $region24: #{feature_encoder_forward.7} parent=0 // pred_region
    _
  $region25: #{feature_encoder_forward.7} parent=0 // pred_fallthru
    _

</llo_original>
